<compile_context>
chip_gen: v6e
topology: v6e:2x2x1
jax: 0.10.0
libtpu: 0.0.40
codegen_flags: <defaults>
</compile_context>

<pallas_src>
import functools

import numpy as np
import jax
import jax.numpy as jnp
from jax.experimental import pallas as pl
from jax.experimental.pallas import tpu as pltpu


def _papr_reduce_kernel(m_mean_ref, m_bcast_ref, re_ref, im_ref, ore_ref, oim_ref, *,
                        peak_th, group_anl_th, s_sc):
    """One batch-tile: power, row mean, soft clip, group-ANL limit, fused scale."""
    eps = jnp.float32(1e-12)
    one = jnp.float32(1.0)

    re = re_ref[...].astype(jnp.float32)            # [TB, N]
    im = im_ref[...].astype(jnp.float32)            # [TB, N]

    # --- per-sample power and per-row average power (lane reduction, XLU) ---
    p = re * re + im * im                           # [TB, N]
    avg = jnp.mean(p, axis=-1, keepdims=True)       # [TB, 1]

    # --- soft peak clipping: |s| > peak_th * rms -> scale down to threshold ---
    # single EUP rsqrt per element; dscale = clip_scale - 1  (<= 0)
    # TODO(synk): if v7x profiling shows the single EUP slot saturating, split the
    # rsqrt into a coarse rsqrt + one Newton-Raphson step on the VALU.
    thr_amp = jnp.float32(peak_th) * jnp.sqrt(avg)                    # [TB, 1]
    dscale = jnp.minimum(one, thr_amp * jax.lax.rsqrt(jnp.maximum(p, eps))) - one
    npow = p * (dscale * dscale)                    # clipping-noise power [TB, N]
    # (p is dead past this point -> fewer live [TB, N] f32 arrays)

    # --- group average-noise-level limit (vectorized over all groups) ---
    # Group mean and group->lane broadcast are two tiny MXU matmuls against the
    # hoisted one-hot constants; f32 HIGHEST precision keeps them exact.
    # Note: when lim == 0 and gnoise == 0 this gives gscale = min(1, 0) = 0 where
    # the reference's where(gnoise > lim, ...) gives 1 — benign, since dscale == 0
    # wherever npow == 0, so the output is identical.
    lim = jnp.float32(group_anl_th) * avg                             # [TB, 1]
    gnoise = jnp.dot(npow, m_mean_ref[...],
                     preferred_element_type=jnp.float32,
                     precision=jax.lax.Precision.HIGHEST)             # [TB, G]
    gscale = jnp.minimum(
        one, jnp.sqrt(lim) * jax.lax.rsqrt(jnp.maximum(gnoise, eps))) # [TB, G]
    gs_full = jnp.dot(gscale, m_bcast_ref[...],
                      preferred_element_type=jnp.float32,
                      precision=jax.lax.Precision.HIGHEST)            # [TB, N]

    # --- fused output: out = s * (1 + dscale * gs) * S_sc ---
    out_scale = (one + dscale * gs_full) * jnp.float32(s_sc)          # [TB, N]
    # re-read the (already VMEM-resident) input tiles for the stores instead of
    # keeping separate f32 copies live across the whole kernel.
    ore_ref[...] = (re_ref[...].astype(jnp.float32) * out_scale).astype(ore_ref.dtype)
    oim_ref[...] = (im_ref[...].astype(jnp.float32) * out_scale).astype(oim_ref.dtype)


def _group_matrices(n, g_sc):
    """One-hot group-mean [N, G] and group-broadcast [G, N] matrices (built once)."""
    g = n // g_sc
    lane_grp = np.arange(n) // g_sc
    m_mean = (lane_grp[:, None] == np.arange(g)[None, :]).astype(np.float32) / g_sc
    m_bcast = (np.arange(g)[:, None] == lane_grp[None, :]).astype(np.float32)
    return jnp.asarray(m_mean), jnp.asarray(m_bcast)


def _tpu_generation_budget():
    """(per-tile f32 byte budget, vmem_limit_bytes, force >=2 grid steps?)."""
    vmem_cap = None
    try:
        info = pltpu.get_tpu_info()
        vmem_cap = int(getattr(info, "vmem_capacity_bytes", 0)) or None
    except Exception:
        vmem_cap = None
    if vmem_cap is None:
        try:
            kind = jax.devices()[0].device_kind.lower()
            vmem_cap = (64 << 20) if "v7" in kind else (128 << 20)
        except Exception:
            vmem_cap = 64 << 20  # conservative (v7x-sized) fallback
    if vmem_cap < (100 << 20):
        # v7x-class: 64 MiB VMEM per TC, 2 TCs -> smaller tiles, want >=2 grid steps
        return (2 << 20), (48 << 20), True
    # v5e / v6e-class: 128 MiB VMEM, single TC -> bigger tiles, more headroom
    return (4 << 20), (96 << 20), False


def _pick_tb(batch, n, tile_budget_bytes, want_multi_step, requested=None):
    """Batch-tile size: fill the per-generation VMEM budget, multiple of 8."""
    if requested is not None:
        tb = min(int(requested), batch)
    else:
        tb = min(batch, max(8, tile_budget_bytes // (4 * n)))
        if want_multi_step and batch >= 16:
            # guarantee >=2 grid steps so the 'parallel' axis uses both v7x cores
            tb = min(tb, max(8, -(-batch // 2)))
    if tb < batch:
        tb = max(8, (tb // 8) * 8)
    return max(1, tb)


def papr_reduce(s_re, s_im, *, peak_th, group_anl_th, g_sc, s_sc, tb=None):
    """Batch-tiled pallas_call; full row (N) per block so the row mean is exact."""
    B, N = s_re.shape
    assert N % g_sc == 0, "N must be a multiple of the group size G_SC"
    n_groups = N // g_sc

    tile_budget, vmem_limit, want_multi = _tpu_generation_budget()
    tb = _pick_tb(B, N, tile_budget, want_multi, tb)

    m_mean, m_bcast = _group_matrices(N, g_sc)

    kernel = functools.partial(
        _papr_reduce_kernel,
        peak_th=float(peak_th),
        group_anl_th=float(group_anl_th),
        s_sc=float(s_sc),
    )

    io_block = pl.BlockSpec((tb, N), lambda i: (i, 0))
    const_mean = pl.BlockSpec((N, n_groups), lambda i: (0, 0))   # fetched once
    const_bcast = pl.BlockSpec((n_groups, N), lambda i: (0, 0))  # fetched once

    return pl.pallas_call(
        kernel,
        out_shape=(jax.ShapeDtypeStruct((B, N), s_re.dtype),
                   jax.ShapeDtypeStruct((B, N), s_im.dtype)),
        grid=(pl.cdiv(B, tb),),
        in_specs=[const_mean, const_bcast, io_block, io_block],
        out_specs=(pl.BlockSpec((tb, N), lambda i: (i, 0)),
                   pl.BlockSpec((tb, N), lambda i: (i, 0))),
        compiler_params=pltpu.CompilerParams(
            dimension_semantics=("parallel",),
            vmem_limit_bytes=vmem_limit),
    )(m_mean, m_bcast, s_re, s_im)


def _papr_reduce_ref(s_re, s_im, *, peak_th, group_anl_th, g_sc, s_sc):
    """Pure-JAX reference (independent where()-based formulation)."""
    re = s_re.astype(jnp.float32)
    im = s_im.astype(jnp.float32)
    B, N = re.shape
    eps = 1e-12
    p = re * re + im * im
    avg = jnp.mean(p, axis=-1, keepdims=True)
    thr_p = (peak_th ** 2) * avg
    clip_scale = jnp.where(p > thr_p, jnp.sqrt(thr_p / jnp.maximum(p, eps)), 1.0)
    nre = re * (clip_scale - 1.0)
    nim = im * (clip_scale - 1.0)
    npow = nre * nre + nim * nim
    lim = group_anl_th * avg
    g = N // g_sc
    gnoise = jnp.mean(npow.reshape(B, g, g_sc), axis=-1, keepdims=True)
    gs = jnp.where(gnoise > lim[:, :, None],
                   jnp.sqrt(lim[:, :, None] / jnp.maximum(gnoise, eps)), 1.0)
    gs_full = jnp.broadcast_to(gs, (B, g, g_sc)).reshape(B, N)
    return ((re + nre * gs_full) * s_sc, (im + nim * gs_full) * s_sc)


if __name__ == "__main__":
    # Deterministic module "parameters" (from reduction_layer.__init__ signature).
    peak_th = 1.5          # peak amplitude threshold (x RMS)
    group_ANL_th = 0.05    # allowed group average noise level (x avg power)
    G_SC = 128             # samples per subcarrier group
    S_sc = 0.8             # overall output scale
    # cfg: unused configuration dict in the reference forward pass.

    # Small deterministic example input: complex baseband signal as (re, im).
    B, N = 32, 512
    key = jax.random.PRNGKey(0)
    k_re, k_im = jax.random.split(key)
    s_re = jax.random.normal(k_re, (B, N), dtype=jnp.float32)
    s_im = jax.random.normal(k_im, (B, N), dtype=jnp.float32)

    # tb=16 -> grid of 2 steps over the batch axis (exercises the tiled/pipelined
    # path); production callers should omit tb and let the picker fill VMEM.
    out_re, out_im = papr_reduce(s_re, s_im,
                                 peak_th=peak_th,
                                 group_anl_th=group_ANL_th,
                                 g_sc=G_SC,
                                 s_sc=S_sc,
                                 tb=16)
    jax.block_until_ready((out_re, out_im))

    ref_re, ref_im = _papr_reduce_ref(s_re, s_im,
                                      peak_th=peak_th,
                                      group_anl_th=group_ANL_th,
                                      g_sc=G_SC,
                                      s_sc=S_sc)
    assert jnp.allclose(out_re, ref_re, atol=1e-5, rtol=1e-5)
    assert jnp.allclose(out_im, ref_im, atol=1e-5, rtol=1e-5)

    print("KERNEL_OK")
</pallas_src>

<mosaic_0001>
module attributes {stable_mosaic.version = 11 : i64} {
  func.func @_papr_reduce_kernel(%arg0: i32, %arg1: memref<512x4xf32, #tpu.memory_space<vmem>>, %arg2: memref<4x512xf32, #tpu.memory_space<vmem>>, %arg3: memref<16x512xf32, #tpu.memory_space<vmem>>, %arg4: memref<16x512xf32, #tpu.memory_space<vmem>>, %arg5: memref<16x512xf32, #tpu.memory_space<vmem>>, %arg6: memref<16x512xf32, #tpu.memory_space<vmem>>) attributes {dimension_semantics = [#tpu.dimension_semantics<parallel>], iteration_bounds = array<i64: 2>, scalar_prefetch = 0 : i64, scratch_operands = 0 : i64, tpu.core_type = #tpu.core_type<tc>, window_params = [{pipeline_mode = #tpu.pipeline_mode<synchronous>, transform_indices = @transform_0, window_bounds = array<i64: 512, 4>}, {pipeline_mode = #tpu.pipeline_mode<synchronous>, transform_indices = @transform_1, window_bounds = array<i64: 4, 512>}, {transform_indices = @transform_2, window_bounds = array<i64: 16, 512>}, {transform_indices = @transform_3, window_bounds = array<i64: 16, 512>}, {transform_indices = @transform_4, window_bounds = array<i64: 16, 512>}, {transform_indices = @transform_5, window_bounds = array<i64: 16, 512>}]} {
    %c0 = arith.constant 0 : index
    %c0_0 = arith.constant 0 : index
    %0 = vector.load %arg3[%c0, %c0_0] : memref<16x512xf32, #tpu.memory_space<vmem>>, vector<16x512xf32>
    %c0_1 = arith.constant 0 : index
    %c0_2 = arith.constant 0 : index
    %1 = vector.load %arg4[%c0_1, %c0_2] : memref<16x512xf32, #tpu.memory_space<vmem>>, vector<16x512xf32>
    %2 = arith.mulf %0, %0 : vector<16x512xf32>
    %3 = arith.mulf %1, %1 : vector<16x512xf32>
    %4 = arith.addf %2, %3 : vector<16x512xf32>
    %cst = arith.constant dense<0.000000e+00> : vector<16xf32>
    %5 = vector.multi_reduction <add>, %4, %cst [1] : vector<16x512xf32> to vector<16xf32>
    %6 = vector.shape_cast %5 : vector<16xf32> to vector<16x1xf32>
    %cst_3 = arith.constant 5.120000e+02 : f32
    %7 = vector.broadcast %cst_3 : f32 to vector<16x1xf32>
    %8 = arith.divf %6, %7 : vector<16x1xf32>
    %9 = math.sqrt %8 : vector<16x1xf32>
    %cst_4 = arith.constant 1.500000e+00 : f32
    %10 = vector.broadcast %cst_4 : f32 to vector<16x1xf32>
    %11 = arith.mulf %10, %9 : vector<16x1xf32>
    %cst_5 = arith.constant 9.99999996E-13 : f32
    %12 = vector.broadcast %cst_5 : f32 to vector<16x512xf32>
    %13 = arith.maximumf %4, %12 : vector<16x512xf32>
    %14 = math.rsqrt %13 : vector<16x512xf32>
    %15 = vector.broadcast %11 : vector<16x1xf32> to vector<16x512xf32>
    %16 = arith.mulf %15, %14 : vector<16x512xf32>
    %cst_6 = arith.constant 1.000000e+00 : f32
    %17 = vector.broadcast %cst_6 : f32 to vector<16x512xf32>
    %18 = arith.minimumf %17, %16 : vector<16x512xf32>
    %cst_7 = arith.constant 1.000000e+00 : f32
    %19 = vector.broadcast %cst_7 : f32 to vector<16x512xf32>
    %20 = arith.subf %18, %19 : vector<16x512xf32>
    %21 = arith.mulf %20, %20 : vector<16x512xf32>
    %22 = arith.mulf %4, %21 : vector<16x512xf32>
    %cst_8 = arith.constant 5.000000e-02 : f32
    %23 = vector.broadcast %cst_8 : f32 to vector<16x1xf32>
    %24 = arith.mulf %23, %8 : vector<16x1xf32>
    %c0_9 = arith.constant 0 : index
    %c0_10 = arith.constant 0 : index
    %25 = vector.load %arg1[%c0_9, %c0_10] : memref<512x4xf32, #tpu.memory_space<vmem>>, vector<512x4xf32>
    %cst_11 = arith.constant dense<0.000000e+00> : vector<16x4xf32>
    %26 = tpu.matmul %22, %25, %cst_11 {dimension_numbers = #tpu.dot_dimension_numbers<[1], [0], [0], [1], [0, 0, 1, 1], [], []>, precision = #tpu.contract_precision<fp32>} : vector<16x512xf32>, vector<512x4xf32>, vector<16x4xf32> -> vector<16x4xf32>
    %27 = math.sqrt %24 : vector<16x1xf32>
    %cst_12 = arith.constant 9.99999996E-13 : f32
    %28 = vector.broadcast %cst_12 : f32 to vector<16x4xf32>
    %29 = arith.maximumf %26, %28 : vector<16x4xf32>
    %30 = math.rsqrt %29 : vector<16x4xf32>
    %31 = vector.broadcast %27 : vector<16x1xf32> to vector<16x4xf32>
    %32 = arith.mulf %31, %30 : vector<16x4xf32>
    %cst_13 = arith.constant 1.000000e+00 : f32
    %33 = vector.broadcast %cst_13 : f32 to vector<16x4xf32>
    %34 = arith.minimumf %33, %32 : vector<16x4xf32>
    %c0_14 = arith.constant 0 : index
    %c0_15 = arith.constant 0 : index
    %35 = vector.load %arg2[%c0_14, %c0_15] : memref<4x512xf32, #tpu.memory_space<vmem>>, vector<4x512xf32>
    %cst_16 = arith.constant dense<0.000000e+00> : vector<16x512xf32>
    %36 = tpu.matmul %34, %35, %cst_16 {dimension_numbers = #tpu.dot_dimension_numbers<[1], [0], [0], [1], [0, 0, 1, 1], [], []>, precision = #tpu.contract_precision<fp32>} : vector<16x4xf32>, vector<4x512xf32>, vector<16x512xf32> -> vector<16x512xf32>
    %37 = arith.mulf %20, %36 : vector<16x512xf32>
    %cst_17 = arith.constant 1.000000e+00 : f32
    %38 = vector.broadcast %cst_17 : f32 to vector<16x512xf32>
    %39 = arith.addf %38, %37 : vector<16x512xf32>
    %cst_18 = arith.constant 8.000000e-01 : f32
    %40 = vector.broadcast %cst_18 : f32 to vector<16x512xf32>
    %41 = arith.mulf %39, %40 : vector<16x512xf32>
    %c0_19 = arith.constant 0 : index
    %c0_20 = arith.constant 0 : index
    %42 = vector.load %arg3[%c0_19, %c0_20] : memref<16x512xf32, #tpu.memory_space<vmem>>, vector<16x512xf32>
    %43 = arith.mulf %42, %41 : vector<16x512xf32>
    %c0_21 = arith.constant 0 : index
    %c0_22 = arith.constant 0 : index
    %44 = vector.load %arg5[%c0_21, %c0_22] : memref<16x512xf32, #tpu.memory_space<vmem>>, vector<16x512xf32>
    tpu.vector_store %arg5[%c0_21, %c0_22], %43 {strides = array<i32>} : memref<16x512xf32, #tpu.memory_space<vmem>>, vector<16x512xf32>,
    %c0_23 = arith.constant 0 : index
    %c0_24 = arith.constant 0 : index
    %45 = vector.load %arg4[%c0_23, %c0_24] : memref<16x512xf32, #tpu.memory_space<vmem>>, vector<16x512xf32>
    %46 = arith.mulf %45, %41 : vector<16x512xf32>
    %c0_25 = arith.constant 0 : index
    %c0_26 = arith.constant 0 : index
    %47 = vector.load %arg6[%c0_25, %c0_26] : memref<16x512xf32, #tpu.memory_space<vmem>>, vector<16x512xf32>
    tpu.vector_store %arg6[%c0_25, %c0_26], %46 {strides = array<i32>} : memref<16x512xf32, #tpu.memory_space<vmem>>, vector<16x512xf32>,
    return
  }
  func.func @transform_0(%arg0: i32) -> (i32, i32) {
    %c0_i32 = arith.constant 0 : i32
    %c0_i32_0 = arith.constant 0 : i32
    %c0_i32_1 = arith.constant 0 : i32
    return %c0_i32, %c0_i32_0 : i32, i32
  }
  func.func @transform_1(%arg0: i32) -> (i32, i32) {
    %c0_i32 = arith.constant 0 : i32
    %c0_i32_0 = arith.constant 0 : i32
    %c0_i32_1 = arith.constant 0 : i32
    return %c0_i32, %c0_i32_0 : i32, i32
  }
  func.func @transform_2(%arg0: i32) -> (i32, i32) {
    %c0_i32 = arith.constant 0 : i32
    %c0_i32_0 = arith.constant 0 : i32
    return %arg0, %c0_i32 : i32, i32
  }
  func.func @transform_3(%arg0: i32) -> (i32, i32) {
    %c0_i32 = arith.constant 0 : i32
    %c0_i32_0 = arith.constant 0 : i32
    return %arg0, %c0_i32 : i32, i32
  }
  func.func @transform_4(%arg0: i32) -> (i32, i32) {
    %c0_i32 = arith.constant 0 : i32
    %c0_i32_0 = arith.constant 0 : i32
    return %arg0, %c0_i32 : i32, i32
  }
  func.func @transform_5(%arg0: i32) -> (i32, i32) {
    %c0_i32 = arith.constant 0 : i32
    %c0_i32_0 = arith.constant 0 : i32
    return %arg0, %c0_i32 : i32, i32
  }
}

</mosaic_0001>

<llo_original>
// kernel: tpu_custom_call.1
$region0: #{tpu_custom_call.1}
  #allocation0 [shape = 'u32[]', space=smem, size = 0x4, offset = 0x4, fixed_abs, tag = 'smem constant byte address 0x4 - core index']
  #allocation1 [shape = 'u32[144,128]{1,0:T(1,128)}', space=vmem, size = 0x12000, scoped, tag = 'internal scratch']
  %s0 = inlined_call_operand.vmem [shape: f32[512,4], index: 0, kind: input, shape index: {}]
  %s1 = inlined_call_operand.vmem [shape: f32[4,512], index: 1, kind: input, shape index: {}]
  %s2 = inlined_call_operand.vmem [shape: f32[32,512], index: 2, kind: input, shape index: {}]
  %s3 = inlined_call_operand.vmem [shape: f32[32,512], index: 3, kind: input, shape index: {}]
  %s4 = inlined_call_operand.hbm [shape: f32[32,512], index: 4, kind: output, shape index: {0}]
  %s5 = inlined_call_operand.hbm [shape: f32[32,512], index: 5, kind: output, shape index: {1}]
  %6 = xla_tuple %s4, %s5
  %s7 = sld [smem:[#allocation0]]
  $region57: #{tpu_custom_call.1} parent=0
    _
  %s9 = ssub.s32 1, %s7
  %s10 = scalar_select 0, %s9, %s7
  $region1: #{tpu_custom_call.1} parent=0
    #allocation2 [shape = 'u8[65536]{0}', space=vmem, size = 0x10000, scoped, tag = 'output window, operand 0']
    #allocation3 [shape = 's32[2]{0}', space=sflag, size = 0x8, scoped, tag = 'scoped memory for tpu_custom_call.1']
    #allocation4 [shape = 'u8[65536]{0}', space=vmem, size = 0x10000, scoped, tag = 'output window, operand 1']
    #allocation5 [shape = 's32[2]{0}', space=sflag, size = 0x8, scoped, tag = 'scoped memory for tpu_custom_call.1']
    %11 = vsyncpa [#allocation3], 0
    %s12 = scalar_lea.sflag [#allocation3], 1
    %13 = vsyncpa %s12, 0
    %14 = vsyncpa [#allocation5], 0
    %s15 = scalar_lea.sflag [#allocation5], 1
    %16 = vsyncpa %s15, 0
    loop: start=0, step=1, limit=4
    $region2: #{tpu_custom_call.1} parent=1 // loop_pre_header
      _
    $region3: #{tpu_custom_call.1} parent=1 // loop_header
      %s18 = sphi 0, %s22
      %p19 = scmp.ge.s32.totalorder %s18, 4
      %s26 = sphi 0, %s26
      %s28 = sphi 0, %s26
      %s29 = sphi 0, %s28
      %s43 = sphi 0, %s29
      %s47 = sphi 0, %s47
      %s49 = sphi 0, %s47
      %s50 = sphi 0, %s49
      %s64 = sphi 0, %s50
      %s70 = sphi 0, %s72
      %s73 = sphi 0, %s70
      %s74 = sphi 0, %s73
      %s90 = sphi 0, %s74
      %s96 = sphi 0, %s98
      %s99 = sphi 0, %s96
      %s100 = sphi 0, %s99
      %s116 = sphi 0, %s100
      %s122 = sphi 0, %s124
      %s125 = sphi 0, %s122
      %s126 = sphi 0, %s125
      %s142 = sphi 0, %s126
      %s148 = sphi 0, %s150
      %s151 = sphi 0, %s148
      %s152 = sphi 0, %s151
      %s168 = sphi 0, %s152
    $region4: #{tpu_custom_call.1} parent=1 // loop_header_branch
      %21 = sbr.rel (%p19) target = $region8
    $region5: #{tpu_custom_call.1} parent=1 // loop_body
      %s23 = ssub.s32 %s18, 1
      %s24 = ssub.s32 %s18, 2
      %s25 = sadd.s32 %s18, 1
      %s27 = sadd.s32 %s26, 1
      %p30 = scmp.eq.s32.totalorder %s18, 1
      %p31 = scmp.ne.s32.totalorder %s26, %s28
      %p32 = scmp.eq.s32.totalorder %s18, 0
      %p33 = por %p31, %p32
      %p34 = scmp.ne.s32.totalorder %s26, %s28
      %p35 = scmp.eq.s32.totalorder %s23, 1
      %p36 = por %p34, %p35
      %p37 = scmp.ne.s32.totalorder %s28, %s29
      %p38 = scmp.eq.s32.totalorder %s23, 0
      %p39 = por %p37, %p38
      %p40 = scmp.ne.s32.totalorder %s28, %s29
      %p41 = scmp.eq.s32.totalorder %s24, 1
      %p42 = por %p40, %p41
      %p44 = scmp.ne.s32.totalorder %s29, %s43
      %p45 = scmp.eq.s32.totalorder %s24, 0
      %p46 = por %p44, %p45
      %s48 = sadd.s32 %s47, 1
      %p51 = scmp.eq.s32.totalorder %s18, 1
      %p52 = scmp.ne.s32.totalorder %s47, %s49
      %p53 = scmp.eq.s32.totalorder %s18, 0
      %p54 = por %p52, %p53
      %p55 = scmp.ne.s32.totalorder %s47, %s49
      %p56 = scmp.eq.s32.totalorder %s23, 1
      %p57 = por %p55, %p56
      %p58 = scmp.ne.s32.totalorder %s49, %s50
      %p59 = scmp.eq.s32.totalorder %s23, 0
      %p60 = por %p58, %p59
      %p61 = scmp.ne.s32.totalorder %s49, %s50
      %p62 = scmp.eq.s32.totalorder %s24, 1
      %p63 = por %p61, %p62
      %p65 = scmp.ne.s32.totalorder %s50, %s64
      %p66 = scmp.eq.s32.totalorder %s24, 0
      %p67 = por %p65, %p66
      %s68 = ssub.s32 %s18, %s25
      %p69 = scmp.eq.s32.totalorder %s68, 0
      %s71 = sadd.s32 %s70, 1
      %s72 = scalar_select %p69, %s70, %s71
      %p75 = pneg %p69
      %p76 = scmp.eq.s32.totalorder %s18, 1
      %p77 = por %p75, %p76
      %p78 = scmp.ne.s32.totalorder %s70, %s73
      %p79 = scmp.eq.s32.totalorder %s18, 0
      %p80 = por %p78, %p79
      %p81 = scmp.ne.s32.totalorder %s70, %s73
      %p82 = scmp.eq.s32.totalorder %s23, 1
      %p83 = por %p81, %p82
      %p84 = scmp.ne.s32.totalorder %s73, %s74
      %p85 = scmp.eq.s32.totalorder %s23, 0
      %p86 = por %p84, %p85
      %p87 = scmp.ne.s32.totalorder %s73, %s74
      %p88 = scmp.eq.s32.totalorder %s24, 1
      %p89 = por %p87, %p88
      %p91 = scmp.ne.s32.totalorder %s74, %s90
      %p92 = scmp.eq.s32.totalorder %s24, 0
      %p93 = por %p91, %p92
      %s94 = ssub.s32 %s18, %s25
      %p95 = scmp.eq.s32.totalorder %s94, 0
      %s97 = sadd.s32 %s96, 1
      %s98 = scalar_select %p95, %s96, %s97
      %p101 = pneg %p95
      %p102 = scmp.eq.s32.totalorder %s18, 1
      %p103 = por %p101, %p102
      %p104 = scmp.ne.s32.totalorder %s96, %s99
      %p105 = scmp.eq.s32.totalorder %s18, 0
      %p106 = por %p104, %p105
      %p107 = scmp.ne.s32.totalorder %s96, %s99
      %p108 = scmp.eq.s32.totalorder %s23, 1
      %p109 = por %p107, %p108
      %p110 = scmp.ne.s32.totalorder %s99, %s100
      %p111 = scmp.eq.s32.totalorder %s23, 0
      %p112 = por %p110, %p111
      %p113 = scmp.ne.s32.totalorder %s99, %s100
      %p114 = scmp.eq.s32.totalorder %s24, 1
      %p115 = por %p113, %p114
      %p117 = scmp.ne.s32.totalorder %s100, %s116
      %p118 = scmp.eq.s32.totalorder %s24, 0
      %p119 = por %p117, %p118
      %s120 = ssub.s32 %s18, %s25
      %p121 = scmp.eq.s32.totalorder %s120, 0
      %s123 = sadd.s32 %s122, 1
      %s124 = scalar_select %p121, %s122, %s123
      %p127 = pneg %p121
      %p128 = scmp.eq.s32.totalorder %s18, 1
      %p129 = por %p127, %p128
      %p130 = scmp.ne.s32.totalorder %s122, %s125
      %p131 = scmp.eq.s32.totalorder %s18, 0
      %p132 = por %p130, %p131
      %p133 = scmp.ne.s32.totalorder %s122, %s125
      %p134 = scmp.eq.s32.totalorder %s23, 1
      %p135 = por %p133, %p134
      %p136 = scmp.ne.s32.totalorder %s125, %s126
      %p137 = scmp.eq.s32.totalorder %s23, 0
      %p138 = por %p136, %p137
      %p139 = scmp.ne.s32.totalorder %s125, %s126
      %p140 = scmp.eq.s32.totalorder %s24, 1
      %p141 = por %p139, %p140
      %p143 = scmp.ne.s32.totalorder %s126, %s142
      %p144 = scmp.eq.s32.totalorder %s24, 0
      %p145 = por %p143, %p144
      %s146 = ssub.s32 %s18, %s25
      %p147 = scmp.eq.s32.totalorder %s146, 0
      %s149 = sadd.s32 %s148, 1
      %s150 = scalar_select %p147, %s148, %s149
      %p153 = pneg %p147
      %p154 = scmp.eq.s32.totalorder %s18, 1
      %p155 = por %p153, %p154
      %p156 = scmp.ne.s32.totalorder %s148, %s151
      %p157 = scmp.eq.s32.totalorder %s18, 0
      %p158 = por %p156, %p157
      %p159 = scmp.ne.s32.totalorder %s148, %s151
      %p160 = scmp.eq.s32.totalorder %s23, 1
      %p161 = por %p159, %p160
      %p162 = scmp.ne.s32.totalorder %s151, %s152
      %p163 = scmp.eq.s32.totalorder %s23, 0
      %p164 = por %p162, %p163
      %p165 = scmp.ne.s32.totalorder %s151, %s152
      %p166 = scmp.eq.s32.totalorder %s24, 1
      %p167 = por %p165, %p166
      %p169 = scmp.ne.s32.totalorder %s152, %s168
      %p170 = scmp.eq.s32.totalorder %s24, 0
      %p171 = por %p169, %p170
      %p172 = scmp.le.s32.totalorder 1, %s18
      %p173 = scmp.lt.s32.totalorder %s18, 3
      %p174 = pnand %p172, %p173
      %p175 = pneg %p174
      // Predicated region
      $region9: #{tpu_custom_call.1} parent=5 // pred_check
        _
      $region10: #{tpu_custom_call.1} parent=5 // pred_check_branch
        %177 = sbr.rel (%p174) target = $region12
      $region11: #{tpu_custom_call.1} parent=5 // pred_region
        %s178 = ssub.s32 %s18, 1
        // Predicated region
        $region13: #{tpu_custom_call.1} parent=11 // pred_check
          %p179 = pneg %p39
        $region14: #{tpu_custom_call.1} parent=11 // pred_check_branch
          %181 = sbr.rel (%p179) target = $region16
        $region15: #{tpu_custom_call.1} parent=11 // pred_region
          _
        $region16: #{tpu_custom_call.1} parent=11 // pred_fallthru
          _
        // Predicated region
        $region17: #{tpu_custom_call.1} parent=11 // pred_check
          %p182 = pneg %p60
        $region18: #{tpu_custom_call.1} parent=11 // pred_check_branch
          %184 = sbr.rel (%p182) target = $region20
        $region19: #{tpu_custom_call.1} parent=11 // pred_region
          _
        $region20: #{tpu_custom_call.1} parent=11 // pred_fallthru
          _
      $region12: #{tpu_custom_call.1} parent=5 // pred_fallthru
        _
      %p185 = scmp.lt.s32.totalorder %s18, 2
      // Predicated region
      $region21: #{tpu_custom_call.1} parent=5 // pred_check
        %p186 = pneg %p185
      $region22: #{tpu_custom_call.1} parent=5 // pred_check_branch
        %188 = sbr.rel (%p186) target = $region24
      $region23: #{tpu_custom_call.1} parent=5 // pred_region
        // Predicated region
        $region25: #{tpu_custom_call.1} parent=23 // pred_check
          %p189 = pneg %p80
        $region26: #{tpu_custom_call.1} parent=23 // pred_check_branch
          %191 = sbr.rel (%p189) target = $region28
        $region27: #{tpu_custom_call.1} parent=23 // pred_region
          %s192 = smul.u32 2, %s18
          %p193 = scmp.lt.s32.totalorder %s192, 3
          %s194 = scalar_select %p193, %s192, 3
          %s195 = smul.addr %s194, 4
          %s196 = smul.addr %s195, 8
          %s197 = scalar_lea.vmem %s2, %s196
          %s198 = smul.u32 2, %s18
        $region28: #{tpu_custom_call.1} parent=23 // pred_fallthru
          _
        // Predicated region
        $region29: #{tpu_custom_call.1} parent=23 // pred_check
          %p199 = pneg %p106
        $region30: #{tpu_custom_call.1} parent=23 // pred_check_branch
          %201 = sbr.rel (%p199) target = $region32
        $region31: #{tpu_custom_call.1} parent=23 // pred_region
          %s202 = smul.u32 2, %s18
          %p203 = scmp.lt.s32.totalorder %s202, 3
          %s204 = scalar_select %p203, %s202, 3
          %s205 = smul.addr %s204, 4
          %s206 = smul.addr %s205, 8
          %s207 = scalar_lea.vmem %s3, %s206
          %s208 = smul.u32 2, %s18
        $region32: #{tpu_custom_call.1} parent=23 // pred_fallthru
          _
      $region24: #{tpu_custom_call.1} parent=5 // pred_fallthru
        _
      %p209 = scmp.le.s32.totalorder 1, %s18
      %p210 = scmp.lt.s32.totalorder %s18, 3
      %p211 = pnand %p209, %p210
      %p212 = pneg %p211
      // Predicated region
      $region33: #{tpu_custom_call.1} parent=5 // pred_check
        _
      $region34: #{tpu_custom_call.1} parent=5 // pred_check_branch
        %214 = sbr.rel (%p211) target = $region36
      $region35: #{tpu_custom_call.1} parent=5 // pred_region
        %s215 = ssub.s32 %s18, 1
        %p216 = pneg %p39
        %p217 = pneg %p36
        %p218 = pneg %p60
        %p219 = pneg %p57
        %s220 = smul.u32 2, %s23
        %p221 = scmp.lt.s32.totalorder %s220, 3
        %s222 = scalar_select %p221, %s220, 3
        %s223 = smul.addr %s222, 4
        %s224 = smul.addr %s223, 8
        %s225 = scalar_lea.vmem %s2, %s224
        %p226 = pneg %p86
        %p227 = pneg %p83
        %s228 = smul.u32 2, %s23
        %p229 = scmp.lt.s32.totalorder %s228, 3
        %s230 = scalar_select %p229, %s228, 3
        %s231 = smul.addr %s230, 4
        %s232 = smul.addr %s231, 8
        %s233 = scalar_lea.vmem %s3, %s232
        %p234 = pneg %p112
        %p235 = pneg %p109
        %p236 = pneg %p138
        %p237 = pneg %p135
        %s238 = sand.u32 %s125, 1
        %s239 = scalar_lea.sflag [#allocation3], %s238
        %s240 = sand.u32 %s125, 1
        %s241 = smul.addr %s240, 64
        %s242 = scalar_lea.vmem [#allocation2], %s241
        %p243 = pneg %p164
        %p244 = pneg %p161
        %s245 = sand.u32 %s151, 1
        %s246 = scalar_lea.sflag [#allocation5], %s245
        %s247 = sand.u32 %s151, 1
        %s248 = smul.addr %s247, 64
        %s249 = scalar_lea.vmem [#allocation4], %s248
        %s250 = smul.u32 2, %s23
        %p251 = scmp.lt.s32.totalorder %s250, 3
        %s252 = scalar_select %p251, %s250, 3
        %s253 = smul.addr %s252, 4
        %s254 = smul.addr %s253, 8
        %s255 = scalar_lea.vmem %s2, %s254
        %s256 = smul.u32 2, %s23
        %s257 = smul.u32 2, %s23
        %p258 = scmp.lt.s32.totalorder %s257, 3
        %s259 = scalar_select %p258, %s257, 3
        %s260 = smul.addr %s259, 4
        %s261 = smul.addr %s260, 8
        %s262 = scalar_lea.vmem %s3, %s261
        %s263 = smul.u32 2, %s23
        %s264 = smul.u32 2, %s23
        %s265 = smul.u32 2, %s23
        %v266 = vld [vmem:[%s255] sm:$0xff]
        %v267 = vld [vmem:[%s255 + $0x8] sm:$0xff]
        %v268 = vld [vmem:[%s255 + $0x10] sm:$0xff]
        %v269 = vld [vmem:[%s255 + $0x18] sm:$0xff]
        %v270 = vld [vmem:[%s255 + $0x20] sm:$0xff]
        %v271 = vld [vmem:[%s255 + $0x28] sm:$0xff]
        %v272 = vld [vmem:[%s255 + $0x30] sm:$0xff]
        %v273 = vld [vmem:[%s255 + $0x38] sm:$0xff]
        %v274 = vld [vmem:[%s262] sm:$0xff]
        %v275 = vld [vmem:[%s262 + $0x8] sm:$0xff]
        %v276 = vld [vmem:[%s262 + $0x10] sm:$0xff]
        %v277 = vld [vmem:[%s262 + $0x18] sm:$0xff]
        %v278 = vld [vmem:[%s262 + $0x20] sm:$0xff]
        %v279 = vld [vmem:[%s262 + $0x28] sm:$0xff]
        %v280 = vld [vmem:[%s262 + $0x30] sm:$0xff]
        %v281 = vld [vmem:[%s262 + $0x38] sm:$0xff]
        %v282 = vmul.f32 %v266, %v266
        %v283 = vmul.f32 %v267, %v267
        %v284 = vmul.f32 %v268, %v268
        %v285 = vmul.f32 %v269, %v269
        %v286 = vmul.f32 %v270, %v270
        %v287 = vmul.f32 %v271, %v271
        %v288 = vmul.f32 %v272, %v272
        %v289 = vmul.f32 %v273, %v273
        %v290 = vmul.f32 %v274, %v274
        %v291 = vmul.f32 %v275, %v275
        %v292 = vmul.f32 %v276, %v276
        %v293 = vmul.f32 %v277, %v277
        %v294 = vmul.f32 %v278, %v278
        %v295 = vmul.f32 %v279, %v279
        %v296 = vmul.f32 %v280, %v280
        %v297 = vmul.f32 %v281, %v281
        %v298 = vadd.f32 %v282, %v290
        %v299 = vadd.f32 %v283, %v291
        %v300 = vadd.f32 %v284, %v292
        %v301 = vadd.f32 %v285, %v293
        %v302 = vadd.f32 %v286, %v294
        %v303 = vadd.f32 %v287, %v295
        %v304 = vadd.f32 %v288, %v296
        %v305 = vadd.f32 %v289, %v297
        %v306 = vadd.f32 %v298, %v299
        %v307 = vadd.f32 %v306, %v300
        %v308 = vadd.f32 %v307, %v301
        %309 = vadd.xlane.f32.xlu0 %v308
        %v310 = vpop.xlane.xlu0 %309
        %v311 = vadd.f32 %v302, %v303
        %v312 = vadd.f32 %v311, %v304
        %v313 = vadd.f32 %v312, %v305
        %314 = vadd.xlane.f32.xlu0 %v313
        %v315 = vpop.xlane.xlu0 %314
        %v316 = vrcp.pop 512.0
        %v317 = vmul.f32 %v310, %v316
        %v318 = vmul.f32 %v315, %v316
        %v319 = vrsqrt.pop %v317
        %v320 = vmul.f32 %v317, %v319
        %vm321 = vcmp.eq.f32.partialorder %v317, inf
        %v322 = vsel %vm321, %v317, %v320
        %vm323 = vcmp.eq.f32.partialorder %v317, 0.0
        %v324 = vand.u32 %v317, 2147483648
        %v325 = vsel %vm323, %v324, %v322
        %v326 = vrsqrt.pop %v318
        %v327 = vmul.f32 %v318, %v326
        %vm328 = vcmp.eq.f32.partialorder %v318, inf
        %v329 = vsel %vm328, %v318, %v327
        %vm330 = vcmp.eq.f32.partialorder %v318, 0.0
        %v331 = vand.u32 %v318, 2147483648
        %v332 = vsel %vm330, %v331, %v329
        %v333 = vmul.f32 %v325, 1.5
        %v334 = vmul.f32 %v332, 1.5
        %v335 = vmax.f32 %v298, 1e-12
        %v336 = vmax.f32 %v299, 1e-12
        %v337 = vmax.f32 %v300, 1e-12
        %v338 = vmax.f32 %v301, 1e-12
        %v339 = vmax.f32 %v302, 1e-12
        %v340 = vmax.f32 %v303, 1e-12
        %v341 = vmax.f32 %v304, 1e-12
        %v342 = vmax.f32 %v305, 1e-12
        %v343 = vrsqrt.pop %v335
        %v344 = vrsqrt.pop %v336
        %v345 = vrsqrt.pop %v337
        %v346 = vrsqrt.pop %v338
        %v347 = vrsqrt.pop %v339
        %v348 = vrsqrt.pop %v340
        %v349 = vrsqrt.pop %v341
        %v350 = vrsqrt.pop %v342
        %v351 = vmul.f32 %v333, %v343
        %v352 = vmul.f32 %v333, %v344
        %v353 = vmul.f32 %v333, %v345
        %v354 = vmul.f32 %v333, %v346
        %v355 = vmul.f32 %v334, %v347
        %v356 = vmul.f32 %v334, %v348
        %v357 = vmul.f32 %v334, %v349
        %v358 = vmul.f32 %v334, %v350
        %v359 = vmin.f32 %v351, 1.0
        %v360 = vmin.f32 %v352, 1.0
        %v361 = vmin.f32 %v353, 1.0
        %v362 = vmin.f32 %v354, 1.0
        %v363 = vmin.f32 %v355, 1.0
        %v364 = vmin.f32 %v356, 1.0
        %v365 = vmin.f32 %v357, 1.0
        %v366 = vmin.f32 %v358, 1.0
        %v367 = vsub.f32 %v359, 1.0
        %v368 = vsub.f32 %v360, 1.0
        %v369 = vsub.f32 %v361, 1.0
        %v370 = vsub.f32 %v362, 1.0
        %v371 = vsub.f32 %v363, 1.0
        %v372 = vsub.f32 %v364, 1.0
        %v373 = vsub.f32 %v365, 1.0
        %v374 = vsub.f32 %v366, 1.0
        %v375 = vmul.f32 %v367, %v367
        %v376 = vmul.f32 %v368, %v368
        %v377 = vmul.f32 %v369, %v369
        %v378 = vmul.f32 %v370, %v370
        %v379 = vmul.f32 %v371, %v371
        %v380 = vmul.f32 %v372, %v372
        %v381 = vmul.f32 %v373, %v373
        %v382 = vmul.f32 %v374, %v374
        %v383 = vmul.f32 %v298, %v375
        %v384 = vmul.f32 %v299, %v376
        %v385 = vmul.f32 %v300, %v377
        %v386 = vmul.f32 %v301, %v378
        %v387 = vmul.f32 %v302, %v379
        %v388 = vmul.f32 %v303, %v380
        %v389 = vmul.f32 %v304, %v381
        %v390 = vmul.f32 %v305, %v382
        %v391 = vmul.f32 %v317, 0.05
        %v392 = vmul.f32 %v318, 0.05
        %v393 = vld [vmem:[%s0] sm:$0xff]
        %v394 = vld [vmem:[%s0 + $0x8] sm:$0xff]
        %v395 = vld [vmem:[%s0 + $0x10] sm:$0xff]
        %v396 = vld [vmem:[%s0 + $0x18] sm:$0xff]
        %v397 = vld [vmem:[%s0 + $0x20] sm:$0xff]
        %v398 = vld [vmem:[%s0 + $0x28] sm:$0xff]
        %v399 = vld [vmem:[%s0 + $0x30] sm:$0xff]
        %v400 = vld [vmem:[%s0 + $0x38] sm:$0xff]
        %v401 = vld [vmem:[%s0 + $0x40] sm:$0xff]
        %v402 = vld [vmem:[%s0 + $0x48] sm:$0xff]
        %v403 = vld [vmem:[%s0 + $0x50] sm:$0xff]
        %v404 = vld [vmem:[%s0 + $0x58] sm:$0xff]
        %v405 = vld [vmem:[%s0 + $0x60] sm:$0xff]
        %v406 = vld [vmem:[%s0 + $0x68] sm:$0xff]
        %v407 = vld [vmem:[%s0 + $0x70] sm:$0xff]
        %v408 = vld [vmem:[%s0 + $0x78] sm:$0xff]
        %v409 = vld [vmem:[%s0 + $0x80] sm:$0xff]
        %v410 = vld [vmem:[%s0 + $0x88] sm:$0xff]
        %v411 = vld [vmem:[%s0 + $0x90] sm:$0xff]
        %v412 = vld [vmem:[%s0 + $0x98] sm:$0xff]
        %v413 = vld [vmem:[%s0 + $0xa0] sm:$0xff]
        %v414 = vld [vmem:[%s0 + $0xa8] sm:$0xff]
        %v415 = vld [vmem:[%s0 + $0xb0] sm:$0xff]
        %v416 = vld [vmem:[%s0 + $0xb8] sm:$0xff]
        %v417 = vld [vmem:[%s0 + $0xc0] sm:$0xff]
        %v418 = vld [vmem:[%s0 + $0xc8] sm:$0xff]
        %v419 = vld [vmem:[%s0 + $0xd0] sm:$0xff]
        %v420 = vld [vmem:[%s0 + $0xd8] sm:$0xff]
        %v421 = vld [vmem:[%s0 + $0xe0] sm:$0xff]
        %v422 = vld [vmem:[%s0 + $0xe8] sm:$0xff]
        %v423 = vld [vmem:[%s0 + $0xf0] sm:$0xff]
        %v424 = vld [vmem:[%s0 + $0xf8] sm:$0xff]
        %v425 = vld [vmem:[%s0 + $0x100] sm:$0xff]
        %v426 = vld [vmem:[%s0 + $0x108] sm:$0xff]
        %v427 = vld [vmem:[%s0 + $0x110] sm:$0xff]
        %v428 = vld [vmem:[%s0 + $0x118] sm:$0xff]
        %v429 = vld [vmem:[%s0 + $0x120] sm:$0xff]
        %v430 = vld [vmem:[%s0 + $0x128] sm:$0xff]
        %v431 = vld [vmem:[%s0 + $0x130] sm:$0xff]
        %v432 = vld [vmem:[%s0 + $0x138] sm:$0xff]
        %v433 = vld [vmem:[%s0 + $0x140] sm:$0xff]
        %v434 = vld [vmem:[%s0 + $0x148] sm:$0xff]
        %v435 = vld [vmem:[%s0 + $0x150] sm:$0xff]
        %v436 = vld [vmem:[%s0 + $0x158] sm:$0xff]
        %v437 = vld [vmem:[%s0 + $0x160] sm:$0xff]
        %v438 = vld [vmem:[%s0 + $0x168] sm:$0xff]
        %v439 = vld [vmem:[%s0 + $0x170] sm:$0xff]
        %v440 = vld [vmem:[%s0 + $0x178] sm:$0xff]
        %v441 = vld [vmem:[%s0 + $0x180] sm:$0xff]
        %v442 = vld [vmem:[%s0 + $0x188] sm:$0xff]
        %v443 = vld [vmem:[%s0 + $0x190] sm:$0xff]
        %v444 = vld [vmem:[%s0 + $0x198] sm:$0xff]
        %v445 = vld [vmem:[%s0 + $0x1a0] sm:$0xff]
        %v446 = vld [vmem:[%s0 + $0x1a8] sm:$0xff]
        %v447 = vld [vmem:[%s0 + $0x1b0] sm:$0xff]
        %v448 = vld [vmem:[%s0 + $0x1b8] sm:$0xff]
        %v449 = vld [vmem:[%s0 + $0x1c0] sm:$0xff]
        %v450 = vld [vmem:[%s0 + $0x1c8] sm:$0xff]
        %v451 = vld [vmem:[%s0 + $0x1d0] sm:$0xff]
        %v452 = vld [vmem:[%s0 + $0x1d8] sm:$0xff]
        %v453 = vld [vmem:[%s0 + $0x1e0] sm:$0xff]
        %v454 = vld [vmem:[%s0 + $0x1e8] sm:$0xff]
        %v455 = vld [vmem:[%s0 + $0x1f0] sm:$0xff]
        %v456 = vld [vmem:[%s0 + $0x1f8] sm:$0xff]
        %457 = vmatprep.subr.mxu0 0.0
        %v458 = vand.u32 %v408, 4294901760
        %459 = vmatpush1.msra.mxu0 %v458
        %460 = vmatprep.subr.mxu0 0.0
        %v461 = vand.u32 %v407, 4294901760
        %462 = vmatpush1.msra.mxu0 %v461
        %463 = vmatprep.subr.mxu0 0.0
        %v464 = vand.u32 %v406, 4294901760
        %465 = vmatpush1.msra.mxu0 %v464
        %466 = vmatprep.subr.mxu0 0.0
        %v467 = vand.u32 %v405, 4294901760
        %468 = vmatpush1.msra.mxu0 %v467
        %469 = vmatprep.subr.mxu0 0.0
        %v470 = vand.u32 %v404, 4294901760
        %471 = vmatpush1.msra.mxu0 %v470
        %472 = vmatprep.subr.mxu0 0.0
        %v473 = vand.u32 %v403, 4294901760
        %474 = vmatpush1.msra.mxu0 %v473
        %475 = vmatprep.subr.mxu0 0.0
        %v476 = vand.u32 %v402, 4294901760
        %477 = vmatpush1.msra.mxu0 %v476
        %478 = vmatprep.subr.mxu0 0.0
        %v479 = vand.u32 %v401, 4294901760
        %480 = vmatpush1.msra.mxu0 %v479
        %481 = vmatprep.subr.mxu0 0.0
        %v482 = vand.u32 %v400, 4294901760
        %483 = vmatpush1.msra.mxu0 %v482
        %484 = vmatprep.subr.mxu0 0.0
        %v485 = vand.u32 %v399, 4294901760
        %486 = vmatpush1.msra.mxu0 %v485
        %487 = vmatprep.subr.mxu0 0.0
        %v488 = vand.u32 %v398, 4294901760
        %489 = vmatpush1.msra.mxu0 %v488
        %490 = vmatprep.subr.mxu0 0.0
        %v491 = vand.u32 %v397, 4294901760
        %492 = vmatpush1.msra.mxu0 %v491
        %493 = vmatprep.subr.mxu0 0.0
        %v494 = vand.u32 %v396, 4294901760
        %495 = vmatpush1.msra.mxu0 %v494
        %496 = vmatprep.subr.mxu0 0.0
        %v497 = vand.u32 %v395, 4294901760
        %498 = vmatpush1.msra.mxu0 %v497
        %499 = vmatprep.subr.mxu0 0.0
        %v500 = vand.u32 %v394, 4294901760
        %501 = vmatpush1.msra.mxu0 %v500
        %502 = vmatprep.subr.mxu0 0.0
        %v503 = vand.u32 %v393, 4294901760
        %504 = vmatpush1.msra.mxu0 %v503
        %505 = vmatprep.subr.mxu0 0.0
        %v506 = vand.u32 %v424, 4294901760
        %507 = vmatpush2.msra.mxu0 %v506
        %508 = vmatprep.subr.mxu0 0.0
        %v509 = vand.u32 %v423, 4294901760
        %510 = vmatpush2.msra.mxu0 %v509
        %511 = vmatprep.subr.mxu0 0.0
        %v512 = vand.u32 %v422, 4294901760
        %513 = vmatpush2.msra.mxu0 %v512
        %514 = vmatprep.subr.mxu0 0.0
        %v515 = vand.u32 %v421, 4294901760
        %516 = vmatpush2.msra.mxu0 %v515
        %517 = vmatprep.subr.mxu0 0.0
        %v518 = vand.u32 %v420, 4294901760
        %519 = vmatpush2.msra.mxu0 %v518
        %520 = vmatprep.subr.mxu0 0.0
        %v521 = vand.u32 %v419, 4294901760
        %522 = vmatpush2.msra.mxu0 %v521
        %523 = vmatprep.subr.mxu0 0.0
        %v524 = vand.u32 %v418, 4294901760
        %525 = vmatpush2.msra.mxu0 %v524
        %526 = vmatprep.subr.mxu0 0.0
        %v527 = vand.u32 %v417, 4294901760
        %528 = vmatpush2.msra.mxu0 %v527
        %529 = vmatprep.subr.mxu0 0.0
        %v530 = vand.u32 %v416, 4294901760
        %531 = vmatpush2.msra.mxu0 %v530
        %532 = vmatprep.subr.mxu0 0.0
        %v533 = vand.u32 %v415, 4294901760
        %534 = vmatpush2.msra.mxu0 %v533
        %535 = vmatprep.subr.mxu0 0.0
        %v536 = vand.u32 %v414, 4294901760
        %537 = vmatpush2.msra.mxu0 %v536
        %538 = vmatprep.subr.mxu0 0.0
        %v539 = vand.u32 %v413, 4294901760
        %540 = vmatpush2.msra.mxu0 %v539
        %541 = vmatprep.subr.mxu0 0.0
        %v542 = vand.u32 %v412, 4294901760
        %543 = vmatpush2.msra.mxu0 %v542
        %544 = vmatprep.subr.mxu0 0.0
        %v545 = vand.u32 %v411, 4294901760
        %546 = vmatpush2.msra.mxu0 %v545
        %547 = vmatprep.subr.mxu0 0.0
        %v548 = vand.u32 %v410, 4294901760
        %549 = vmatpush2.msra.mxu0 %v548
        %550 = vmatprep.subr.mxu0 0.0
        %v551 = vand.u32 %v409, 4294901760
        %552 = vmatpush2.msra.mxu0 %v551
        %v553 = vand.u32 %v384, 4294901760
        %v554 = vsub.f32 %v384, %v553
        %v555 = vand.u32 %v554, 4294901760
        %v556 = vsub.f32 %v554, %v555
        %v557 = vand.u32 %v556, 4294901760
        %558 = vmatprep.mubr.f32.mxu0 %v557
        %v559 = vand.u32 %v383, 4294901760
        %v560 = vsub.f32 %v383, %v559
        %v561 = vand.u32 %v560, 4294901760
        %v562 = vsub.f32 %v560, %v561
        %v563 = vand.u32 %v562, 4294901760
        %564 = vmatmul.mubr.f32.gmra.mxu0 %v563
        %v565 = vpop.f32.mrf.mxu0
        %v566 = vadd.f32 0.0, %v565
        %v567 = vpop.f32.mrf.mxu0
        %v568 = vand.u32 %v388, 4294901760
        %v569 = vsub.f32 %v388, %v568
        %v570 = vand.u32 %v569, 4294901760
        %v571 = vsub.f32 %v569, %v570
        %v572 = vand.u32 %v571, 4294901760
        %573 = vmatprep.mubr.f32.mxu0 %v572
        %v574 = vand.u32 %v387, 4294901760
        %v575 = vsub.f32 %v387, %v574
        %v576 = vand.u32 %v575, 4294901760
        %v577 = vsub.f32 %v575, %v576
        %v578 = vand.u32 %v577, 4294901760
        %579 = vmatmul.mubr.f32.gmra.mxu0 %v578
        %v580 = vpop.f32.mrf.mxu0
        %v581 = vadd.f32 0.0, %v580
        %v582 = vpop.f32.mrf.mxu0
        %583 = vdwg.mxu0
        %584 = vmatprep.subr.mxu0 0.0
        %v585 = vand.u32 %v408, 4294901760
        %v586 = vsub.f32 %v408, %v585
        %v587 = vand.u32 %v586, 4294901760
        %v588 = vsub.f32 %v586, %v587
        %v589 = vand.u32 %v588, 4294901760
        %590 = vmatpush1.msra.mxu0 %v589
        %591 = vmatprep.subr.mxu0 0.0
        %v592 = vand.u32 %v407, 4294901760
        %v593 = vsub.f32 %v407, %v592
        %v594 = vand.u32 %v593, 4294901760
        %v595 = vsub.f32 %v593, %v594
        %v596 = vand.u32 %v595, 4294901760
        %597 = vmatpush1.msra.mxu0 %v596
        %598 = vmatprep.subr.mxu0 0.0
        %v599 = vand.u32 %v406, 4294901760
        %v600 = vsub.f32 %v406, %v599
        %v601 = vand.u32 %v600, 4294901760
        %v602 = vsub.f32 %v600, %v601
        %v603 = vand.u32 %v602, 4294901760
        %604 = vmatpush1.msra.mxu0 %v603
        %605 = vmatprep.subr.mxu0 0.0
        %v606 = vand.u32 %v405, 4294901760
        %v607 = vsub.f32 %v405, %v606
        %v608 = vand.u32 %v607, 4294901760
        %v609 = vsub.f32 %v607, %v608
        %v610 = vand.u32 %v609, 4294901760
        %611 = vmatpush1.msra.mxu0 %v610
        %612 = vmatprep.subr.mxu0 0.0
        %v613 = vand.u32 %v404, 4294901760
        %v614 = vsub.f32 %v404, %v613
        %v615 = vand.u32 %v614, 4294901760
        %v616 = vsub.f32 %v614, %v615
        %v617 = vand.u32 %v616, 4294901760
        %618 = vmatpush1.msra.mxu0 %v617
        %619 = vmatprep.subr.mxu0 0.0
        %v620 = vand.u32 %v403, 4294901760
        %v621 = vsub.f32 %v403, %v620
        %v622 = vand.u32 %v621, 4294901760
        %v623 = vsub.f32 %v621, %v622
        %v624 = vand.u32 %v623, 4294901760
        %625 = vmatpush1.msra.mxu0 %v624
        %626 = vmatprep.subr.mxu0 0.0
        %v627 = vand.u32 %v402, 4294901760
        %v628 = vsub.f32 %v402, %v627
        %v629 = vand.u32 %v628, 4294901760
        %v630 = vsub.f32 %v628, %v629
        %v631 = vand.u32 %v630, 4294901760
        %632 = vmatpush1.msra.mxu0 %v631
        %633 = vmatprep.subr.mxu0 0.0
        %v634 = vand.u32 %v401, 4294901760
        %v635 = vsub.f32 %v401, %v634
        %v636 = vand.u32 %v635, 4294901760
        %v637 = vsub.f32 %v635, %v636
        %v638 = vand.u32 %v637, 4294901760
        %639 = vmatpush1.msra.mxu0 %v638
        %640 = vmatprep.subr.mxu0 0.0
        %v641 = vand.u32 %v400, 4294901760
        %v642 = vsub.f32 %v400, %v641
        %v643 = vand.u32 %v642, 4294901760
        %v644 = vsub.f32 %v642, %v643
        %v645 = vand.u32 %v644, 4294901760
        %646 = vmatpush1.msra.mxu0 %v645
        %647 = vmatprep.subr.mxu0 0.0
        %v648 = vand.u32 %v399, 4294901760
        %v649 = vsub.f32 %v399, %v648
        %v650 = vand.u32 %v649, 4294901760
        %v651 = vsub.f32 %v649, %v650
        %v652 = vand.u32 %v651, 4294901760
        %653 = vmatpush1.msra.mxu0 %v652
        %654 = vmatprep.subr.mxu0 0.0
        %v655 = vand.u32 %v398, 4294901760
        %v656 = vsub.f32 %v398, %v655
        %v657 = vand.u32 %v656, 4294901760
        %v658 = vsub.f32 %v656, %v657
        %v659 = vand.u32 %v658, 4294901760
        %660 = vmatpush1.msra.mxu0 %v659
        %661 = vmatprep.subr.mxu0 0.0
        %v662 = vand.u32 %v397, 4294901760
        %v663 = vsub.f32 %v397, %v662
        %v664 = vand.u32 %v663, 4294901760
        %v665 = vsub.f32 %v663, %v664
        %v666 = vand.u32 %v665, 4294901760
        %667 = vmatpush1.msra.mxu0 %v666
        %668 = vmatprep.subr.mxu0 0.0
        %v669 = vand.u32 %v396, 4294901760
        %v670 = vsub.f32 %v396, %v669
        %v671 = vand.u32 %v670, 4294901760
        %v672 = vsub.f32 %v670, %v671
        %v673 = vand.u32 %v672, 4294901760
        %674 = vmatpush1.msra.mxu0 %v673
        %675 = vmatprep.subr.mxu0 0.0
        %v676 = vand.u32 %v395, 4294901760
        %v677 = vsub.f32 %v395, %v676
        %v678 = vand.u32 %v677, 4294901760
        %v679 = vsub.f32 %v677, %v678
        %v680 = vand.u32 %v679, 4294901760
        %681 = vmatpush1.msra.mxu0 %v680
        %682 = vmatprep.subr.mxu0 0.0
        %v683 = vand.u32 %v394, 4294901760
        %v684 = vsub.f32 %v394, %v683
        %v685 = vand.u32 %v684, 4294901760
        %v686 = vsub.f32 %v684, %v685
        %v687 = vand.u32 %v686, 4294901760
        %688 = vmatpush1.msra.mxu0 %v687
        %689 = vmatprep.subr.mxu0 0.0
        %v690 = vand.u32 %v393, 4294901760
        %v691 = vsub.f32 %v393, %v690
        %v692 = vand.u32 %v691, 4294901760
        %v693 = vsub.f32 %v691, %v692
        %v694 = vand.u32 %v693, 4294901760
        %695 = vmatpush1.msra.mxu0 %v694
        %696 = vmatprep.subr.mxu0 0.0
        %v697 = vand.u32 %v424, 4294901760
        %v698 = vsub.f32 %v424, %v697
        %v699 = vand.u32 %v698, 4294901760
        %v700 = vsub.f32 %v698, %v699
        %v701 = vand.u32 %v700, 4294901760
        %702 = vmatpush2.msra.mxu0 %v701
        %703 = vmatprep.subr.mxu0 0.0
        %v704 = vand.u32 %v423, 4294901760
        %v705 = vsub.f32 %v423, %v704
        %v706 = vand.u32 %v705, 4294901760
        %v707 = vsub.f32 %v705, %v706
        %v708 = vand.u32 %v707, 4294901760
        %709 = vmatpush2.msra.mxu0 %v708
        %710 = vmatprep.subr.mxu0 0.0
        %v711 = vand.u32 %v422, 4294901760
        %v712 = vsub.f32 %v422, %v711
        %v713 = vand.u32 %v712, 4294901760
        %v714 = vsub.f32 %v712, %v713
        %v715 = vand.u32 %v714, 4294901760
        %716 = vmatpush2.msra.mxu0 %v715
        %717 = vmatprep.subr.mxu0 0.0
        %v718 = vand.u32 %v421, 4294901760
        %v719 = vsub.f32 %v421, %v718
        %v720 = vand.u32 %v719, 4294901760
        %v721 = vsub.f32 %v719, %v720
        %v722 = vand.u32 %v721, 4294901760
        %723 = vmatpush2.msra.mxu0 %v722
        %724 = vmatprep.subr.mxu0 0.0
        %v725 = vand.u32 %v420, 4294901760
        %v726 = vsub.f32 %v420, %v725
        %v727 = vand.u32 %v726, 4294901760
        %v728 = vsub.f32 %v726, %v727
        %v729 = vand.u32 %v728, 4294901760
        %730 = vmatpush2.msra.mxu0 %v729
        %731 = vmatprep.subr.mxu0 0.0
        %v732 = vand.u32 %v419, 4294901760
        %v733 = vsub.f32 %v419, %v732
        %v734 = vand.u32 %v733, 4294901760
        %v735 = vsub.f32 %v733, %v734
        %v736 = vand.u32 %v735, 4294901760
        %737 = vmatpush2.msra.mxu0 %v736
        %738 = vmatprep.subr.mxu0 0.0
        %v739 = vand.u32 %v418, 4294901760
        %v740 = vsub.f32 %v418, %v739
        %v741 = vand.u32 %v740, 4294901760
        %v742 = vsub.f32 %v740, %v741
        %v743 = vand.u32 %v742, 4294901760
        %744 = vmatpush2.msra.mxu0 %v743
        %745 = vmatprep.subr.mxu0 0.0
        %v746 = vand.u32 %v417, 4294901760
        %v747 = vsub.f32 %v417, %v746
        %v748 = vand.u32 %v747, 4294901760
        %v749 = vsub.f32 %v747, %v748
        %v750 = vand.u32 %v749, 4294901760
        %751 = vmatpush2.msra.mxu0 %v750
        %752 = vmatprep.subr.mxu0 0.0
        %v753 = vand.u32 %v416, 4294901760
        %v754 = vsub.f32 %v416, %v753
        %v755 = vand.u32 %v754, 4294901760
        %v756 = vsub.f32 %v754, %v755
        %v757 = vand.u32 %v756, 4294901760
        %758 = vmatpush2.msra.mxu0 %v757
        %759 = vmatprep.subr.mxu0 0.0
        %v760 = vand.u32 %v415, 4294901760
        %v761 = vsub.f32 %v415, %v760
        %v762 = vand.u32 %v761, 4294901760
        %v763 = vsub.f32 %v761, %v762
        %v764 = vand.u32 %v763, 4294901760
        %765 = vmatpush2.msra.mxu0 %v764
        %766 = vmatprep.subr.mxu0 0.0
        %v767 = vand.u32 %v414, 4294901760
        %v768 = vsub.f32 %v414, %v767
        %v769 = vand.u32 %v768, 4294901760
        %v770 = vsub.f32 %v768, %v769
        %v771 = vand.u32 %v770, 4294901760
        %772 = vmatpush2.msra.mxu0 %v771
        %773 = vmatprep.subr.mxu0 0.0
        %v774 = vand.u32 %v413, 4294901760
        %v775 = vsub.f32 %v413, %v774
        %v776 = vand.u32 %v775, 4294901760
        %v777 = vsub.f32 %v775, %v776
        %v778 = vand.u32 %v777, 4294901760
        %779 = vmatpush2.msra.mxu0 %v778
        %780 = vmatprep.subr.mxu0 0.0
        %v781 = vand.u32 %v412, 4294901760
        %v782 = vsub.f32 %v412, %v781
        %v783 = vand.u32 %v782, 4294901760
        %v784 = vsub.f32 %v782, %v783
        %v785 = vand.u32 %v784, 4294901760
        %786 = vmatpush2.msra.mxu0 %v785
        %787 = vmatprep.subr.mxu0 0.0
        %v788 = vand.u32 %v411, 4294901760
        %v789 = vsub.f32 %v411, %v788
        %v790 = vand.u32 %v789, 4294901760
        %v791 = vsub.f32 %v789, %v790
        %v792 = vand.u32 %v791, 4294901760
        %793 = vmatpush2.msra.mxu0 %v792
        %794 = vmatprep.subr.mxu0 0.0
        %v795 = vand.u32 %v410, 4294901760
        %v796 = vsub.f32 %v410, %v795
        %v797 = vand.u32 %v796, 4294901760
        %v798 = vsub.f32 %v796, %v797
        %v799 = vand.u32 %v798, 4294901760
        %800 = vmatpush2.msra.mxu0 %v799
        %801 = vmatprep.subr.mxu0 0.0
        %v802 = vand.u32 %v409, 4294901760
        %v803 = vsub.f32 %v409, %v802
        %v804 = vand.u32 %v803, 4294901760
        %v805 = vsub.f32 %v803, %v804
        %v806 = vand.u32 %v805, 4294901760
        %807 = vmatpush2.msra.mxu0 %v806
        %v808 = vand.u32 %v384, 4294901760
        %809 = vmatprep.mubr.f32.mxu0 %v808
        %v810 = vand.u32 %v383, 4294901760
        %811 = vmatmul.mubr.f32.gmra.mxu0 %v810
        %v812 = vpop.f32.mrf.mxu0
        %v813 = vadd.f32 %v566, %v812
        %v814 = vpop.f32.mrf.mxu0
        %v815 = vand.u32 %v388, 4294901760
        %816 = vmatprep.mubr.f32.mxu0 %v815
        %v817 = vand.u32 %v387, 4294901760
        %818 = vmatmul.mubr.f32.gmra.mxu0 %v817
        %v819 = vpop.f32.mrf.mxu0
        %v820 = vadd.f32 %v581, %v819
        %v821 = vpop.f32.mrf.mxu0
        %822 = vdwg.mxu0
        %823 = vmatprep.subr.mxu0 0.0
        %v824 = vand.u32 %v408, 4294901760
        %v825 = vsub.f32 %v408, %v824
        %826 = vmatpush1.msra.mxu0 %v825
        %827 = vmatprep.subr.mxu0 0.0
        %v828 = vand.u32 %v407, 4294901760
        %v829 = vsub.f32 %v407, %v828
        %830 = vmatpush1.msra.mxu0 %v829
        %831 = vmatprep.subr.mxu0 0.0
        %v832 = vand.u32 %v406, 4294901760
        %v833 = vsub.f32 %v406, %v832
        %834 = vmatpush1.msra.mxu0 %v833
        %835 = vmatprep.subr.mxu0 0.0
        %v836 = vand.u32 %v405, 4294901760
        %v837 = vsub.f32 %v405, %v836
        %838 = vmatpush1.msra.mxu0 %v837
        %839 = vmatprep.subr.mxu0 0.0
        %v840 = vand.u32 %v404, 4294901760
        %v841 = vsub.f32 %v404, %v840
        %842 = vmatpush1.msra.mxu0 %v841
        %843 = vmatprep.subr.mxu0 0.0
        %v844 = vand.u32 %v403, 4294901760
        %v845 = vsub.f32 %v403, %v844
        %846 = vmatpush1.msra.mxu0 %v845
        %847 = vmatprep.subr.mxu0 0.0
        %v848 = vand.u32 %v402, 4294901760
        %v849 = vsub.f32 %v402, %v848
        %850 = vmatpush1.msra.mxu0 %v849
        %851 = vmatprep.subr.mxu0 0.0
        %v852 = vand.u32 %v401, 4294901760
        %v853 = vsub.f32 %v401, %v852
        %854 = vmatpush1.msra.mxu0 %v853
        %855 = vmatprep.subr.mxu0 0.0
        %v856 = vand.u32 %v400, 4294901760
        %v857 = vsub.f32 %v400, %v856
        %858 = vmatpush1.msra.mxu0 %v857
        %859 = vmatprep.subr.mxu0 0.0
        %v860 = vand.u32 %v399, 4294901760
        %v861 = vsub.f32 %v399, %v860
        %862 = vmatpush1.msra.mxu0 %v861
        %863 = vmatprep.subr.mxu0 0.0
        %v864 = vand.u32 %v398, 4294901760
        %v865 = vsub.f32 %v398, %v864
        %866 = vmatpush1.msra.mxu0 %v865
        %867 = vmatprep.subr.mxu0 0.0
        %v868 = vand.u32 %v397, 4294901760
        %v869 = vsub.f32 %v397, %v868
        %870 = vmatpush1.msra.mxu0 %v869
        %871 = vmatprep.subr.mxu0 0.0
        %v872 = vand.u32 %v396, 4294901760
        %v873 = vsub.f32 %v396, %v872
        %874 = vmatpush1.msra.mxu0 %v873
        %875 = vmatprep.subr.mxu0 0.0
        %v876 = vand.u32 %v395, 4294901760
        %v877 = vsub.f32 %v395, %v876
        %878 = vmatpush1.msra.mxu0 %v877
        %879 = vmatprep.subr.mxu0 0.0
        %v880 = vand.u32 %v394, 4294901760
        %v881 = vsub.f32 %v394, %v880
        %882 = vmatpush1.msra.mxu0 %v881
        %883 = vmatprep.subr.mxu0 0.0
        %v884 = vand.u32 %v393, 4294901760
        %v885 = vsub.f32 %v393, %v884
        %886 = vmatpush1.msra.mxu0 %v885
        %887 = vmatprep.subr.mxu0 0.0
        %v888 = vand.u32 %v424, 4294901760
        %v889 = vsub.f32 %v424, %v888
        %890 = vmatpush2.msra.mxu0 %v889
        %891 = vmatprep.subr.mxu0 0.0
        %v892 = vand.u32 %v423, 4294901760
        %v893 = vsub.f32 %v423, %v892
        %894 = vmatpush2.msra.mxu0 %v893
        %895 = vmatprep.subr.mxu0 0.0
        %v896 = vand.u32 %v422, 4294901760
        %v897 = vsub.f32 %v422, %v896
        %898 = vmatpush2.msra.mxu0 %v897
        %899 = vmatprep.subr.mxu0 0.0
        %v900 = vand.u32 %v421, 4294901760
        %v901 = vsub.f32 %v421, %v900
        %902 = vmatpush2.msra.mxu0 %v901
        %903 = vmatprep.subr.mxu0 0.0
        %v904 = vand.u32 %v420, 4294901760
        %v905 = vsub.f32 %v420, %v904
        %906 = vmatpush2.msra.mxu0 %v905
        %907 = vmatprep.subr.mxu0 0.0
        %v908 = vand.u32 %v419, 4294901760
        %v909 = vsub.f32 %v419, %v908
        %910 = vmatpush2.msra.mxu0 %v909
        %911 = vmatprep.subr.mxu0 0.0
        %v912 = vand.u32 %v418, 4294901760
        %v913 = vsub.f32 %v418, %v912
        %914 = vmatpush2.msra.mxu0 %v913
        %915 = vmatprep.subr.mxu0 0.0
        %v916 = vand.u32 %v417, 4294901760
        %v917 = vsub.f32 %v417, %v916
        %918 = vmatpush2.msra.mxu0 %v917
        %919 = vmatprep.subr.mxu0 0.0
        %v920 = vand.u32 %v416, 4294901760
        %v921 = vsub.f32 %v416, %v920
        %922 = vmatpush2.msra.mxu0 %v921
        %923 = vmatprep.subr.mxu0 0.0
        %v924 = vand.u32 %v415, 4294901760
        %v925 = vsub.f32 %v415, %v924
        %926 = vmatpush2.msra.mxu0 %v925
        %927 = vmatprep.subr.mxu0 0.0
        %v928 = vand.u32 %v414, 4294901760
        %v929 = vsub.f32 %v414, %v928
        %930 = vmatpush2.msra.mxu0 %v929
        %931 = vmatprep.subr.mxu0 0.0
        %v932 = vand.u32 %v413, 4294901760
        %v933 = vsub.f32 %v413, %v932
        %934 = vmatpush2.msra.mxu0 %v933
        %935 = vmatprep.subr.mxu0 0.0
        %v936 = vand.u32 %v412, 4294901760
        %v937 = vsub.f32 %v412, %v936
        %938 = vmatpush2.msra.mxu0 %v937
        %939 = vmatprep.subr.mxu0 0.0
        %v940 = vand.u32 %v411, 4294901760
        %v941 = vsub.f32 %v411, %v940
        %942 = vmatpush2.msra.mxu0 %v941
        %943 = vmatprep.subr.mxu0 0.0
        %v944 = vand.u32 %v410, 4294901760
        %v945 = vsub.f32 %v410, %v944
        %946 = vmatpush2.msra.mxu0 %v945
        %947 = vmatprep.subr.mxu0 0.0
        %v948 = vand.u32 %v409, 4294901760
        %v949 = vsub.f32 %v409, %v948
        %950 = vmatpush2.msra.mxu0 %v949
        %v951 = vand.u32 %v384, 4294901760
        %v952 = vsub.f32 %v384, %v951
        %953 = vmatprep.mubr.f32.mxu0 %v952
        %v954 = vand.u32 %v383, 4294901760
        %v955 = vsub.f32 %v383, %v954
        %956 = vmatmul.mubr.f32.gmra.mxu0 %v955
        %v957 = vpop.f32.mrf.mxu0
        %v958 = vadd.f32 %v813, %v957
        %v959 = vpop.f32.mrf.mxu0
        %v960 = vand.u32 %v388, 4294901760
        %v961 = vsub.f32 %v388, %v960
        %962 = vmatprep.mubr.f32.mxu0 %v961
        %v963 = vand.u32 %v387, 4294901760
        %v964 = vsub.f32 %v387, %v963
        %965 = vmatmul.mubr.f32.gmra.mxu0 %v964
        %v966 = vpop.f32.mrf.mxu0
        %v967 = vadd.f32 %v820, %v966
        %v968 = vpop.f32.mrf.mxu0
        %969 = vdwg.mxu0
        %970 = vmatprep.subr.mxu0 0.0
        %v971 = vand.u32 %v408, 4294901760
        %972 = vmatpush1.msra.mxu0 %v971
        %973 = vmatprep.subr.mxu0 0.0
        %v974 = vand.u32 %v407, 4294901760
        %975 = vmatpush1.msra.mxu0 %v974
        %976 = vmatprep.subr.mxu0 0.0
        %v977 = vand.u32 %v406, 4294901760
        %978 = vmatpush1.msra.mxu0 %v977
        %979 = vmatprep.subr.mxu0 0.0
        %v980 = vand.u32 %v405, 4294901760
        %981 = vmatpush1.msra.mxu0 %v980
        %982 = vmatprep.subr.mxu0 0.0
        %v983 = vand.u32 %v404, 4294901760
        %984 = vmatpush1.msra.mxu0 %v983
        %985 = vmatprep.subr.mxu0 0.0
        %v986 = vand.u32 %v403, 4294901760
        %987 = vmatpush1.msra.mxu0 %v986
        %988 = vmatprep.subr.mxu0 0.0
        %v989 = vand.u32 %v402, 4294901760
        %990 = vmatpush1.msra.mxu0 %v989
        %991 = vmatprep.subr.mxu0 0.0
        %v992 = vand.u32 %v401, 4294901760
        %993 = vmatpush1.msra.mxu0 %v992
        %994 = vmatprep.subr.mxu0 0.0
        %v995 = vand.u32 %v400, 4294901760
        %996 = vmatpush1.msra.mxu0 %v995
        %997 = vmatprep.subr.mxu0 0.0
        %v998 = vand.u32 %v399, 4294901760
        %999 = vmatpush1.msra.mxu0 %v998
        %1000 = vmatprep.subr.mxu0 0.0
        %v1001 = vand.u32 %v398, 4294901760
        %1002 = vmatpush1.msra.mxu0 %v1001
        %1003 = vmatprep.subr.mxu0 0.0
        %v1004 = vand.u32 %v397, 4294901760
        %1005 = vmatpush1.msra.mxu0 %v1004
        %1006 = vmatprep.subr.mxu0 0.0
        %v1007 = vand.u32 %v396, 4294901760
        %1008 = vmatpush1.msra.mxu0 %v1007
        %1009 = vmatprep.subr.mxu0 0.0
        %v1010 = vand.u32 %v395, 4294901760
        %1011 = vmatpush1.msra.mxu0 %v1010
        %1012 = vmatprep.subr.mxu0 0.0
        %v1013 = vand.u32 %v394, 4294901760
        %1014 = vmatpush1.msra.mxu0 %v1013
        %1015 = vmatprep.subr.mxu0 0.0
        %v1016 = vand.u32 %v393, 4294901760
        %1017 = vmatpush1.msra.mxu0 %v1016
        %1018 = vmatprep.subr.mxu0 0.0
        %v1019 = vand.u32 %v424, 4294901760
        %1020 = vmatpush2.msra.mxu0 %v1019
        %1021 = vmatprep.subr.mxu0 0.0
        %v1022 = vand.u32 %v423, 4294901760
        %1023 = vmatpush2.msra.mxu0 %v1022
        %1024 = vmatprep.subr.mxu0 0.0
        %v1025 = vand.u32 %v422, 4294901760
        %1026 = vmatpush2.msra.mxu0 %v1025
        %1027 = vmatprep.subr.mxu0 0.0
        %v1028 = vand.u32 %v421, 4294901760
        %1029 = vmatpush2.msra.mxu0 %v1028
        %1030 = vmatprep.subr.mxu0 0.0
        %v1031 = vand.u32 %v420, 4294901760
        %1032 = vmatpush2.msra.mxu0 %v1031
        %1033 = vmatprep.subr.mxu0 0.0
        %v1034 = vand.u32 %v419, 4294901760
        %1035 = vmatpush2.msra.mxu0 %v1034
        %1036 = vmatprep.subr.mxu0 0.0
        %v1037 = vand.u32 %v418, 4294901760
        %1038 = vmatpush2.msra.mxu0 %v1037
        %1039 = vmatprep.subr.mxu0 0.0
        %v1040 = vand.u32 %v417, 4294901760
        %1041 = vmatpush2.msra.mxu0 %v1040
        %1042 = vmatprep.subr.mxu0 0.0
        %v1043 = vand.u32 %v416, 4294901760
        %1044 = vmatpush2.msra.mxu0 %v1043
        %1045 = vmatprep.subr.mxu0 0.0
        %v1046 = vand.u32 %v415, 4294901760
        %1047 = vmatpush2.msra.mxu0 %v1046
        %1048 = vmatprep.subr.mxu0 0.0
        %v1049 = vand.u32 %v414, 4294901760
        %1050 = vmatpush2.msra.mxu0 %v1049
        %1051 = vmatprep.subr.mxu0 0.0
        %v1052 = vand.u32 %v413, 4294901760
        %1053 = vmatpush2.msra.mxu0 %v1052
        %1054 = vmatprep.subr.mxu0 0.0
        %v1055 = vand.u32 %v412, 4294901760
        %1056 = vmatpush2.msra.mxu0 %v1055
        %1057 = vmatprep.subr.mxu0 0.0
        %v1058 = vand.u32 %v411, 4294901760
        %1059 = vmatpush2.msra.mxu0 %v1058
        %1060 = vmatprep.subr.mxu0 0.0
        %v1061 = vand.u32 %v410, 4294901760
        %1062 = vmatpush2.msra.mxu0 %v1061
        %1063 = vmatprep.subr.mxu0 0.0
        %v1064 = vand.u32 %v409, 4294901760
        %1065 = vmatpush2.msra.mxu0 %v1064
        %v1066 = vand.u32 %v384, 4294901760
        %v1067 = vsub.f32 %v384, %v1066
        %v1068 = vand.u32 %v1067, 4294901760
        %1069 = vmatprep.mubr.f32.mxu0 %v1068
        %v1070 = vand.u32 %v383, 4294901760
        %v1071 = vsub.f32 %v383, %v1070
        %v1072 = vand.u32 %v1071, 4294901760
        %1073 = vmatmul.mubr.f32.gmra.mxu0 %v1072
        %v1074 = vpop.f32.mrf.mxu0
        %v1075 = vadd.f32 %v958, %v1074
        %v1076 = vpop.f32.mrf.mxu0
        %v1077 = vand.u32 %v388, 4294901760
        %v1078 = vsub.f32 %v388, %v1077
        %v1079 = vand.u32 %v1078, 4294901760
        %1080 = vmatprep.mubr.f32.mxu0 %v1079
        %v1081 = vand.u32 %v387, 4294901760
        %v1082 = vsub.f32 %v387, %v1081
        %v1083 = vand.u32 %v1082, 4294901760
        %1084 = vmatmul.mubr.f32.gmra.mxu0 %v1083
        %v1085 = vpop.f32.mrf.mxu0
        %v1086 = vadd.f32 %v967, %v1085
        %v1087 = vpop.f32.mrf.mxu0
        %1088 = vdwg.mxu0
        %1089 = vmatprep.subr.mxu0 0.0
        %v1090 = vand.u32 %v408, 4294901760
        %v1091 = vsub.f32 %v408, %v1090
        %v1092 = vand.u32 %v1091, 4294901760
        %1093 = vmatpush1.msra.mxu0 %v1092
        %1094 = vmatprep.subr.mxu0 0.0
        %v1095 = vand.u32 %v407, 4294901760
        %v1096 = vsub.f32 %v407, %v1095
        %v1097 = vand.u32 %v1096, 4294901760
        %1098 = vmatpush1.msra.mxu0 %v1097
        %1099 = vmatprep.subr.mxu0 0.0
        %v1100 = vand.u32 %v406, 4294901760
        %v1101 = vsub.f32 %v406, %v1100
        %v1102 = vand.u32 %v1101, 4294901760
        %1103 = vmatpush1.msra.mxu0 %v1102
        %1104 = vmatprep.subr.mxu0 0.0
        %v1105 = vand.u32 %v405, 4294901760
        %v1106 = vsub.f32 %v405, %v1105
        %v1107 = vand.u32 %v1106, 4294901760
        %1108 = vmatpush1.msra.mxu0 %v1107
        %1109 = vmatprep.subr.mxu0 0.0
        %v1110 = vand.u32 %v404, 4294901760
        %v1111 = vsub.f32 %v404, %v1110
        %v1112 = vand.u32 %v1111, 4294901760
        %1113 = vmatpush1.msra.mxu0 %v1112
        %1114 = vmatprep.subr.mxu0 0.0
        %v1115 = vand.u32 %v403, 4294901760
        %v1116 = vsub.f32 %v403, %v1115
        %v1117 = vand.u32 %v1116, 4294901760
        %1118 = vmatpush1.msra.mxu0 %v1117
        %1119 = vmatprep.subr.mxu0 0.0
        %v1120 = vand.u32 %v402, 4294901760
        %v1121 = vsub.f32 %v402, %v1120
        %v1122 = vand.u32 %v1121, 4294901760
        %1123 = vmatpush1.msra.mxu0 %v1122
        %1124 = vmatprep.subr.mxu0 0.0
        %v1125 = vand.u32 %v401, 4294901760
        %v1126 = vsub.f32 %v401, %v1125
        %v1127 = vand.u32 %v1126, 4294901760
        %1128 = vmatpush1.msra.mxu0 %v1127
        %1129 = vmatprep.subr.mxu0 0.0
        %v1130 = vand.u32 %v400, 4294901760
        %v1131 = vsub.f32 %v400, %v1130
        %v1132 = vand.u32 %v1131, 4294901760
        %1133 = vmatpush1.msra.mxu0 %v1132
        %1134 = vmatprep.subr.mxu0 0.0
        %v1135 = vand.u32 %v399, 4294901760
        %v1136 = vsub.f32 %v399, %v1135
        %v1137 = vand.u32 %v1136, 4294901760
        %1138 = vmatpush1.msra.mxu0 %v1137
        %1139 = vmatprep.subr.mxu0 0.0
        %v1140 = vand.u32 %v398, 4294901760
        %v1141 = vsub.f32 %v398, %v1140
        %v1142 = vand.u32 %v1141, 4294901760
        %1143 = vmatpush1.msra.mxu0 %v1142
        %1144 = vmatprep.subr.mxu0 0.0
        %v1145 = vand.u32 %v397, 4294901760
        %v1146 = vsub.f32 %v397, %v1145
        %v1147 = vand.u32 %v1146, 4294901760
        %1148 = vmatpush1.msra.mxu0 %v1147
        %1149 = vmatprep.subr.mxu0 0.0
        %v1150 = vand.u32 %v396, 4294901760
        %v1151 = vsub.f32 %v396, %v1150
        %v1152 = vand.u32 %v1151, 4294901760
        %1153 = vmatpush1.msra.mxu0 %v1152
        %1154 = vmatprep.subr.mxu0 0.0
        %v1155 = vand.u32 %v395, 4294901760
        %v1156 = vsub.f32 %v395, %v1155
        %v1157 = vand.u32 %v1156, 4294901760
        %1158 = vmatpush1.msra.mxu0 %v1157
        %1159 = vmatprep.subr.mxu0 0.0
        %v1160 = vand.u32 %v394, 4294901760
        %v1161 = vsub.f32 %v394, %v1160
        %v1162 = vand.u32 %v1161, 4294901760
        %1163 = vmatpush1.msra.mxu0 %v1162
        %1164 = vmatprep.subr.mxu0 0.0
        %v1165 = vand.u32 %v393, 4294901760
        %v1166 = vsub.f32 %v393, %v1165
        %v1167 = vand.u32 %v1166, 4294901760
        %1168 = vmatpush1.msra.mxu0 %v1167
        %1169 = vmatprep.subr.mxu0 0.0
        %v1170 = vand.u32 %v424, 4294901760
        %v1171 = vsub.f32 %v424, %v1170
        %v1172 = vand.u32 %v1171, 4294901760
        %1173 = vmatpush2.msra.mxu0 %v1172
        %1174 = vmatprep.subr.mxu0 0.0
        %v1175 = vand.u32 %v423, 4294901760
        %v1176 = vsub.f32 %v423, %v1175
        %v1177 = vand.u32 %v1176, 4294901760
        %1178 = vmatpush2.msra.mxu0 %v1177
        %1179 = vmatprep.subr.mxu0 0.0
        %v1180 = vand.u32 %v422, 4294901760
        %v1181 = vsub.f32 %v422, %v1180
        %v1182 = vand.u32 %v1181, 4294901760
        %1183 = vmatpush2.msra.mxu0 %v1182
        %1184 = vmatprep.subr.mxu0 0.0
        %v1185 = vand.u32 %v421, 4294901760
        %v1186 = vsub.f32 %v421, %v1185
        %v1187 = vand.u32 %v1186, 4294901760
        %1188 = vmatpush2.msra.mxu0 %v1187
        %1189 = vmatprep.subr.mxu0 0.0
        %v1190 = vand.u32 %v420, 4294901760
        %v1191 = vsub.f32 %v420, %v1190
        %v1192 = vand.u32 %v1191, 4294901760
        %1193 = vmatpush2.msra.mxu0 %v1192
        %1194 = vmatprep.subr.mxu0 0.0
        %v1195 = vand.u32 %v419, 4294901760
        %v1196 = vsub.f32 %v419, %v1195
        %v1197 = vand.u32 %v1196, 4294901760
        %1198 = vmatpush2.msra.mxu0 %v1197
        %1199 = vmatprep.subr.mxu0 0.0
        %v1200 = vand.u32 %v418, 4294901760
        %v1201 = vsub.f32 %v418, %v1200
        %v1202 = vand.u32 %v1201, 4294901760
        %1203 = vmatpush2.msra.mxu0 %v1202
        %1204 = vmatprep.subr.mxu0 0.0
        %v1205 = vand.u32 %v417, 4294901760
        %v1206 = vsub.f32 %v417, %v1205
        %v1207 = vand.u32 %v1206, 4294901760
        %1208 = vmatpush2.msra.mxu0 %v1207
        %1209 = vmatprep.subr.mxu0 0.0
        %v1210 = vand.u32 %v416, 4294901760
        %v1211 = vsub.f32 %v416, %v1210
        %v1212 = vand.u32 %v1211, 4294901760
        %1213 = vmatpush2.msra.mxu0 %v1212
        %1214 = vmatprep.subr.mxu0 0.0
        %v1215 = vand.u32 %v415, 4294901760
        %v1216 = vsub.f32 %v415, %v1215
        %v1217 = vand.u32 %v1216, 4294901760
        %1218 = vmatpush2.msra.mxu0 %v1217
        %1219 = vmatprep.subr.mxu0 0.0
        %v1220 = vand.u32 %v414, 4294901760
        %v1221 = vsub.f32 %v414, %v1220
        %v1222 = vand.u32 %v1221, 4294901760
        %1223 = vmatpush2.msra.mxu0 %v1222
        %1224 = vmatprep.subr.mxu0 0.0
        %v1225 = vand.u32 %v413, 4294901760
        %v1226 = vsub.f32 %v413, %v1225
        %v1227 = vand.u32 %v1226, 4294901760
        %1228 = vmatpush2.msra.mxu0 %v1227
        %1229 = vmatprep.subr.mxu0 0.0
        %v1230 = vand.u32 %v412, 4294901760
        %v1231 = vsub.f32 %v412, %v1230
        %v1232 = vand.u32 %v1231, 4294901760
        %1233 = vmatpush2.msra.mxu0 %v1232
        %1234 = vmatprep.subr.mxu0 0.0
        %v1235 = vand.u32 %v411, 4294901760
        %v1236 = vsub.f32 %v411, %v1235
        %v1237 = vand.u32 %v1236, 4294901760
        %1238 = vmatpush2.msra.mxu0 %v1237
        %1239 = vmatprep.subr.mxu0 0.0
        %v1240 = vand.u32 %v410, 4294901760
        %v1241 = vsub.f32 %v410, %v1240
        %v1242 = vand.u32 %v1241, 4294901760
        %1243 = vmatpush2.msra.mxu0 %v1242
        %1244 = vmatprep.subr.mxu0 0.0
        %v1245 = vand.u32 %v409, 4294901760
        %v1246 = vsub.f32 %v409, %v1245
        %v1247 = vand.u32 %v1246, 4294901760
        %1248 = vmatpush2.msra.mxu0 %v1247
        %v1249 = vand.u32 %v384, 4294901760
        %1250 = vmatprep.mubr.f32.mxu0 %v1249
        %v1251 = vand.u32 %v383, 4294901760
        %1252 = vmatmul.mubr.f32.gmra.mxu0 %v1251
        %v1253 = vpop.f32.mrf.mxu0
        %v1254 = vadd.f32 %v1075, %v1253
        %v1255 = vpop.f32.mrf.mxu0
        %v1256 = vand.u32 %v388, 4294901760
        %1257 = vmatprep.mubr.f32.mxu0 %v1256
        %v1258 = vand.u32 %v387, 4294901760
        %1259 = vmatmul.mubr.f32.gmra.mxu0 %v1258
        %v1260 = vpop.f32.mrf.mxu0
        %v1261 = vadd.f32 %v1086, %v1260
        %v1262 = vpop.f32.mrf.mxu0
        %1263 = vdwg.mxu0
        %1264 = vmatprep.subr.mxu0 0.0
        %v1265 = vand.u32 %v408, 4294901760
        %1266 = vmatpush1.msra.mxu0 %v1265
        %1267 = vmatprep.subr.mxu0 0.0
        %v1268 = vand.u32 %v407, 4294901760
        %1269 = vmatpush1.msra.mxu0 %v1268
        %1270 = vmatprep.subr.mxu0 0.0
        %v1271 = vand.u32 %v406, 4294901760
        %1272 = vmatpush1.msra.mxu0 %v1271
        %1273 = vmatprep.subr.mxu0 0.0
        %v1274 = vand.u32 %v405, 4294901760
        %1275 = vmatpush1.msra.mxu0 %v1274
        %1276 = vmatprep.subr.mxu0 0.0
        %v1277 = vand.u32 %v404, 4294901760
        %1278 = vmatpush1.msra.mxu0 %v1277
        %1279 = vmatprep.subr.mxu0 0.0
        %v1280 = vand.u32 %v403, 4294901760
        %1281 = vmatpush1.msra.mxu0 %v1280
        %1282 = vmatprep.subr.mxu0 0.0
        %v1283 = vand.u32 %v402, 4294901760
        %1284 = vmatpush1.msra.mxu0 %v1283
        %1285 = vmatprep.subr.mxu0 0.0
        %v1286 = vand.u32 %v401, 4294901760
        %1287 = vmatpush1.msra.mxu0 %v1286
        %1288 = vmatprep.subr.mxu0 0.0
        %v1289 = vand.u32 %v400, 4294901760
        %1290 = vmatpush1.msra.mxu0 %v1289
        %1291 = vmatprep.subr.mxu0 0.0
        %v1292 = vand.u32 %v399, 4294901760
        %1293 = vmatpush1.msra.mxu0 %v1292
        %1294 = vmatprep.subr.mxu0 0.0
        %v1295 = vand.u32 %v398, 4294901760
        %1296 = vmatpush1.msra.mxu0 %v1295
        %1297 = vmatprep.subr.mxu0 0.0
        %v1298 = vand.u32 %v397, 4294901760
        %1299 = vmatpush1.msra.mxu0 %v1298
        %1300 = vmatprep.subr.mxu0 0.0
        %v1301 = vand.u32 %v396, 4294901760
        %1302 = vmatpush1.msra.mxu0 %v1301
        %1303 = vmatprep.subr.mxu0 0.0
        %v1304 = vand.u32 %v395, 4294901760
        %1305 = vmatpush1.msra.mxu0 %v1304
        %1306 = vmatprep.subr.mxu0 0.0
        %v1307 = vand.u32 %v394, 4294901760
        %1308 = vmatpush1.msra.mxu0 %v1307
        %1309 = vmatprep.subr.mxu0 0.0
        %v1310 = vand.u32 %v393, 4294901760
        %1311 = vmatpush1.msra.mxu0 %v1310
        %1312 = vmatprep.subr.mxu0 0.0
        %v1313 = vand.u32 %v424, 4294901760
        %1314 = vmatpush2.msra.mxu0 %v1313
        %1315 = vmatprep.subr.mxu0 0.0
        %v1316 = vand.u32 %v423, 4294901760
        %1317 = vmatpush2.msra.mxu0 %v1316
        %1318 = vmatprep.subr.mxu0 0.0
        %v1319 = vand.u32 %v422, 4294901760
        %1320 = vmatpush2.msra.mxu0 %v1319
        %1321 = vmatprep.subr.mxu0 0.0
        %v1322 = vand.u32 %v421, 4294901760
        %1323 = vmatpush2.msra.mxu0 %v1322
        %1324 = vmatprep.subr.mxu0 0.0
        %v1325 = vand.u32 %v420, 4294901760
        %1326 = vmatpush2.msra.mxu0 %v1325
        %1327 = vmatprep.subr.mxu0 0.0
        %v1328 = vand.u32 %v419, 4294901760
        %1329 = vmatpush2.msra.mxu0 %v1328
        %1330 = vmatprep.subr.mxu0 0.0
        %v1331 = vand.u32 %v418, 4294901760
        %1332 = vmatpush2.msra.mxu0 %v1331
        %1333 = vmatprep.subr.mxu0 0.0
        %v1334 = vand.u32 %v417, 4294901760
        %1335 = vmatpush2.msra.mxu0 %v1334
        %1336 = vmatprep.subr.mxu0 0.0
        %v1337 = vand.u32 %v416, 4294901760
        %1338 = vmatpush2.msra.mxu0 %v1337
        %1339 = vmatprep.subr.mxu0 0.0
        %v1340 = vand.u32 %v415, 4294901760
        %1341 = vmatpush2.msra.mxu0 %v1340
        %1342 = vmatprep.subr.mxu0 0.0
        %v1343 = vand.u32 %v414, 4294901760
        %1344 = vmatpush2.msra.mxu0 %v1343
        %1345 = vmatprep.subr.mxu0 0.0
        %v1346 = vand.u32 %v413, 4294901760
        %1347 = vmatpush2.msra.mxu0 %v1346
        %1348 = vmatprep.subr.mxu0 0.0
        %v1349 = vand.u32 %v412, 4294901760
        %1350 = vmatpush2.msra.mxu0 %v1349
        %1351 = vmatprep.subr.mxu0 0.0
        %v1352 = vand.u32 %v411, 4294901760
        %1353 = vmatpush2.msra.mxu0 %v1352
        %1354 = vmatprep.subr.mxu0 0.0
        %v1355 = vand.u32 %v410, 4294901760
        %1356 = vmatpush2.msra.mxu0 %v1355
        %1357 = vmatprep.subr.mxu0 0.0
        %v1358 = vand.u32 %v409, 4294901760
        %1359 = vmatpush2.msra.mxu0 %v1358
        %v1360 = vand.u32 %v384, 4294901760
        %1361 = vmatprep.mubr.f32.mxu0 %v1360
        %v1362 = vand.u32 %v383, 4294901760
        %1363 = vmatmul.mubr.f32.gmra.mxu0 %v1362
        %v1364 = vpop.f32.mrf.mxu0
        %v1365 = vadd.f32 %v1254, %v1364
        %v1366 = vpop.f32.mrf.mxu0
        %v1367 = vand.u32 %v388, 4294901760
        %1368 = vmatprep.mubr.f32.mxu0 %v1367
        %v1369 = vand.u32 %v387, 4294901760
        %1370 = vmatmul.mubr.f32.gmra.mxu0 %v1369
        %v1371 = vpop.f32.mrf.mxu0
        %v1372 = vadd.f32 %v1261, %v1371
        %v1373 = vpop.f32.mrf.mxu0
        %1374 = vdwg.mxu0
        %1375 = vmatprep.subr.mxu0 0.0
        %v1376 = vand.u32 %v440, 4294901760
        %1377 = vmatpush1.msra.mxu0 %v1376
        %1378 = vmatprep.subr.mxu0 0.0
        %v1379 = vand.u32 %v439, 4294901760
        %1380 = vmatpush1.msra.mxu0 %v1379
        %1381 = vmatprep.subr.mxu0 0.0
        %v1382 = vand.u32 %v438, 4294901760
        %1383 = vmatpush1.msra.mxu0 %v1382
        %1384 = vmatprep.subr.mxu0 0.0
        %v1385 = vand.u32 %v437, 4294901760
        %1386 = vmatpush1.msra.mxu0 %v1385
        %1387 = vmatprep.subr.mxu0 0.0
        %v1388 = vand.u32 %v436, 4294901760
        %1389 = vmatpush1.msra.mxu0 %v1388
        %1390 = vmatprep.subr.mxu0 0.0
        %v1391 = vand.u32 %v435, 4294901760
        %1392 = vmatpush1.msra.mxu0 %v1391
        %1393 = vmatprep.subr.mxu0 0.0
        %v1394 = vand.u32 %v434, 4294901760
        %1395 = vmatpush1.msra.mxu0 %v1394
        %1396 = vmatprep.subr.mxu0 0.0
        %v1397 = vand.u32 %v433, 4294901760
        %1398 = vmatpush1.msra.mxu0 %v1397
        %1399 = vmatprep.subr.mxu0 0.0
        %v1400 = vand.u32 %v432, 4294901760
        %1401 = vmatpush1.msra.mxu0 %v1400
        %1402 = vmatprep.subr.mxu0 0.0
        %v1403 = vand.u32 %v431, 4294901760
        %1404 = vmatpush1.msra.mxu0 %v1403
        %1405 = vmatprep.subr.mxu0 0.0
        %v1406 = vand.u32 %v430, 4294901760
        %1407 = vmatpush1.msra.mxu0 %v1406
        %1408 = vmatprep.subr.mxu0 0.0
        %v1409 = vand.u32 %v429, 4294901760
        %1410 = vmatpush1.msra.mxu0 %v1409
        %1411 = vmatprep.subr.mxu0 0.0
        %v1412 = vand.u32 %v428, 4294901760
        %1413 = vmatpush1.msra.mxu0 %v1412
        %1414 = vmatprep.subr.mxu0 0.0
        %v1415 = vand.u32 %v427, 4294901760
        %1416 = vmatpush1.msra.mxu0 %v1415
        %1417 = vmatprep.subr.mxu0 0.0
        %v1418 = vand.u32 %v426, 4294901760
        %1419 = vmatpush1.msra.mxu0 %v1418
        %1420 = vmatprep.subr.mxu0 0.0
        %v1421 = vand.u32 %v425, 4294901760
        %1422 = vmatpush1.msra.mxu0 %v1421
        %1423 = vmatprep.subr.mxu0 0.0
        %v1424 = vand.u32 %v456, 4294901760
        %1425 = vmatpush2.msra.mxu0 %v1424
        %1426 = vmatprep.subr.mxu0 0.0
        %v1427 = vand.u32 %v455, 4294901760
        %1428 = vmatpush2.msra.mxu0 %v1427
        %1429 = vmatprep.subr.mxu0 0.0
        %v1430 = vand.u32 %v454, 4294901760
        %1431 = vmatpush2.msra.mxu0 %v1430
        %1432 = vmatprep.subr.mxu0 0.0
        %v1433 = vand.u32 %v453, 4294901760
        %1434 = vmatpush2.msra.mxu0 %v1433
        %1435 = vmatprep.subr.mxu0 0.0
        %v1436 = vand.u32 %v452, 4294901760
        %1437 = vmatpush2.msra.mxu0 %v1436
        %1438 = vmatprep.subr.mxu0 0.0
        %v1439 = vand.u32 %v451, 4294901760
        %1440 = vmatpush2.msra.mxu0 %v1439
        %1441 = vmatprep.subr.mxu0 0.0
        %v1442 = vand.u32 %v450, 4294901760
        %1443 = vmatpush2.msra.mxu0 %v1442
        %1444 = vmatprep.subr.mxu0 0.0
        %v1445 = vand.u32 %v449, 4294901760
        %1446 = vmatpush2.msra.mxu0 %v1445
        %1447 = vmatprep.subr.mxu0 0.0
        %v1448 = vand.u32 %v448, 4294901760
        %1449 = vmatpush2.msra.mxu0 %v1448
        %1450 = vmatprep.subr.mxu0 0.0
        %v1451 = vand.u32 %v447, 4294901760
        %1452 = vmatpush2.msra.mxu0 %v1451
        %1453 = vmatprep.subr.mxu0 0.0
        %v1454 = vand.u32 %v446, 4294901760
        %1455 = vmatpush2.msra.mxu0 %v1454
        %1456 = vmatprep.subr.mxu0 0.0
        %v1457 = vand.u32 %v445, 4294901760
        %1458 = vmatpush2.msra.mxu0 %v1457
        %1459 = vmatprep.subr.mxu0 0.0
        %v1460 = vand.u32 %v444, 4294901760
        %1461 = vmatpush2.msra.mxu0 %v1460
        %1462 = vmatprep.subr.mxu0 0.0
        %v1463 = vand.u32 %v443, 4294901760
        %1464 = vmatpush2.msra.mxu0 %v1463
        %1465 = vmatprep.subr.mxu0 0.0
        %v1466 = vand.u32 %v442, 4294901760
        %1467 = vmatpush2.msra.mxu0 %v1466
        %1468 = vmatprep.subr.mxu0 0.0
        %v1469 = vand.u32 %v441, 4294901760
        %1470 = vmatpush2.msra.mxu0 %v1469
        %v1471 = vand.u32 %v386, 4294901760
        %v1472 = vsub.f32 %v386, %v1471
        %v1473 = vand.u32 %v1472, 4294901760
        %v1474 = vsub.f32 %v1472, %v1473
        %v1475 = vand.u32 %v1474, 4294901760
        %1476 = vmatprep.mubr.f32.mxu0 %v1475
        %v1477 = vand.u32 %v385, 4294901760
        %v1478 = vsub.f32 %v385, %v1477
        %v1479 = vand.u32 %v1478, 4294901760
        %v1480 = vsub.f32 %v1478, %v1479
        %v1481 = vand.u32 %v1480, 4294901760
        %1482 = vmatmul.mubr.f32.gmra.mxu0 %v1481
        %v1483 = vpop.f32.mrf.mxu0
        %v1484 = vadd.f32 %v1365, %v1483
        %v1485 = vpop.f32.mrf.mxu0
        %v1486 = vand.u32 %v390, 4294901760
        %v1487 = vsub.f32 %v390, %v1486
        %v1488 = vand.u32 %v1487, 4294901760
        %v1489 = vsub.f32 %v1487, %v1488
        %v1490 = vand.u32 %v1489, 4294901760
        %1491 = vmatprep.mubr.f32.mxu0 %v1490
        %v1492 = vand.u32 %v389, 4294901760
        %v1493 = vsub.f32 %v389, %v1492
        %v1494 = vand.u32 %v1493, 4294901760
        %v1495 = vsub.f32 %v1493, %v1494
        %v1496 = vand.u32 %v1495, 4294901760
        %1497 = vmatmul.mubr.f32.gmra.mxu0 %v1496
        %v1498 = vpop.f32.mrf.mxu0
        %v1499 = vadd.f32 %v1372, %v1498
        %v1500 = vpop.f32.mrf.mxu0
        %1501 = vdwg.mxu0
        %1502 = vmatprep.subr.mxu0 0.0
        %v1503 = vand.u32 %v440, 4294901760
        %v1504 = vsub.f32 %v440, %v1503
        %v1505 = vand.u32 %v1504, 4294901760
        %v1506 = vsub.f32 %v1504, %v1505
        %v1507 = vand.u32 %v1506, 4294901760
        %1508 = vmatpush1.msra.mxu0 %v1507
        %1509 = vmatprep.subr.mxu0 0.0
        %v1510 = vand.u32 %v439, 4294901760
        %v1511 = vsub.f32 %v439, %v1510
        %v1512 = vand.u32 %v1511, 4294901760
        %v1513 = vsub.f32 %v1511, %v1512
        %v1514 = vand.u32 %v1513, 4294901760
        %1515 = vmatpush1.msra.mxu0 %v1514
        %1516 = vmatprep.subr.mxu0 0.0
        %v1517 = vand.u32 %v438, 4294901760
        %v1518 = vsub.f32 %v438, %v1517
        %v1519 = vand.u32 %v1518, 4294901760
        %v1520 = vsub.f32 %v1518, %v1519
        %v1521 = vand.u32 %v1520, 4294901760
        %1522 = vmatpush1.msra.mxu0 %v1521
        %1523 = vmatprep.subr.mxu0 0.0
        %v1524 = vand.u32 %v437, 4294901760
        %v1525 = vsub.f32 %v437, %v1524
        %v1526 = vand.u32 %v1525, 4294901760
        %v1527 = vsub.f32 %v1525, %v1526
        %v1528 = vand.u32 %v1527, 4294901760
        %1529 = vmatpush1.msra.mxu0 %v1528
        %1530 = vmatprep.subr.mxu0 0.0
        %v1531 = vand.u32 %v436, 4294901760
        %v1532 = vsub.f32 %v436, %v1531
        %v1533 = vand.u32 %v1532, 4294901760
        %v1534 = vsub.f32 %v1532, %v1533
        %v1535 = vand.u32 %v1534, 4294901760
        %1536 = vmatpush1.msra.mxu0 %v1535
        %1537 = vmatprep.subr.mxu0 0.0
        %v1538 = vand.u32 %v435, 4294901760
        %v1539 = vsub.f32 %v435, %v1538
        %v1540 = vand.u32 %v1539, 4294901760
        %v1541 = vsub.f32 %v1539, %v1540
        %v1542 = vand.u32 %v1541, 4294901760
        %1543 = vmatpush1.msra.mxu0 %v1542
        %1544 = vmatprep.subr.mxu0 0.0
        %v1545 = vand.u32 %v434, 4294901760
        %v1546 = vsub.f32 %v434, %v1545
        %v1547 = vand.u32 %v1546, 4294901760
        %v1548 = vsub.f32 %v1546, %v1547
        %v1549 = vand.u32 %v1548, 4294901760
        %1550 = vmatpush1.msra.mxu0 %v1549
        %1551 = vmatprep.subr.mxu0 0.0
        %v1552 = vand.u32 %v433, 4294901760
        %v1553 = vsub.f32 %v433, %v1552
        %v1554 = vand.u32 %v1553, 4294901760
        %v1555 = vsub.f32 %v1553, %v1554
        %v1556 = vand.u32 %v1555, 4294901760
        %1557 = vmatpush1.msra.mxu0 %v1556
        %1558 = vmatprep.subr.mxu0 0.0
        %v1559 = vand.u32 %v432, 4294901760
        %v1560 = vsub.f32 %v432, %v1559
        %v1561 = vand.u32 %v1560, 4294901760
        %v1562 = vsub.f32 %v1560, %v1561
        %v1563 = vand.u32 %v1562, 4294901760
        %1564 = vmatpush1.msra.mxu0 %v1563
        %1565 = vmatprep.subr.mxu0 0.0
        %v1566 = vand.u32 %v431, 4294901760
        %v1567 = vsub.f32 %v431, %v1566
        %v1568 = vand.u32 %v1567, 4294901760
        %v1569 = vsub.f32 %v1567, %v1568
        %v1570 = vand.u32 %v1569, 4294901760
        %1571 = vmatpush1.msra.mxu0 %v1570
        %1572 = vmatprep.subr.mxu0 0.0
        %v1573 = vand.u32 %v430, 4294901760
        %v1574 = vsub.f32 %v430, %v1573
        %v1575 = vand.u32 %v1574, 4294901760
        %v1576 = vsub.f32 %v1574, %v1575
        %v1577 = vand.u32 %v1576, 4294901760
        %1578 = vmatpush1.msra.mxu0 %v1577
        %1579 = vmatprep.subr.mxu0 0.0
        %v1580 = vand.u32 %v429, 4294901760
        %v1581 = vsub.f32 %v429, %v1580
        %v1582 = vand.u32 %v1581, 4294901760
        %v1583 = vsub.f32 %v1581, %v1582
        %v1584 = vand.u32 %v1583, 4294901760
        %1585 = vmatpush1.msra.mxu0 %v1584
        %1586 = vmatprep.subr.mxu0 0.0
        %v1587 = vand.u32 %v428, 4294901760
        %v1588 = vsub.f32 %v428, %v1587
        %v1589 = vand.u32 %v1588, 4294901760
        %v1590 = vsub.f32 %v1588, %v1589
        %v1591 = vand.u32 %v1590, 4294901760
        %1592 = vmatpush1.msra.mxu0 %v1591
        %1593 = vmatprep.subr.mxu0 0.0
        %v1594 = vand.u32 %v427, 4294901760
        %v1595 = vsub.f32 %v427, %v1594
        %v1596 = vand.u32 %v1595, 4294901760
        %v1597 = vsub.f32 %v1595, %v1596
        %v1598 = vand.u32 %v1597, 4294901760
        %1599 = vmatpush1.msra.mxu0 %v1598
        %1600 = vmatprep.subr.mxu0 0.0
        %v1601 = vand.u32 %v426, 4294901760
        %v1602 = vsub.f32 %v426, %v1601
        %v1603 = vand.u32 %v1602, 4294901760
        %v1604 = vsub.f32 %v1602, %v1603
        %v1605 = vand.u32 %v1604, 4294901760
        %1606 = vmatpush1.msra.mxu0 %v1605
        %1607 = vmatprep.subr.mxu0 0.0
        %v1608 = vand.u32 %v425, 4294901760
        %v1609 = vsub.f32 %v425, %v1608
        %v1610 = vand.u32 %v1609, 4294901760
        %v1611 = vsub.f32 %v1609, %v1610
        %v1612 = vand.u32 %v1611, 4294901760
        %1613 = vmatpush1.msra.mxu0 %v1612
        %1614 = vmatprep.subr.mxu0 0.0
        %v1615 = vand.u32 %v456, 4294901760
        %v1616 = vsub.f32 %v456, %v1615
        %v1617 = vand.u32 %v1616, 4294901760
        %v1618 = vsub.f32 %v1616, %v1617
        %v1619 = vand.u32 %v1618, 4294901760
        %1620 = vmatpush2.msra.mxu0 %v1619
        %1621 = vmatprep.subr.mxu0 0.0
        %v1622 = vand.u32 %v455, 4294901760
        %v1623 = vsub.f32 %v455, %v1622
        %v1624 = vand.u32 %v1623, 4294901760
        %v1625 = vsub.f32 %v1623, %v1624
        %v1626 = vand.u32 %v1625, 4294901760
        %1627 = vmatpush2.msra.mxu0 %v1626
        %1628 = vmatprep.subr.mxu0 0.0
        %v1629 = vand.u32 %v454, 4294901760
        %v1630 = vsub.f32 %v454, %v1629
        %v1631 = vand.u32 %v1630, 4294901760
        %v1632 = vsub.f32 %v1630, %v1631
        %v1633 = vand.u32 %v1632, 4294901760
        %1634 = vmatpush2.msra.mxu0 %v1633
        %1635 = vmatprep.subr.mxu0 0.0
        %v1636 = vand.u32 %v453, 4294901760
        %v1637 = vsub.f32 %v453, %v1636
        %v1638 = vand.u32 %v1637, 4294901760
        %v1639 = vsub.f32 %v1637, %v1638
        %v1640 = vand.u32 %v1639, 4294901760
        %1641 = vmatpush2.msra.mxu0 %v1640
        %1642 = vmatprep.subr.mxu0 0.0
        %v1643 = vand.u32 %v452, 4294901760
        %v1644 = vsub.f32 %v452, %v1643
        %v1645 = vand.u32 %v1644, 4294901760
        %v1646 = vsub.f32 %v1644, %v1645
        %v1647 = vand.u32 %v1646, 4294901760
        %1648 = vmatpush2.msra.mxu0 %v1647
        %1649 = vmatprep.subr.mxu0 0.0
        %v1650 = vand.u32 %v451, 4294901760
        %v1651 = vsub.f32 %v451, %v1650
        %v1652 = vand.u32 %v1651, 4294901760
        %v1653 = vsub.f32 %v1651, %v1652
        %v1654 = vand.u32 %v1653, 4294901760
        %1655 = vmatpush2.msra.mxu0 %v1654
        %1656 = vmatprep.subr.mxu0 0.0
        %v1657 = vand.u32 %v450, 4294901760
        %v1658 = vsub.f32 %v450, %v1657
        %v1659 = vand.u32 %v1658, 4294901760
        %v1660 = vsub.f32 %v1658, %v1659
        %v1661 = vand.u32 %v1660, 4294901760
        %1662 = vmatpush2.msra.mxu0 %v1661
        %1663 = vmatprep.subr.mxu0 0.0
        %v1664 = vand.u32 %v449, 4294901760
        %v1665 = vsub.f32 %v449, %v1664
        %v1666 = vand.u32 %v1665, 4294901760
        %v1667 = vsub.f32 %v1665, %v1666
        %v1668 = vand.u32 %v1667, 4294901760
        %1669 = vmatpush2.msra.mxu0 %v1668
        %1670 = vmatprep.subr.mxu0 0.0
        %v1671 = vand.u32 %v448, 4294901760
        %v1672 = vsub.f32 %v448, %v1671
        %v1673 = vand.u32 %v1672, 4294901760
        %v1674 = vsub.f32 %v1672, %v1673
        %v1675 = vand.u32 %v1674, 4294901760
        %1676 = vmatpush2.msra.mxu0 %v1675
        %1677 = vmatprep.subr.mxu0 0.0
        %v1678 = vand.u32 %v447, 4294901760
        %v1679 = vsub.f32 %v447, %v1678
        %v1680 = vand.u32 %v1679, 4294901760
        %v1681 = vsub.f32 %v1679, %v1680
        %v1682 = vand.u32 %v1681, 4294901760
        %1683 = vmatpush2.msra.mxu0 %v1682
        %1684 = vmatprep.subr.mxu0 0.0
        %v1685 = vand.u32 %v446, 4294901760
        %v1686 = vsub.f32 %v446, %v1685
        %v1687 = vand.u32 %v1686, 4294901760
        %v1688 = vsub.f32 %v1686, %v1687
        %v1689 = vand.u32 %v1688, 4294901760
        %1690 = vmatpush2.msra.mxu0 %v1689
        %1691 = vmatprep.subr.mxu0 0.0
        %v1692 = vand.u32 %v445, 4294901760
        %v1693 = vsub.f32 %v445, %v1692
        %v1694 = vand.u32 %v1693, 4294901760
        %v1695 = vsub.f32 %v1693, %v1694
        %v1696 = vand.u32 %v1695, 4294901760
        %1697 = vmatpush2.msra.mxu0 %v1696
        %1698 = vmatprep.subr.mxu0 0.0
        %v1699 = vand.u32 %v444, 4294901760
        %v1700 = vsub.f32 %v444, %v1699
        %v1701 = vand.u32 %v1700, 4294901760
        %v1702 = vsub.f32 %v1700, %v1701
        %v1703 = vand.u32 %v1702, 4294901760
        %1704 = vmatpush2.msra.mxu0 %v1703
        %1705 = vmatprep.subr.mxu0 0.0
        %v1706 = vand.u32 %v443, 4294901760
        %v1707 = vsub.f32 %v443, %v1706
        %v1708 = vand.u32 %v1707, 4294901760
        %v1709 = vsub.f32 %v1707, %v1708
        %v1710 = vand.u32 %v1709, 4294901760
        %1711 = vmatpush2.msra.mxu0 %v1710
        %1712 = vmatprep.subr.mxu0 0.0
        %v1713 = vand.u32 %v442, 4294901760
        %v1714 = vsub.f32 %v442, %v1713
        %v1715 = vand.u32 %v1714, 4294901760
        %v1716 = vsub.f32 %v1714, %v1715
        %v1717 = vand.u32 %v1716, 4294901760
        %1718 = vmatpush2.msra.mxu0 %v1717
        %1719 = vmatprep.subr.mxu0 0.0
        %v1720 = vand.u32 %v441, 4294901760
        %v1721 = vsub.f32 %v441, %v1720
        %v1722 = vand.u32 %v1721, 4294901760
        %v1723 = vsub.f32 %v1721, %v1722
        %v1724 = vand.u32 %v1723, 4294901760
        %1725 = vmatpush2.msra.mxu0 %v1724
        %v1726 = vand.u32 %v386, 4294901760
        %1727 = vmatprep.mubr.f32.mxu0 %v1726
        %v1728 = vand.u32 %v385, 4294901760
        %1729 = vmatmul.mubr.f32.gmra.mxu0 %v1728
        %v1730 = vpop.f32.mrf.mxu0
        %v1731 = vadd.f32 %v1484, %v1730
        %v1732 = vpop.f32.mrf.mxu0
        %v1733 = vand.u32 %v390, 4294901760
        %1734 = vmatprep.mubr.f32.mxu0 %v1733
        %v1735 = vand.u32 %v389, 4294901760
        %1736 = vmatmul.mubr.f32.gmra.mxu0 %v1735
        %v1737 = vpop.f32.mrf.mxu0
        %v1738 = vadd.f32 %v1499, %v1737
        %v1739 = vpop.f32.mrf.mxu0
        %1740 = vdwg.mxu0
        %1741 = vmatprep.subr.mxu0 0.0
        %v1742 = vand.u32 %v440, 4294901760
        %v1743 = vsub.f32 %v440, %v1742
        %1744 = vmatpush1.msra.mxu0 %v1743
        %1745 = vmatprep.subr.mxu0 0.0
        %v1746 = vand.u32 %v439, 4294901760
        %v1747 = vsub.f32 %v439, %v1746
        %1748 = vmatpush1.msra.mxu0 %v1747
        %1749 = vmatprep.subr.mxu0 0.0
        %v1750 = vand.u32 %v438, 4294901760
        %v1751 = vsub.f32 %v438, %v1750
        %1752 = vmatpush1.msra.mxu0 %v1751
        %1753 = vmatprep.subr.mxu0 0.0
        %v1754 = vand.u32 %v437, 4294901760
        %v1755 = vsub.f32 %v437, %v1754
        %1756 = vmatpush1.msra.mxu0 %v1755
        %1757 = vmatprep.subr.mxu0 0.0
        %v1758 = vand.u32 %v436, 4294901760
        %v1759 = vsub.f32 %v436, %v1758
        %1760 = vmatpush1.msra.mxu0 %v1759
        %1761 = vmatprep.subr.mxu0 0.0
        %v1762 = vand.u32 %v435, 4294901760
        %v1763 = vsub.f32 %v435, %v1762
        %1764 = vmatpush1.msra.mxu0 %v1763
        %1765 = vmatprep.subr.mxu0 0.0
        %v1766 = vand.u32 %v434, 4294901760
        %v1767 = vsub.f32 %v434, %v1766
        %1768 = vmatpush1.msra.mxu0 %v1767
        %1769 = vmatprep.subr.mxu0 0.0
        %v1770 = vand.u32 %v433, 4294901760
        %v1771 = vsub.f32 %v433, %v1770
        %1772 = vmatpush1.msra.mxu0 %v1771
        %1773 = vmatprep.subr.mxu0 0.0
        %v1774 = vand.u32 %v432, 4294901760
        %v1775 = vsub.f32 %v432, %v1774
        %1776 = vmatpush1.msra.mxu0 %v1775
        %1777 = vmatprep.subr.mxu0 0.0
        %v1778 = vand.u32 %v431, 4294901760
        %v1779 = vsub.f32 %v431, %v1778
        %1780 = vmatpush1.msra.mxu0 %v1779
        %1781 = vmatprep.subr.mxu0 0.0
        %v1782 = vand.u32 %v430, 4294901760
        %v1783 = vsub.f32 %v430, %v1782
        %1784 = vmatpush1.msra.mxu0 %v1783
        %1785 = vmatprep.subr.mxu0 0.0
        %v1786 = vand.u32 %v429, 4294901760
        %v1787 = vsub.f32 %v429, %v1786
        %1788 = vmatpush1.msra.mxu0 %v1787
        %1789 = vmatprep.subr.mxu0 0.0
        %v1790 = vand.u32 %v428, 4294901760
        %v1791 = vsub.f32 %v428, %v1790
        %1792 = vmatpush1.msra.mxu0 %v1791
        %1793 = vmatprep.subr.mxu0 0.0
        %v1794 = vand.u32 %v427, 4294901760
        %v1795 = vsub.f32 %v427, %v1794
        %1796 = vmatpush1.msra.mxu0 %v1795
        %1797 = vmatprep.subr.mxu0 0.0
        %v1798 = vand.u32 %v426, 4294901760
        %v1799 = vsub.f32 %v426, %v1798
        %1800 = vmatpush1.msra.mxu0 %v1799
        %1801 = vmatprep.subr.mxu0 0.0
        %v1802 = vand.u32 %v425, 4294901760
        %v1803 = vsub.f32 %v425, %v1802
        %1804 = vmatpush1.msra.mxu0 %v1803
        %1805 = vmatprep.subr.mxu0 0.0
        %v1806 = vand.u32 %v456, 4294901760
        %v1807 = vsub.f32 %v456, %v1806
        %1808 = vmatpush2.msra.mxu0 %v1807
        %1809 = vmatprep.subr.mxu0 0.0
        %v1810 = vand.u32 %v455, 4294901760
        %v1811 = vsub.f32 %v455, %v1810
        %1812 = vmatpush2.msra.mxu0 %v1811
        %1813 = vmatprep.subr.mxu0 0.0
        %v1814 = vand.u32 %v454, 4294901760
        %v1815 = vsub.f32 %v454, %v1814
        %1816 = vmatpush2.msra.mxu0 %v1815
        %1817 = vmatprep.subr.mxu0 0.0
        %v1818 = vand.u32 %v453, 4294901760
        %v1819 = vsub.f32 %v453, %v1818
        %1820 = vmatpush2.msra.mxu0 %v1819
        %1821 = vmatprep.subr.mxu0 0.0
        %v1822 = vand.u32 %v452, 4294901760
        %v1823 = vsub.f32 %v452, %v1822
        %1824 = vmatpush2.msra.mxu0 %v1823
        %1825 = vmatprep.subr.mxu0 0.0
        %v1826 = vand.u32 %v451, 4294901760
        %v1827 = vsub.f32 %v451, %v1826
        %1828 = vmatpush2.msra.mxu0 %v1827
        %1829 = vmatprep.subr.mxu0 0.0
        %v1830 = vand.u32 %v450, 4294901760
        %v1831 = vsub.f32 %v450, %v1830
        %1832 = vmatpush2.msra.mxu0 %v1831
        %1833 = vmatprep.subr.mxu0 0.0
        %v1834 = vand.u32 %v449, 4294901760
        %v1835 = vsub.f32 %v449, %v1834
        %1836 = vmatpush2.msra.mxu0 %v1835
        %1837 = vmatprep.subr.mxu0 0.0
        %v1838 = vand.u32 %v448, 4294901760
        %v1839 = vsub.f32 %v448, %v1838
        %1840 = vmatpush2.msra.mxu0 %v1839
        %1841 = vmatprep.subr.mxu0 0.0
        %v1842 = vand.u32 %v447, 4294901760
        %v1843 = vsub.f32 %v447, %v1842
        %1844 = vmatpush2.msra.mxu0 %v1843
        %1845 = vmatprep.subr.mxu0 0.0
        %v1846 = vand.u32 %v446, 4294901760
        %v1847 = vsub.f32 %v446, %v1846
        %1848 = vmatpush2.msra.mxu0 %v1847
        %1849 = vmatprep.subr.mxu0 0.0
        %v1850 = vand.u32 %v445, 4294901760
        %v1851 = vsub.f32 %v445, %v1850
        %1852 = vmatpush2.msra.mxu0 %v1851
        %1853 = vmatprep.subr.mxu0 0.0
        %v1854 = vand.u32 %v444, 4294901760
        %v1855 = vsub.f32 %v444, %v1854
        %1856 = vmatpush2.msra.mxu0 %v1855
        %1857 = vmatprep.subr.mxu0 0.0
        %v1858 = vand.u32 %v443, 4294901760
        %v1859 = vsub.f32 %v443, %v1858
        %1860 = vmatpush2.msra.mxu0 %v1859
        %1861 = vmatprep.subr.mxu0 0.0
        %v1862 = vand.u32 %v442, 4294901760
        %v1863 = vsub.f32 %v442, %v1862
        %1864 = vmatpush2.msra.mxu0 %v1863
        %1865 = vmatprep.subr.mxu0 0.0
        %v1866 = vand.u32 %v441, 4294901760
        %v1867 = vsub.f32 %v441, %v1866
        %1868 = vmatpush2.msra.mxu0 %v1867
        %v1869 = vand.u32 %v386, 4294901760
        %v1870 = vsub.f32 %v386, %v1869
        %1871 = vmatprep.mubr.f32.mxu0 %v1870
        %v1872 = vand.u32 %v385, 4294901760
        %v1873 = vsub.f32 %v385, %v1872
        %1874 = vmatmul.mubr.f32.gmra.mxu0 %v1873
        %v1875 = vpop.f32.mrf.mxu0
        %v1876 = vadd.f32 %v1731, %v1875
        %v1877 = vpop.f32.mrf.mxu0
        %v1878 = vand.u32 %v390, 4294901760
        %v1879 = vsub.f32 %v390, %v1878
        %1880 = vmatprep.mubr.f32.mxu0 %v1879
        %v1881 = vand.u32 %v389, 4294901760
        %v1882 = vsub.f32 %v389, %v1881
        %1883 = vmatmul.mubr.f32.gmra.mxu0 %v1882
        %v1884 = vpop.f32.mrf.mxu0
        %v1885 = vadd.f32 %v1738, %v1884
        %v1886 = vpop.f32.mrf.mxu0
        %1887 = vdwg.mxu0
        %1888 = vmatprep.subr.mxu0 0.0
        %v1889 = vand.u32 %v440, 4294901760
        %1890 = vmatpush1.msra.mxu0 %v1889
        %1891 = vmatprep.subr.mxu0 0.0
        %v1892 = vand.u32 %v439, 4294901760
        %1893 = vmatpush1.msra.mxu0 %v1892
        %1894 = vmatprep.subr.mxu0 0.0
        %v1895 = vand.u32 %v438, 4294901760
        %1896 = vmatpush1.msra.mxu0 %v1895
        %1897 = vmatprep.subr.mxu0 0.0
        %v1898 = vand.u32 %v437, 4294901760
        %1899 = vmatpush1.msra.mxu0 %v1898
        %1900 = vmatprep.subr.mxu0 0.0
        %v1901 = vand.u32 %v436, 4294901760
        %1902 = vmatpush1.msra.mxu0 %v1901
        %1903 = vmatprep.subr.mxu0 0.0
        %v1904 = vand.u32 %v435, 4294901760
        %1905 = vmatpush1.msra.mxu0 %v1904
        %1906 = vmatprep.subr.mxu0 0.0
        %v1907 = vand.u32 %v434, 4294901760
        %1908 = vmatpush1.msra.mxu0 %v1907
        %1909 = vmatprep.subr.mxu0 0.0
        %v1910 = vand.u32 %v433, 4294901760
        %1911 = vmatpush1.msra.mxu0 %v1910
        %1912 = vmatprep.subr.mxu0 0.0
        %v1913 = vand.u32 %v432, 4294901760
        %1914 = vmatpush1.msra.mxu0 %v1913
        %1915 = vmatprep.subr.mxu0 0.0
        %v1916 = vand.u32 %v431, 4294901760
        %1917 = vmatpush1.msra.mxu0 %v1916
        %1918 = vmatprep.subr.mxu0 0.0
        %v1919 = vand.u32 %v430, 4294901760
        %1920 = vmatpush1.msra.mxu0 %v1919
        %1921 = vmatprep.subr.mxu0 0.0
        %v1922 = vand.u32 %v429, 4294901760
        %1923 = vmatpush1.msra.mxu0 %v1922
        %1924 = vmatprep.subr.mxu0 0.0
        %v1925 = vand.u32 %v428, 4294901760
        %1926 = vmatpush1.msra.mxu0 %v1925
        %1927 = vmatprep.subr.mxu0 0.0
        %v1928 = vand.u32 %v427, 4294901760
        %1929 = vmatpush1.msra.mxu0 %v1928
        %1930 = vmatprep.subr.mxu0 0.0
        %v1931 = vand.u32 %v426, 4294901760
        %1932 = vmatpush1.msra.mxu0 %v1931
        %1933 = vmatprep.subr.mxu0 0.0
        %v1934 = vand.u32 %v425, 4294901760
        %1935 = vmatpush1.msra.mxu0 %v1934
        %1936 = vmatprep.subr.mxu0 0.0
        %v1937 = vand.u32 %v456, 4294901760
        %1938 = vmatpush2.msra.mxu0 %v1937
        %1939 = vmatprep.subr.mxu0 0.0
        %v1940 = vand.u32 %v455, 4294901760
        %1941 = vmatpush2.msra.mxu0 %v1940
        %1942 = vmatprep.subr.mxu0 0.0
        %v1943 = vand.u32 %v454, 4294901760
        %1944 = vmatpush2.msra.mxu0 %v1943
        %1945 = vmatprep.subr.mxu0 0.0
        %v1946 = vand.u32 %v453, 4294901760
        %1947 = vmatpush2.msra.mxu0 %v1946
        %1948 = vmatprep.subr.mxu0 0.0
        %v1949 = vand.u32 %v452, 4294901760
        %1950 = vmatpush2.msra.mxu0 %v1949
        %1951 = vmatprep.subr.mxu0 0.0
        %v1952 = vand.u32 %v451, 4294901760
        %1953 = vmatpush2.msra.mxu0 %v1952
        %1954 = vmatprep.subr.mxu0 0.0
        %v1955 = vand.u32 %v450, 4294901760
        %1956 = vmatpush2.msra.mxu0 %v1955
        %1957 = vmatprep.subr.mxu0 0.0
        %v1958 = vand.u32 %v449, 4294901760
        %1959 = vmatpush2.msra.mxu0 %v1958
        %1960 = vmatprep.subr.mxu0 0.0
        %v1961 = vand.u32 %v448, 4294901760
        %1962 = vmatpush2.msra.mxu0 %v1961
        %1963 = vmatprep.subr.mxu0 0.0
        %v1964 = vand.u32 %v447, 4294901760
        %1965 = vmatpush2.msra.mxu0 %v1964
        %1966 = vmatprep.subr.mxu0 0.0
        %v1967 = vand.u32 %v446, 4294901760
        %1968 = vmatpush2.msra.mxu0 %v1967
        %1969 = vmatprep.subr.mxu0 0.0
        %v1970 = vand.u32 %v445, 4294901760
        %1971 = vmatpush2.msra.mxu0 %v1970
        %1972 = vmatprep.subr.mxu0 0.0
        %v1973 = vand.u32 %v444, 4294901760
        %1974 = vmatpush2.msra.mxu0 %v1973
        %1975 = vmatprep.subr.mxu0 0.0
        %v1976 = vand.u32 %v443, 4294901760
        %1977 = vmatpush2.msra.mxu0 %v1976
        %1978 = vmatprep.subr.mxu0 0.0
        %v1979 = vand.u32 %v442, 4294901760
        %1980 = vmatpush2.msra.mxu0 %v1979
        %1981 = vmatprep.subr.mxu0 0.0
        %v1982 = vand.u32 %v441, 4294901760
        %1983 = vmatpush2.msra.mxu0 %v1982
        %v1984 = vand.u32 %v386, 4294901760
        %v1985 = vsub.f32 %v386, %v1984
        %v1986 = vand.u32 %v1985, 4294901760
        %1987 = vmatprep.mubr.f32.mxu0 %v1986
        %v1988 = vand.u32 %v385, 4294901760
        %v1989 = vsub.f32 %v385, %v1988
        %v1990 = vand.u32 %v1989, 4294901760
        %1991 = vmatmul.mubr.f32.gmra.mxu0 %v1990
        %v1992 = vpop.f32.mrf.mxu0
        %v1993 = vadd.f32 %v1876, %v1992
        %v1994 = vpop.f32.mrf.mxu0
        %v1995 = vand.u32 %v390, 4294901760
        %v1996 = vsub.f32 %v390, %v1995
        %v1997 = vand.u32 %v1996, 4294901760
        %1998 = vmatprep.mubr.f32.mxu0 %v1997
        %v1999 = vand.u32 %v389, 4294901760
        %v2000 = vsub.f32 %v389, %v1999
        %v2001 = vand.u32 %v2000, 4294901760
        %2002 = vmatmul.mubr.f32.gmra.mxu0 %v2001
        %v2003 = vpop.f32.mrf.mxu0
        %v2004 = vadd.f32 %v1885, %v2003
        %v2005 = vpop.f32.mrf.mxu0
        %2006 = vdwg.mxu0
        %2007 = vmatprep.subr.mxu0 0.0
        %v2008 = vand.u32 %v440, 4294901760
        %v2009 = vsub.f32 %v440, %v2008
        %v2010 = vand.u32 %v2009, 4294901760
        %2011 = vmatpush1.msra.mxu0 %v2010
        %2012 = vmatprep.subr.mxu0 0.0
        %v2013 = vand.u32 %v439, 4294901760
        %v2014 = vsub.f32 %v439, %v2013
        %v2015 = vand.u32 %v2014, 4294901760
        %2016 = vmatpush1.msra.mxu0 %v2015
        %2017 = vmatprep.subr.mxu0 0.0
        %v2018 = vand.u32 %v438, 4294901760
        %v2019 = vsub.f32 %v438, %v2018
        %v2020 = vand.u32 %v2019, 4294901760
        %2021 = vmatpush1.msra.mxu0 %v2020
        %2022 = vmatprep.subr.mxu0 0.0
        %v2023 = vand.u32 %v437, 4294901760
        %v2024 = vsub.f32 %v437, %v2023
        %v2025 = vand.u32 %v2024, 4294901760
        %2026 = vmatpush1.msra.mxu0 %v2025
        %2027 = vmatprep.subr.mxu0 0.0
        %v2028 = vand.u32 %v436, 4294901760
        %v2029 = vsub.f32 %v436, %v2028
        %v2030 = vand.u32 %v2029, 4294901760
        %2031 = vmatpush1.msra.mxu0 %v2030
        %2032 = vmatprep.subr.mxu0 0.0
        %v2033 = vand.u32 %v435, 4294901760
        %v2034 = vsub.f32 %v435, %v2033
        %v2035 = vand.u32 %v2034, 4294901760
        %2036 = vmatpush1.msra.mxu0 %v2035
        %2037 = vmatprep.subr.mxu0 0.0
        %v2038 = vand.u32 %v434, 4294901760
        %v2039 = vsub.f32 %v434, %v2038
        %v2040 = vand.u32 %v2039, 4294901760
        %2041 = vmatpush1.msra.mxu0 %v2040
        %2042 = vmatprep.subr.mxu0 0.0
        %v2043 = vand.u32 %v433, 4294901760
        %v2044 = vsub.f32 %v433, %v2043
        %v2045 = vand.u32 %v2044, 4294901760
        %2046 = vmatpush1.msra.mxu0 %v2045
        %2047 = vmatprep.subr.mxu0 0.0
        %v2048 = vand.u32 %v432, 4294901760
        %v2049 = vsub.f32 %v432, %v2048
        %v2050 = vand.u32 %v2049, 4294901760
        %2051 = vmatpush1.msra.mxu0 %v2050
        %2052 = vmatprep.subr.mxu0 0.0
        %v2053 = vand.u32 %v431, 4294901760
        %v2054 = vsub.f32 %v431, %v2053
        %v2055 = vand.u32 %v2054, 4294901760
        %2056 = vmatpush1.msra.mxu0 %v2055
        %2057 = vmatprep.subr.mxu0 0.0
        %v2058 = vand.u32 %v430, 4294901760
        %v2059 = vsub.f32 %v430, %v2058
        %v2060 = vand.u32 %v2059, 4294901760
        %2061 = vmatpush1.msra.mxu0 %v2060
        %2062 = vmatprep.subr.mxu0 0.0
        %v2063 = vand.u32 %v429, 4294901760
        %v2064 = vsub.f32 %v429, %v2063
        %v2065 = vand.u32 %v2064, 4294901760
        %2066 = vmatpush1.msra.mxu0 %v2065
        %2067 = vmatprep.subr.mxu0 0.0
        %v2068 = vand.u32 %v428, 4294901760
        %v2069 = vsub.f32 %v428, %v2068
        %v2070 = vand.u32 %v2069, 4294901760
        %2071 = vmatpush1.msra.mxu0 %v2070
        %2072 = vmatprep.subr.mxu0 0.0
        %v2073 = vand.u32 %v427, 4294901760
        %v2074 = vsub.f32 %v427, %v2073
        %v2075 = vand.u32 %v2074, 4294901760
        %2076 = vmatpush1.msra.mxu0 %v2075
        %2077 = vmatprep.subr.mxu0 0.0
        %v2078 = vand.u32 %v426, 4294901760
        %v2079 = vsub.f32 %v426, %v2078
        %v2080 = vand.u32 %v2079, 4294901760
        %2081 = vmatpush1.msra.mxu0 %v2080
        %2082 = vmatprep.subr.mxu0 0.0
        %v2083 = vand.u32 %v425, 4294901760
        %v2084 = vsub.f32 %v425, %v2083
        %v2085 = vand.u32 %v2084, 4294901760
        %2086 = vmatpush1.msra.mxu0 %v2085
        %2087 = vmatprep.subr.mxu0 0.0
        %v2088 = vand.u32 %v456, 4294901760
        %v2089 = vsub.f32 %v456, %v2088
        %v2090 = vand.u32 %v2089, 4294901760
        %2091 = vmatpush2.msra.mxu0 %v2090
        %2092 = vmatprep.subr.mxu0 0.0
        %v2093 = vand.u32 %v455, 4294901760
        %v2094 = vsub.f32 %v455, %v2093
        %v2095 = vand.u32 %v2094, 4294901760
        %2096 = vmatpush2.msra.mxu0 %v2095
        %2097 = vmatprep.subr.mxu0 0.0
        %v2098 = vand.u32 %v454, 4294901760
        %v2099 = vsub.f32 %v454, %v2098
        %v2100 = vand.u32 %v2099, 4294901760
        %2101 = vmatpush2.msra.mxu0 %v2100
        %2102 = vmatprep.subr.mxu0 0.0
        %v2103 = vand.u32 %v453, 4294901760
        %v2104 = vsub.f32 %v453, %v2103
        %v2105 = vand.u32 %v2104, 4294901760
        %2106 = vmatpush2.msra.mxu0 %v2105
        %2107 = vmatprep.subr.mxu0 0.0
        %v2108 = vand.u32 %v452, 4294901760
        %v2109 = vsub.f32 %v452, %v2108
        %v2110 = vand.u32 %v2109, 4294901760
        %2111 = vmatpush2.msra.mxu0 %v2110
        %2112 = vmatprep.subr.mxu0 0.0
        %v2113 = vand.u32 %v451, 4294901760
        %v2114 = vsub.f32 %v451, %v2113
        %v2115 = vand.u32 %v2114, 4294901760
        %2116 = vmatpush2.msra.mxu0 %v2115
        %2117 = vmatprep.subr.mxu0 0.0
        %v2118 = vand.u32 %v450, 4294901760
        %v2119 = vsub.f32 %v450, %v2118
        %v2120 = vand.u32 %v2119, 4294901760
        %2121 = vmatpush2.msra.mxu0 %v2120
        %2122 = vmatprep.subr.mxu0 0.0
        %v2123 = vand.u32 %v449, 4294901760
        %v2124 = vsub.f32 %v449, %v2123
        %v2125 = vand.u32 %v2124, 4294901760
        %2126 = vmatpush2.msra.mxu0 %v2125
        %2127 = vmatprep.subr.mxu0 0.0
        %v2128 = vand.u32 %v448, 4294901760
        %v2129 = vsub.f32 %v448, %v2128
        %v2130 = vand.u32 %v2129, 4294901760
        %2131 = vmatpush2.msra.mxu0 %v2130
        %2132 = vmatprep.subr.mxu0 0.0
        %v2133 = vand.u32 %v447, 4294901760
        %v2134 = vsub.f32 %v447, %v2133
        %v2135 = vand.u32 %v2134, 4294901760
        %2136 = vmatpush2.msra.mxu0 %v2135
        %2137 = vmatprep.subr.mxu0 0.0
        %v2138 = vand.u32 %v446, 4294901760
        %v2139 = vsub.f32 %v446, %v2138
        %v2140 = vand.u32 %v2139, 4294901760
        %2141 = vmatpush2.msra.mxu0 %v2140
        %2142 = vmatprep.subr.mxu0 0.0
        %v2143 = vand.u32 %v445, 4294901760
        %v2144 = vsub.f32 %v445, %v2143
        %v2145 = vand.u32 %v2144, 4294901760
        %2146 = vmatpush2.msra.mxu0 %v2145
        %2147 = vmatprep.subr.mxu0 0.0
        %v2148 = vand.u32 %v444, 4294901760
        %v2149 = vsub.f32 %v444, %v2148
        %v2150 = vand.u32 %v2149, 4294901760
        %2151 = vmatpush2.msra.mxu0 %v2150
        %2152 = vmatprep.subr.mxu0 0.0
        %v2153 = vand.u32 %v443, 4294901760
        %v2154 = vsub.f32 %v443, %v2153
        %v2155 = vand.u32 %v2154, 4294901760
        %2156 = vmatpush2.msra.mxu0 %v2155
        %2157 = vmatprep.subr.mxu0 0.0
        %v2158 = vand.u32 %v442, 4294901760
        %v2159 = vsub.f32 %v442, %v2158
        %v2160 = vand.u32 %v2159, 4294901760
        %2161 = vmatpush2.msra.mxu0 %v2160
        %2162 = vmatprep.subr.mxu0 0.0
        %v2163 = vand.u32 %v441, 4294901760
        %v2164 = vsub.f32 %v441, %v2163
        %v2165 = vand.u32 %v2164, 4294901760
        %2166 = vmatpush2.msra.mxu0 %v2165
        %v2167 = vand.u32 %v386, 4294901760
        %2168 = vmatprep.mubr.f32.mxu0 %v2167
        %v2169 = vand.u32 %v385, 4294901760
        %2170 = vmatmul.mubr.f32.gmra.mxu0 %v2169
        %v2171 = vpop.f32.mrf.mxu0
        %v2172 = vadd.f32 %v1993, %v2171
        %v2173 = vpop.f32.mrf.mxu0
        %v2174 = vand.u32 %v390, 4294901760
        %2175 = vmatprep.mubr.f32.mxu0 %v2174
        %v2176 = vand.u32 %v389, 4294901760
        %2177 = vmatmul.mubr.f32.gmra.mxu0 %v2176
        %v2178 = vpop.f32.mrf.mxu0
        %v2179 = vadd.f32 %v2004, %v2178
        %v2180 = vpop.f32.mrf.mxu0
        %2181 = vdwg.mxu0
        %2182 = vmatprep.subr.mxu0 0.0
        %v2183 = vand.u32 %v440, 4294901760
        %2184 = vmatpush1.msra.mxu0 %v2183
        %2185 = vmatprep.subr.mxu0 0.0
        %v2186 = vand.u32 %v439, 4294901760
        %2187 = vmatpush1.msra.mxu0 %v2186
        %2188 = vmatprep.subr.mxu0 0.0
        %v2189 = vand.u32 %v438, 4294901760
        %2190 = vmatpush1.msra.mxu0 %v2189
        %2191 = vmatprep.subr.mxu0 0.0
        %v2192 = vand.u32 %v437, 4294901760
        %2193 = vmatpush1.msra.mxu0 %v2192
        %2194 = vmatprep.subr.mxu0 0.0
        %v2195 = vand.u32 %v436, 4294901760
        %2196 = vmatpush1.msra.mxu0 %v2195
        %2197 = vmatprep.subr.mxu0 0.0
        %v2198 = vand.u32 %v435, 4294901760
        %2199 = vmatpush1.msra.mxu0 %v2198
        %2200 = vmatprep.subr.mxu0 0.0
        %v2201 = vand.u32 %v434, 4294901760
        %2202 = vmatpush1.msra.mxu0 %v2201
        %2203 = vmatprep.subr.mxu0 0.0
        %v2204 = vand.u32 %v433, 4294901760
        %2205 = vmatpush1.msra.mxu0 %v2204
        %2206 = vmatprep.subr.mxu0 0.0
        %v2207 = vand.u32 %v432, 4294901760
        %2208 = vmatpush1.msra.mxu0 %v2207
        %2209 = vmatprep.subr.mxu0 0.0
        %v2210 = vand.u32 %v431, 4294901760
        %2211 = vmatpush1.msra.mxu0 %v2210
        %2212 = vmatprep.subr.mxu0 0.0
        %v2213 = vand.u32 %v430, 4294901760
        %2214 = vmatpush1.msra.mxu0 %v2213
        %2215 = vmatprep.subr.mxu0 0.0
        %v2216 = vand.u32 %v429, 4294901760
        %2217 = vmatpush1.msra.mxu0 %v2216
        %2218 = vmatprep.subr.mxu0 0.0
        %v2219 = vand.u32 %v428, 4294901760
        %2220 = vmatpush1.msra.mxu0 %v2219
        %2221 = vmatprep.subr.mxu0 0.0
        %v2222 = vand.u32 %v427, 4294901760
        %2223 = vmatpush1.msra.mxu0 %v2222
        %2224 = vmatprep.subr.mxu0 0.0
        %v2225 = vand.u32 %v426, 4294901760
        %2226 = vmatpush1.msra.mxu0 %v2225
        %2227 = vmatprep.subr.mxu0 0.0
        %v2228 = vand.u32 %v425, 4294901760
        %2229 = vmatpush1.msra.mxu0 %v2228
        %2230 = vmatprep.subr.mxu0 0.0
        %v2231 = vand.u32 %v456, 4294901760
        %2232 = vmatpush2.msra.mxu0 %v2231
        %2233 = vmatprep.subr.mxu0 0.0
        %v2234 = vand.u32 %v455, 4294901760
        %2235 = vmatpush2.msra.mxu0 %v2234
        %2236 = vmatprep.subr.mxu0 0.0
        %v2237 = vand.u32 %v454, 4294901760
        %2238 = vmatpush2.msra.mxu0 %v2237
        %2239 = vmatprep.subr.mxu0 0.0
        %v2240 = vand.u32 %v453, 4294901760
        %2241 = vmatpush2.msra.mxu0 %v2240
        %2242 = vmatprep.subr.mxu0 0.0
        %v2243 = vand.u32 %v452, 4294901760
        %2244 = vmatpush2.msra.mxu0 %v2243
        %2245 = vmatprep.subr.mxu0 0.0
        %v2246 = vand.u32 %v451, 4294901760
        %2247 = vmatpush2.msra.mxu0 %v2246
        %2248 = vmatprep.subr.mxu0 0.0
        %v2249 = vand.u32 %v450, 4294901760
        %2250 = vmatpush2.msra.mxu0 %v2249
        %2251 = vmatprep.subr.mxu0 0.0
        %v2252 = vand.u32 %v449, 4294901760
        %2253 = vmatpush2.msra.mxu0 %v2252
        %2254 = vmatprep.subr.mxu0 0.0
        %v2255 = vand.u32 %v448, 4294901760
        %2256 = vmatpush2.msra.mxu0 %v2255
        %2257 = vmatprep.subr.mxu0 0.0
        %v2258 = vand.u32 %v447, 4294901760
        %2259 = vmatpush2.msra.mxu0 %v2258
        %2260 = vmatprep.subr.mxu0 0.0
        %v2261 = vand.u32 %v446, 4294901760
        %2262 = vmatpush2.msra.mxu0 %v2261
        %2263 = vmatprep.subr.mxu0 0.0
        %v2264 = vand.u32 %v445, 4294901760
        %2265 = vmatpush2.msra.mxu0 %v2264
        %2266 = vmatprep.subr.mxu0 0.0
        %v2267 = vand.u32 %v444, 4294901760
        %2268 = vmatpush2.msra.mxu0 %v2267
        %2269 = vmatprep.subr.mxu0 0.0
        %v2270 = vand.u32 %v443, 4294901760
        %2271 = vmatpush2.msra.mxu0 %v2270
        %2272 = vmatprep.subr.mxu0 0.0
        %v2273 = vand.u32 %v442, 4294901760
        %2274 = vmatpush2.msra.mxu0 %v2273
        %2275 = vmatprep.subr.mxu0 0.0
        %v2276 = vand.u32 %v441, 4294901760
        %2277 = vmatpush2.msra.mxu0 %v2276
        %v2278 = vand.u32 %v386, 4294901760
        %2279 = vmatprep.mubr.f32.mxu0 %v2278
        %v2280 = vand.u32 %v385, 4294901760
        %2281 = vmatmul.mubr.f32.gmra.mxu0 %v2280
        %v2282 = vpop.f32.mrf.mxu0
        %v2283 = vadd.f32 %v2172, %v2282
        %v2284 = vpop.f32.mrf.mxu0
        %v2285 = vand.u32 %v390, 4294901760
        %2286 = vmatprep.mubr.f32.mxu0 %v2285
        %v2287 = vand.u32 %v389, 4294901760
        %2288 = vmatmul.mubr.f32.gmra.mxu0 %v2287
        %v2289 = vpop.f32.mrf.mxu0
        %v2290 = vadd.f32 %v2179, %v2289
        %v2291 = vpop.f32.mrf.mxu0
        %2292 = vdwg.mxu0
        %v2293 = vrsqrt.pop %v391
        %v2294 = vmul.f32 %v391, %v2293
        %vm2295 = vcmp.eq.f32.partialorder %v391, inf
        %v2296 = vsel %vm2295, %v391, %v2294
        %vm2297 = vcmp.eq.f32.partialorder %v391, 0.0
        %v2298 = vand.u32 %v391, 2147483648
        %v2299 = vsel %vm2297, %v2298, %v2296
        %v2300 = vrsqrt.pop %v392
        %v2301 = vmul.f32 %v392, %v2300
        %vm2302 = vcmp.eq.f32.partialorder %v392, inf
        %v2303 = vsel %vm2302, %v392, %v2301
        %vm2304 = vcmp.eq.f32.partialorder %v392, 0.0
        %v2305 = vand.u32 %v392, 2147483648
        %v2306 = vsel %vm2304, %v2305, %v2303
        %v2307 = vmax.f32 %v2283, 1e-12
        %v2308 = vmax.f32 %v2290, 1e-12
        %v2309 = vrsqrt.pop %v2307
        %v2310 = vrsqrt.pop %v2308
        %v2311 = vmul.f32 %v2299, %v2309
        %v2312 = vmul.f32 %v2306, %v2310
        %v2313 = vmin.f32 %v2311, 1.0
        %v2314 = vmin.f32 %v2312, 1.0
        %v2315 = vld [vmem:[%s1] sm:$0xff]
        %v2316 = vld [vmem:[%s1 + $0x8] sm:$0xff]
        %v2319 = vcombine.high %v2315, %v2315
        %v2320 = vcombine.high %v2316, %v2316
        %vm2321 = vcmask 31744
        %v2323 = vsel %vm2321, %v2313, 0
        %v2326 = vsel %vm2321, %v2314, 0
        %vm2328 = vcmask 1043456
        %v2329 = vsel %vm2328, %v2315, 0
        %v2331 = vsel %vm2328, %v2319, 0
        %v2333 = vsel %vm2328, %v2316, 0
        %v2335 = vsel %vm2328, %v2320, 0
        %2337 = vmatprep.subr.mxu0 0.0
        %2338 = vmatpush1.msra.mxu0 0.0
        %2339 = vmatprep.subr.mxu0 0.0
        %2340 = vmatpush1.msra.mxu0 0.0
        %2341 = vmatprep.subr.mxu0 0.0
        %2342 = vmatpush1.msra.mxu0 0.0
        %2343 = vmatprep.subr.mxu0 0.0
        %2344 = vmatpush1.msra.mxu0 0.0
        %2345 = vmatprep.subr.mxu0 0.0
        %2346 = vmatpush1.msra.mxu0 0.0
        %2347 = vmatprep.subr.mxu0 0.0
        %2348 = vmatpush1.msra.mxu0 0.0
        %2349 = vmatprep.subr.mxu0 0.0
        %2350 = vmatpush1.msra.mxu0 0.0
        %2351 = vmatprep.subr.mxu0 0.0
        %2352 = vmatpush1.msra.mxu0 0.0
        %2353 = vmatprep.subr.mxu0 0.0
        %2354 = vmatpush1.msra.mxu0 0.0
        %2355 = vmatprep.subr.mxu0 0.0
        %2356 = vmatpush1.msra.mxu0 0.0
        %2357 = vmatprep.subr.mxu0 0.0
        %2358 = vmatpush1.msra.mxu0 0.0
        %2359 = vmatprep.subr.mxu0 0.0
        %2360 = vmatpush1.msra.mxu0 0.0
        %2361 = vmatprep.subr.mxu0 0.0
        %2362 = vmatpush1.msra.mxu0 0.0
        %2363 = vmatprep.subr.mxu0 0.0
        %2364 = vmatpush1.msra.mxu0 0.0
        %2365 = vmatprep.subr.mxu0 0.0
        %2366 = vmatpush1.msra.mxu0 0.0
        %v2367 = vand.u32 %v2331, 4294901760
        %2368 = vmatprep.subr.mxu0 %v2367
        %v2369 = vand.u32 %v2329, 4294901760
        %2370 = vmatpush1.msra.mxu0 %v2369
        %2371 = vmatprep.subr.mxu0 0.0
        %2372 = vmatpush2.msra.mxu0 0.0
        %2373 = vmatprep.subr.mxu0 0.0
        %2374 = vmatpush2.msra.mxu0 0.0
        %2375 = vmatprep.subr.mxu0 0.0
        %2376 = vmatpush2.msra.mxu0 0.0
        %2377 = vmatprep.subr.mxu0 0.0
        %2378 = vmatpush2.msra.mxu0 0.0
        %2379 = vmatprep.subr.mxu0 0.0
        %2380 = vmatpush2.msra.mxu0 0.0
        %2381 = vmatprep.subr.mxu0 0.0
        %2382 = vmatpush2.msra.mxu0 0.0
        %2383 = vmatprep.subr.mxu0 0.0
        %2384 = vmatpush2.msra.mxu0 0.0
        %2385 = vmatprep.subr.mxu0 0.0
        %2386 = vmatpush2.msra.mxu0 0.0
        %2387 = vmatprep.subr.mxu0 0.0
        %2388 = vmatpush2.msra.mxu0 0.0
        %2389 = vmatprep.subr.mxu0 0.0
        %2390 = vmatpush2.msra.mxu0 0.0
        %2391 = vmatprep.subr.mxu0 0.0
        %2392 = vmatpush2.msra.mxu0 0.0
        %2393 = vmatprep.subr.mxu0 0.0
        %2394 = vmatpush2.msra.mxu0 0.0
        %2395 = vmatprep.subr.mxu0 0.0
        %2396 = vmatpush2.msra.mxu0 0.0
        %2397 = vmatprep.subr.mxu0 0.0
        %2398 = vmatpush2.msra.mxu0 0.0
        %2399 = vmatprep.subr.mxu0 0.0
        %2400 = vmatpush2.msra.mxu0 0.0
        %2401 = vmatprep.subr.mxu0 0.0
        %2402 = vmatpush2.msra.mxu0 0.0
        %2403 = vmatprep.mubr.f32.mxu0 0.0
        %v2404 = vand.u32 %v2323, 4294901760
        %v2405 = vsub.f32 %v2323, %v2404
        %v2406 = vand.u32 %v2405, 4294901760
        %v2407 = vsub.f32 %v2405, %v2406
        %v2408 = vand.u32 %v2407, 4294901760
        %2409 = vmatmul.mubr.f32.gmra.mxu0 %v2408
        %v2410 = vpop.f32.mrf.mxu0
        %v2411 = vadd.f32 0.0, %v2410
        %v2412 = vpop.f32.mrf.mxu0
        %v2413 = vadd.f32 0.0, %v2412
        %2414 = vmatprep.mubr.f32.mxu0 0.0
        %v2415 = vand.u32 %v2326, 4294901760
        %v2416 = vsub.f32 %v2326, %v2415
        %v2417 = vand.u32 %v2416, 4294901760
        %v2418 = vsub.f32 %v2416, %v2417
        %v2419 = vand.u32 %v2418, 4294901760
        %2420 = vmatmul.mubr.f32.gmra.mxu0 %v2419
        %v2421 = vpop.f32.mrf.mxu0
        %v2422 = vadd.f32 0.0, %v2421
        %v2423 = vpop.f32.mrf.mxu0
        %v2424 = vadd.f32 0.0, %v2423
        %2425 = vdwg.mxu0
        %2426 = vmatprep.subr.mxu0 0.0
        %2427 = vmatpush1.msra.mxu0 0.0
        %2428 = vmatprep.subr.mxu0 0.0
        %2429 = vmatpush1.msra.mxu0 0.0
        %2430 = vmatprep.subr.mxu0 0.0
        %2431 = vmatpush1.msra.mxu0 0.0
        %2432 = vmatprep.subr.mxu0 0.0
        %2433 = vmatpush1.msra.mxu0 0.0
        %2434 = vmatprep.subr.mxu0 0.0
        %2435 = vmatpush1.msra.mxu0 0.0
        %2436 = vmatprep.subr.mxu0 0.0
        %2437 = vmatpush1.msra.mxu0 0.0
        %2438 = vmatprep.subr.mxu0 0.0
        %2439 = vmatpush1.msra.mxu0 0.0
        %2440 = vmatprep.subr.mxu0 0.0
        %2441 = vmatpush1.msra.mxu0 0.0
        %2442 = vmatprep.subr.mxu0 0.0
        %2443 = vmatpush1.msra.mxu0 0.0
        %2444 = vmatprep.subr.mxu0 0.0
        %2445 = vmatpush1.msra.mxu0 0.0
        %2446 = vmatprep.subr.mxu0 0.0
        %2447 = vmatpush1.msra.mxu0 0.0
        %2448 = vmatprep.subr.mxu0 0.0
        %2449 = vmatpush1.msra.mxu0 0.0
        %2450 = vmatprep.subr.mxu0 0.0
        %2451 = vmatpush1.msra.mxu0 0.0
        %2452 = vmatprep.subr.mxu0 0.0
        %2453 = vmatpush1.msra.mxu0 0.0
        %2454 = vmatprep.subr.mxu0 0.0
        %2455 = vmatpush1.msra.mxu0 0.0
        %v2456 = vand.u32 %v2331, 4294901760
        %v2457 = vsub.f32 %v2331, %v2456
        %v2458 = vand.u32 %v2457, 4294901760
        %v2459 = vsub.f32 %v2457, %v2458
        %v2460 = vand.u32 %v2459, 4294901760
        %2461 = vmatprep.subr.mxu0 %v2460
        %v2462 = vand.u32 %v2329, 4294901760
        %v2463 = vsub.f32 %v2329, %v2462
        %v2464 = vand.u32 %v2463, 4294901760
        %v2465 = vsub.f32 %v2463, %v2464
        %v2466 = vand.u32 %v2465, 4294901760
        %2467 = vmatpush1.msra.mxu0 %v2466
        %2468 = vmatprep.subr.mxu0 0.0
        %2469 = vmatpush2.msra.mxu0 0.0
        %2470 = vmatprep.subr.mxu0 0.0
        %2471 = vmatpush2.msra.mxu0 0.0
        %2472 = vmatprep.subr.mxu0 0.0
        %2473 = vmatpush2.msra.mxu0 0.0
        %2474 = vmatprep.subr.mxu0 0.0
        %2475 = vmatpush2.msra.mxu0 0.0
        %2476 = vmatprep.subr.mxu0 0.0
        %2477 = vmatpush2.msra.mxu0 0.0
        %2478 = vmatprep.subr.mxu0 0.0
        %2479 = vmatpush2.msra.mxu0 0.0
        %2480 = vmatprep.subr.mxu0 0.0
        %2481 = vmatpush2.msra.mxu0 0.0
        %2482 = vmatprep.subr.mxu0 0.0
        %2483 = vmatpush2.msra.mxu0 0.0
        %2484 = vmatprep.subr.mxu0 0.0
        %2485 = vmatpush2.msra.mxu0 0.0
        %2486 = vmatprep.subr.mxu0 0.0
        %2487 = vmatpush2.msra.mxu0 0.0
        %2488 = vmatprep.subr.mxu0 0.0
        %2489 = vmatpush2.msra.mxu0 0.0
        %2490 = vmatprep.subr.mxu0 0.0
        %2491 = vmatpush2.msra.mxu0 0.0
        %2492 = vmatprep.subr.mxu0 0.0
        %2493 = vmatpush2.msra.mxu0 0.0
        %2494 = vmatprep.subr.mxu0 0.0
        %2495 = vmatpush2.msra.mxu0 0.0
        %2496 = vmatprep.subr.mxu0 0.0
        %2497 = vmatpush2.msra.mxu0 0.0
        %2498 = vmatprep.subr.mxu0 0.0
        %2499 = vmatpush2.msra.mxu0 0.0
        %2500 = vmatprep.mubr.f32.mxu0 0.0
        %v2501 = vand.u32 %v2323, 4294901760
        %2502 = vmatmul.mubr.f32.gmra.mxu0 %v2501
        %v2503 = vpop.f32.mrf.mxu0
        %v2504 = vadd.f32 %v2411, %v2503
        %v2505 = vpop.f32.mrf.mxu0
        %v2506 = vadd.f32 %v2413, %v2505
        %2507 = vmatprep.mubr.f32.mxu0 0.0
        %v2508 = vand.u32 %v2326, 4294901760
        %2509 = vmatmul.mubr.f32.gmra.mxu0 %v2508
        %v2510 = vpop.f32.mrf.mxu0
        %v2511 = vadd.f32 %v2422, %v2510
        %v2512 = vpop.f32.mrf.mxu0
        %v2513 = vadd.f32 %v2424, %v2512
        %2514 = vdwg.mxu0
        %2515 = vmatprep.subr.mxu0 0.0
        %2516 = vmatpush1.msra.mxu0 0.0
        %2517 = vmatprep.subr.mxu0 0.0
        %2518 = vmatpush1.msra.mxu0 0.0
        %2519 = vmatprep.subr.mxu0 0.0
        %2520 = vmatpush1.msra.mxu0 0.0
        %2521 = vmatprep.subr.mxu0 0.0
        %2522 = vmatpush1.msra.mxu0 0.0
        %2523 = vmatprep.subr.mxu0 0.0
        %2524 = vmatpush1.msra.mxu0 0.0
        %2525 = vmatprep.subr.mxu0 0.0
        %2526 = vmatpush1.msra.mxu0 0.0
        %2527 = vmatprep.subr.mxu0 0.0
        %2528 = vmatpush1.msra.mxu0 0.0
        %2529 = vmatprep.subr.mxu0 0.0
        %2530 = vmatpush1.msra.mxu0 0.0
        %2531 = vmatprep.subr.mxu0 0.0
        %2532 = vmatpush1.msra.mxu0 0.0
        %2533 = vmatprep.subr.mxu0 0.0
        %2534 = vmatpush1.msra.mxu0 0.0
        %2535 = vmatprep.subr.mxu0 0.0
        %2536 = vmatpush1.msra.mxu0 0.0
        %2537 = vmatprep.subr.mxu0 0.0
        %2538 = vmatpush1.msra.mxu0 0.0
        %2539 = vmatprep.subr.mxu0 0.0
        %2540 = vmatpush1.msra.mxu0 0.0
        %2541 = vmatprep.subr.mxu0 0.0
        %2542 = vmatpush1.msra.mxu0 0.0
        %2543 = vmatprep.subr.mxu0 0.0
        %2544 = vmatpush1.msra.mxu0 0.0
        %v2545 = vand.u32 %v2331, 4294901760
        %v2546 = vsub.f32 %v2331, %v2545
        %2547 = vmatprep.subr.mxu0 %v2546
        %v2548 = vand.u32 %v2329, 4294901760
        %v2549 = vsub.f32 %v2329, %v2548
        %2550 = vmatpush1.msra.mxu0 %v2549
        %2551 = vmatprep.subr.mxu0 0.0
        %2552 = vmatpush2.msra.mxu0 0.0
        %2553 = vmatprep.subr.mxu0 0.0
        %2554 = vmatpush2.msra.mxu0 0.0
        %2555 = vmatprep.subr.mxu0 0.0
        %2556 = vmatpush2.msra.mxu0 0.0
        %2557 = vmatprep.subr.mxu0 0.0
        %2558 = vmatpush2.msra.mxu0 0.0
        %2559 = vmatprep.subr.mxu0 0.0
        %2560 = vmatpush2.msra.mxu0 0.0
        %2561 = vmatprep.subr.mxu0 0.0
        %2562 = vmatpush2.msra.mxu0 0.0
        %2563 = vmatprep.subr.mxu0 0.0
        %2564 = vmatpush2.msra.mxu0 0.0
        %2565 = vmatprep.subr.mxu0 0.0
        %2566 = vmatpush2.msra.mxu0 0.0
        %2567 = vmatprep.subr.mxu0 0.0
        %2568 = vmatpush2.msra.mxu0 0.0
        %2569 = vmatprep.subr.mxu0 0.0
        %2570 = vmatpush2.msra.mxu0 0.0
        %2571 = vmatprep.subr.mxu0 0.0
        %2572 = vmatpush2.msra.mxu0 0.0
        %2573 = vmatprep.subr.mxu0 0.0
        %2574 = vmatpush2.msra.mxu0 0.0
        %2575 = vmatprep.subr.mxu0 0.0
        %2576 = vmatpush2.msra.mxu0 0.0
        %2577 = vmatprep.subr.mxu0 0.0
        %2578 = vmatpush2.msra.mxu0 0.0
        %2579 = vmatprep.subr.mxu0 0.0
        %2580 = vmatpush2.msra.mxu0 0.0
        %2581 = vmatprep.subr.mxu0 0.0
        %2582 = vmatpush2.msra.mxu0 0.0
        %2583 = vmatprep.mubr.f32.mxu0 0.0
        %v2584 = vand.u32 %v2323, 4294901760
        %v2585 = vsub.f32 %v2323, %v2584
        %2586 = vmatmul.mubr.f32.gmra.mxu0 %v2585
        %v2587 = vpop.f32.mrf.mxu0
        %v2588 = vadd.f32 %v2504, %v2587
        %v2589 = vpop.f32.mrf.mxu0
        %v2590 = vadd.f32 %v2506, %v2589
        %2591 = vmatprep.mubr.f32.mxu0 0.0
        %v2592 = vand.u32 %v2326, 4294901760
        %v2593 = vsub.f32 %v2326, %v2592
        %2594 = vmatmul.mubr.f32.gmra.mxu0 %v2593
        %v2595 = vpop.f32.mrf.mxu0
        %v2596 = vadd.f32 %v2511, %v2595
        %v2597 = vpop.f32.mrf.mxu0
        %v2598 = vadd.f32 %v2513, %v2597
        %2599 = vdwg.mxu0
        %2600 = vmatprep.subr.mxu0 0.0
        %2601 = vmatpush1.msra.mxu0 0.0
        %2602 = vmatprep.subr.mxu0 0.0
        %2603 = vmatpush1.msra.mxu0 0.0
        %2604 = vmatprep.subr.mxu0 0.0
        %2605 = vmatpush1.msra.mxu0 0.0
        %2606 = vmatprep.subr.mxu0 0.0
        %2607 = vmatpush1.msra.mxu0 0.0
        %2608 = vmatprep.subr.mxu0 0.0
        %2609 = vmatpush1.msra.mxu0 0.0
        %2610 = vmatprep.subr.mxu0 0.0
        %2611 = vmatpush1.msra.mxu0 0.0
        %2612 = vmatprep.subr.mxu0 0.0
        %2613 = vmatpush1.msra.mxu0 0.0
        %2614 = vmatprep.subr.mxu0 0.0
        %2615 = vmatpush1.msra.mxu0 0.0
        %2616 = vmatprep.subr.mxu0 0.0
        %2617 = vmatpush1.msra.mxu0 0.0
        %2618 = vmatprep.subr.mxu0 0.0
        %2619 = vmatpush1.msra.mxu0 0.0
        %2620 = vmatprep.subr.mxu0 0.0
        %2621 = vmatpush1.msra.mxu0 0.0
        %2622 = vmatprep.subr.mxu0 0.0
        %2623 = vmatpush1.msra.mxu0 0.0
        %2624 = vmatprep.subr.mxu0 0.0
        %2625 = vmatpush1.msra.mxu0 0.0
        %2626 = vmatprep.subr.mxu0 0.0
        %2627 = vmatpush1.msra.mxu0 0.0
        %2628 = vmatprep.subr.mxu0 0.0
        %2629 = vmatpush1.msra.mxu0 0.0
        %v2630 = vand.u32 %v2331, 4294901760
        %2631 = vmatprep.subr.mxu0 %v2630
        %v2632 = vand.u32 %v2329, 4294901760
        %2633 = vmatpush1.msra.mxu0 %v2632
        %2634 = vmatprep.subr.mxu0 0.0
        %2635 = vmatpush2.msra.mxu0 0.0
        %2636 = vmatprep.subr.mxu0 0.0
        %2637 = vmatpush2.msra.mxu0 0.0
        %2638 = vmatprep.subr.mxu0 0.0
        %2639 = vmatpush2.msra.mxu0 0.0
        %2640 = vmatprep.subr.mxu0 0.0
        %2641 = vmatpush2.msra.mxu0 0.0
        %2642 = vmatprep.subr.mxu0 0.0
        %2643 = vmatpush2.msra.mxu0 0.0
        %2644 = vmatprep.subr.mxu0 0.0
        %2645 = vmatpush2.msra.mxu0 0.0
        %2646 = vmatprep.subr.mxu0 0.0
        %2647 = vmatpush2.msra.mxu0 0.0
        %2648 = vmatprep.subr.mxu0 0.0
        %2649 = vmatpush2.msra.mxu0 0.0
        %2650 = vmatprep.subr.mxu0 0.0
        %2651 = vmatpush2.msra.mxu0 0.0
        %2652 = vmatprep.subr.mxu0 0.0
        %2653 = vmatpush2.msra.mxu0 0.0
        %2654 = vmatprep.subr.mxu0 0.0
        %2655 = vmatpush2.msra.mxu0 0.0
        %2656 = vmatprep.subr.mxu0 0.0
        %2657 = vmatpush2.msra.mxu0 0.0
        %2658 = vmatprep.subr.mxu0 0.0
        %2659 = vmatpush2.msra.mxu0 0.0
        %2660 = vmatprep.subr.mxu0 0.0
        %2661 = vmatpush2.msra.mxu0 0.0
        %2662 = vmatprep.subr.mxu0 0.0
        %2663 = vmatpush2.msra.mxu0 0.0
        %2664 = vmatprep.subr.mxu0 0.0
        %2665 = vmatpush2.msra.mxu0 0.0
        %2666 = vmatprep.mubr.f32.mxu0 0.0
        %v2667 = vand.u32 %v2323, 4294901760
        %v2668 = vsub.f32 %v2323, %v2667
        %v2669 = vand.u32 %v2668, 4294901760
        %2670 = vmatmul.mubr.f32.gmra.mxu0 %v2669
        %v2671 = vpop.f32.mrf.mxu0
        %v2672 = vadd.f32 %v2588, %v2671
        %v2673 = vpop.f32.mrf.mxu0
        %v2674 = vadd.f32 %v2590, %v2673
        %2675 = vmatprep.mubr.f32.mxu0 0.0
        %v2676 = vand.u32 %v2326, 4294901760
        %v2677 = vsub.f32 %v2326, %v2676
        %v2678 = vand.u32 %v2677, 4294901760
        %2679 = vmatmul.mubr.f32.gmra.mxu0 %v2678
        %v2680 = vpop.f32.mrf.mxu0
        %v2681 = vadd.f32 %v2596, %v2680
        %v2682 = vpop.f32.mrf.mxu0
        %v2683 = vadd.f32 %v2598, %v2682
        %2684 = vdwg.mxu0
        %2685 = vmatprep.subr.mxu0 0.0
        %2686 = vmatpush1.msra.mxu0 0.0
        %2687 = vmatprep.subr.mxu0 0.0
        %2688 = vmatpush1.msra.mxu0 0.0
        %2689 = vmatprep.subr.mxu0 0.0
        %2690 = vmatpush1.msra.mxu0 0.0
        %2691 = vmatprep.subr.mxu0 0.0
        %2692 = vmatpush1.msra.mxu0 0.0
        %2693 = vmatprep.subr.mxu0 0.0
        %2694 = vmatpush1.msra.mxu0 0.0
        %2695 = vmatprep.subr.mxu0 0.0
        %2696 = vmatpush1.msra.mxu0 0.0
        %2697 = vmatprep.subr.mxu0 0.0
        %2698 = vmatpush1.msra.mxu0 0.0
        %2699 = vmatprep.subr.mxu0 0.0
        %2700 = vmatpush1.msra.mxu0 0.0
        %2701 = vmatprep.subr.mxu0 0.0
        %2702 = vmatpush1.msra.mxu0 0.0
        %2703 = vmatprep.subr.mxu0 0.0
        %2704 = vmatpush1.msra.mxu0 0.0
        %2705 = vmatprep.subr.mxu0 0.0
        %2706 = vmatpush1.msra.mxu0 0.0
        %2707 = vmatprep.subr.mxu0 0.0
        %2708 = vmatpush1.msra.mxu0 0.0
        %2709 = vmatprep.subr.mxu0 0.0
        %2710 = vmatpush1.msra.mxu0 0.0
        %2711 = vmatprep.subr.mxu0 0.0
        %2712 = vmatpush1.msra.mxu0 0.0
        %2713 = vmatprep.subr.mxu0 0.0
        %2714 = vmatpush1.msra.mxu0 0.0
        %v2715 = vand.u32 %v2331, 4294901760
        %v2716 = vsub.f32 %v2331, %v2715
        %v2717 = vand.u32 %v2716, 4294901760
        %2718 = vmatprep.subr.mxu0 %v2717
        %v2719 = vand.u32 %v2329, 4294901760
        %v2720 = vsub.f32 %v2329, %v2719
        %v2721 = vand.u32 %v2720, 4294901760
        %2722 = vmatpush1.msra.mxu0 %v2721
        %2723 = vmatprep.subr.mxu0 0.0
        %2724 = vmatpush2.msra.mxu0 0.0
        %2725 = vmatprep.subr.mxu0 0.0
        %2726 = vmatpush2.msra.mxu0 0.0
        %2727 = vmatprep.subr.mxu0 0.0
        %2728 = vmatpush2.msra.mxu0 0.0
        %2729 = vmatprep.subr.mxu0 0.0
        %2730 = vmatpush2.msra.mxu0 0.0
        %2731 = vmatprep.subr.mxu0 0.0
        %2732 = vmatpush2.msra.mxu0 0.0
        %2733 = vmatprep.subr.mxu0 0.0
        %2734 = vmatpush2.msra.mxu0 0.0
        %2735 = vmatprep.subr.mxu0 0.0
        %2736 = vmatpush2.msra.mxu0 0.0
        %2737 = vmatprep.subr.mxu0 0.0
        %2738 = vmatpush2.msra.mxu0 0.0
        %2739 = vmatprep.subr.mxu0 0.0
        %2740 = vmatpush2.msra.mxu0 0.0
        %2741 = vmatprep.subr.mxu0 0.0
        %2742 = vmatpush2.msra.mxu0 0.0
        %2743 = vmatprep.subr.mxu0 0.0
        %2744 = vmatpush2.msra.mxu0 0.0
        %2745 = vmatprep.subr.mxu0 0.0
        %2746 = vmatpush2.msra.mxu0 0.0
        %2747 = vmatprep.subr.mxu0 0.0
        %2748 = vmatpush2.msra.mxu0 0.0
        %2749 = vmatprep.subr.mxu0 0.0
        %2750 = vmatpush2.msra.mxu0 0.0
        %2751 = vmatprep.subr.mxu0 0.0
        %2752 = vmatpush2.msra.mxu0 0.0
        %2753 = vmatprep.subr.mxu0 0.0
        %2754 = vmatpush2.msra.mxu0 0.0
        %2755 = vmatprep.mubr.f32.mxu0 0.0
        %v2756 = vand.u32 %v2323, 4294901760
        %2757 = vmatmul.mubr.f32.gmra.mxu0 %v2756
        %v2758 = vpop.f32.mrf.mxu0
        %v2759 = vadd.f32 %v2672, %v2758
        %v2760 = vpop.f32.mrf.mxu0
        %v2761 = vadd.f32 %v2674, %v2760
        %2762 = vmatprep.mubr.f32.mxu0 0.0
        %v2763 = vand.u32 %v2326, 4294901760
        %2764 = vmatmul.mubr.f32.gmra.mxu0 %v2763
        %v2765 = vpop.f32.mrf.mxu0
        %v2766 = vadd.f32 %v2681, %v2765
        %v2767 = vpop.f32.mrf.mxu0
        %v2768 = vadd.f32 %v2683, %v2767
        %2769 = vdwg.mxu0
        %2770 = vmatprep.subr.mxu0 0.0
        %2771 = vmatpush1.msra.mxu0 0.0
        %2772 = vmatprep.subr.mxu0 0.0
        %2773 = vmatpush1.msra.mxu0 0.0
        %2774 = vmatprep.subr.mxu0 0.0
        %2775 = vmatpush1.msra.mxu0 0.0
        %2776 = vmatprep.subr.mxu0 0.0
        %2777 = vmatpush1.msra.mxu0 0.0
        %2778 = vmatprep.subr.mxu0 0.0
        %2779 = vmatpush1.msra.mxu0 0.0
        %2780 = vmatprep.subr.mxu0 0.0
        %2781 = vmatpush1.msra.mxu0 0.0
        %2782 = vmatprep.subr.mxu0 0.0
        %2783 = vmatpush1.msra.mxu0 0.0
        %2784 = vmatprep.subr.mxu0 0.0
        %2785 = vmatpush1.msra.mxu0 0.0
        %2786 = vmatprep.subr.mxu0 0.0
        %2787 = vmatpush1.msra.mxu0 0.0
        %2788 = vmatprep.subr.mxu0 0.0
        %2789 = vmatpush1.msra.mxu0 0.0
        %2790 = vmatprep.subr.mxu0 0.0
        %2791 = vmatpush1.msra.mxu0 0.0
        %2792 = vmatprep.subr.mxu0 0.0
        %2793 = vmatpush1.msra.mxu0 0.0
        %2794 = vmatprep.subr.mxu0 0.0
        %2795 = vmatpush1.msra.mxu0 0.0
        %2796 = vmatprep.subr.mxu0 0.0
        %2797 = vmatpush1.msra.mxu0 0.0
        %2798 = vmatprep.subr.mxu0 0.0
        %2799 = vmatpush1.msra.mxu0 0.0
        %v2800 = vand.u32 %v2331, 4294901760
        %2801 = vmatprep.subr.mxu0 %v2800
        %v2802 = vand.u32 %v2329, 4294901760
        %2803 = vmatpush1.msra.mxu0 %v2802
        %2804 = vmatprep.subr.mxu0 0.0
        %2805 = vmatpush2.msra.mxu0 0.0
        %2806 = vmatprep.subr.mxu0 0.0
        %2807 = vmatpush2.msra.mxu0 0.0
        %2808 = vmatprep.subr.mxu0 0.0
        %2809 = vmatpush2.msra.mxu0 0.0
        %2810 = vmatprep.subr.mxu0 0.0
        %2811 = vmatpush2.msra.mxu0 0.0
        %2812 = vmatprep.subr.mxu0 0.0
        %2813 = vmatpush2.msra.mxu0 0.0
        %2814 = vmatprep.subr.mxu0 0.0
        %2815 = vmatpush2.msra.mxu0 0.0
        %2816 = vmatprep.subr.mxu0 0.0
        %2817 = vmatpush2.msra.mxu0 0.0
        %2818 = vmatprep.subr.mxu0 0.0
        %2819 = vmatpush2.msra.mxu0 0.0
        %2820 = vmatprep.subr.mxu0 0.0
        %2821 = vmatpush2.msra.mxu0 0.0
        %2822 = vmatprep.subr.mxu0 0.0
        %2823 = vmatpush2.msra.mxu0 0.0
        %2824 = vmatprep.subr.mxu0 0.0
        %2825 = vmatpush2.msra.mxu0 0.0
        %2826 = vmatprep.subr.mxu0 0.0
        %2827 = vmatpush2.msra.mxu0 0.0
        %2828 = vmatprep.subr.mxu0 0.0
        %2829 = vmatpush2.msra.mxu0 0.0
        %2830 = vmatprep.subr.mxu0 0.0
        %2831 = vmatpush2.msra.mxu0 0.0
        %2832 = vmatprep.subr.mxu0 0.0
        %2833 = vmatpush2.msra.mxu0 0.0
        %2834 = vmatprep.subr.mxu0 0.0
        %2835 = vmatpush2.msra.mxu0 0.0
        %2836 = vmatprep.mubr.f32.mxu0 0.0
        %v2837 = vand.u32 %v2323, 4294901760
        %2838 = vmatmul.mubr.f32.gmra.mxu0 %v2837
        %v2839 = vpop.f32.mrf.mxu0
        %v2840 = vadd.f32 %v2759, %v2839
        %v2841 = vpop.f32.mrf.mxu0
        %v2842 = vadd.f32 %v2761, %v2841
        %2843 = vmatprep.mubr.f32.mxu0 0.0
        %v2844 = vand.u32 %v2326, 4294901760
        %2845 = vmatmul.mubr.f32.gmra.mxu0 %v2844
        %v2846 = vpop.f32.mrf.mxu0
        %v2847 = vadd.f32 %v2766, %v2846
        %v2848 = vpop.f32.mrf.mxu0
        %v2849 = vadd.f32 %v2768, %v2848
        %2850 = vdwg.mxu0
        %2851 = vmatprep.subr.mxu0 0.0
        %2852 = vmatpush1.msra.mxu0 0.0
        %2853 = vmatprep.subr.mxu0 0.0
        %2854 = vmatpush1.msra.mxu0 0.0
        %2855 = vmatprep.subr.mxu0 0.0
        %2856 = vmatpush1.msra.mxu0 0.0
        %2857 = vmatprep.subr.mxu0 0.0
        %2858 = vmatpush1.msra.mxu0 0.0
        %2859 = vmatprep.subr.mxu0 0.0
        %2860 = vmatpush1.msra.mxu0 0.0
        %2861 = vmatprep.subr.mxu0 0.0
        %2862 = vmatpush1.msra.mxu0 0.0
        %2863 = vmatprep.subr.mxu0 0.0
        %2864 = vmatpush1.msra.mxu0 0.0
        %2865 = vmatprep.subr.mxu0 0.0
        %2866 = vmatpush1.msra.mxu0 0.0
        %2867 = vmatprep.subr.mxu0 0.0
        %2868 = vmatpush1.msra.mxu0 0.0
        %2869 = vmatprep.subr.mxu0 0.0
        %2870 = vmatpush1.msra.mxu0 0.0
        %2871 = vmatprep.subr.mxu0 0.0
        %2872 = vmatpush1.msra.mxu0 0.0
        %2873 = vmatprep.subr.mxu0 0.0
        %2874 = vmatpush1.msra.mxu0 0.0
        %2875 = vmatprep.subr.mxu0 0.0
        %2876 = vmatpush1.msra.mxu0 0.0
        %2877 = vmatprep.subr.mxu0 0.0
        %2878 = vmatpush1.msra.mxu0 0.0
        %2879 = vmatprep.subr.mxu0 0.0
        %2880 = vmatpush1.msra.mxu0 0.0
        %v2881 = vand.u32 %v2335, 4294901760
        %2882 = vmatprep.subr.mxu0 %v2881
        %v2883 = vand.u32 %v2333, 4294901760
        %2884 = vmatpush1.msra.mxu0 %v2883
        %2885 = vmatprep.subr.mxu0 0.0
        %2886 = vmatpush2.msra.mxu0 0.0
        %2887 = vmatprep.subr.mxu0 0.0
        %2888 = vmatpush2.msra.mxu0 0.0
        %2889 = vmatprep.subr.mxu0 0.0
        %2890 = vmatpush2.msra.mxu0 0.0
        %2891 = vmatprep.subr.mxu0 0.0
        %2892 = vmatpush2.msra.mxu0 0.0
        %2893 = vmatprep.subr.mxu0 0.0
        %2894 = vmatpush2.msra.mxu0 0.0
        %2895 = vmatprep.subr.mxu0 0.0
        %2896 = vmatpush2.msra.mxu0 0.0
        %2897 = vmatprep.subr.mxu0 0.0
        %2898 = vmatpush2.msra.mxu0 0.0
        %2899 = vmatprep.subr.mxu0 0.0
        %2900 = vmatpush2.msra.mxu0 0.0
        %2901 = vmatprep.subr.mxu0 0.0
        %2902 = vmatpush2.msra.mxu0 0.0
        %2903 = vmatprep.subr.mxu0 0.0
        %2904 = vmatpush2.msra.mxu0 0.0
        %2905 = vmatprep.subr.mxu0 0.0
        %2906 = vmatpush2.msra.mxu0 0.0
        %2907 = vmatprep.subr.mxu0 0.0
        %2908 = vmatpush2.msra.mxu0 0.0
        %2909 = vmatprep.subr.mxu0 0.0
        %2910 = vmatpush2.msra.mxu0 0.0
        %2911 = vmatprep.subr.mxu0 0.0
        %2912 = vmatpush2.msra.mxu0 0.0
        %2913 = vmatprep.subr.mxu0 0.0
        %2914 = vmatpush2.msra.mxu0 0.0
        %2915 = vmatprep.subr.mxu0 0.0
        %2916 = vmatpush2.msra.mxu0 0.0
        %2917 = vmatprep.mubr.f32.mxu0 0.0
        %v2918 = vand.u32 %v2323, 4294901760
        %v2919 = vsub.f32 %v2323, %v2918
        %v2920 = vand.u32 %v2919, 4294901760
        %v2921 = vsub.f32 %v2919, %v2920
        %v2922 = vand.u32 %v2921, 4294901760
        %2923 = vmatmul.mubr.f32.gmra.mxu0 %v2922
        %v2924 = vpop.f32.mrf.mxu0
        %v2925 = vadd.f32 0.0, %v2924
        %v2926 = vpop.f32.mrf.mxu0
        %v2927 = vadd.f32 0.0, %v2926
        %2928 = vmatprep.mubr.f32.mxu0 0.0
        %v2929 = vand.u32 %v2326, 4294901760
        %v2930 = vsub.f32 %v2326, %v2929
        %v2931 = vand.u32 %v2930, 4294901760
        %v2932 = vsub.f32 %v2930, %v2931
        %v2933 = vand.u32 %v2932, 4294901760
        %2934 = vmatmul.mubr.f32.gmra.mxu0 %v2933
        %v2935 = vpop.f32.mrf.mxu0
        %v2936 = vadd.f32 0.0, %v2935
        %v2937 = vpop.f32.mrf.mxu0
        %v2938 = vadd.f32 0.0, %v2937
        %2939 = vdwg.mxu0
        %2940 = vmatprep.subr.mxu0 0.0
        %2941 = vmatpush1.msra.mxu0 0.0
        %2942 = vmatprep.subr.mxu0 0.0
        %2943 = vmatpush1.msra.mxu0 0.0
        %2944 = vmatprep.subr.mxu0 0.0
        %2945 = vmatpush1.msra.mxu0 0.0
        %2946 = vmatprep.subr.mxu0 0.0
        %2947 = vmatpush1.msra.mxu0 0.0
        %2948 = vmatprep.subr.mxu0 0.0
        %2949 = vmatpush1.msra.mxu0 0.0
        %2950 = vmatprep.subr.mxu0 0.0
        %2951 = vmatpush1.msra.mxu0 0.0
        %2952 = vmatprep.subr.mxu0 0.0
        %2953 = vmatpush1.msra.mxu0 0.0
        %2954 = vmatprep.subr.mxu0 0.0
        %2955 = vmatpush1.msra.mxu0 0.0
        %2956 = vmatprep.subr.mxu0 0.0
        %2957 = vmatpush1.msra.mxu0 0.0
        %2958 = vmatprep.subr.mxu0 0.0
        %2959 = vmatpush1.msra.mxu0 0.0
        %2960 = vmatprep.subr.mxu0 0.0
        %2961 = vmatpush1.msra.mxu0 0.0
        %2962 = vmatprep.subr.mxu0 0.0
        %2963 = vmatpush1.msra.mxu0 0.0
        %2964 = vmatprep.subr.mxu0 0.0
        %2965 = vmatpush1.msra.mxu0 0.0
        %2966 = vmatprep.subr.mxu0 0.0
        %2967 = vmatpush1.msra.mxu0 0.0
        %2968 = vmatprep.subr.mxu0 0.0
        %2969 = vmatpush1.msra.mxu0 0.0
        %v2970 = vand.u32 %v2335, 4294901760
        %v2971 = vsub.f32 %v2335, %v2970
        %v2972 = vand.u32 %v2971, 4294901760
        %v2973 = vsub.f32 %v2971, %v2972
        %v2974 = vand.u32 %v2973, 4294901760
        %2975 = vmatprep.subr.mxu0 %v2974
        %v2976 = vand.u32 %v2333, 4294901760
        %v2977 = vsub.f32 %v2333, %v2976
        %v2978 = vand.u32 %v2977, 4294901760
        %v2979 = vsub.f32 %v2977, %v2978
        %v2980 = vand.u32 %v2979, 4294901760
        %2981 = vmatpush1.msra.mxu0 %v2980
        %2982 = vmatprep.subr.mxu0 0.0
        %2983 = vmatpush2.msra.mxu0 0.0
        %2984 = vmatprep.subr.mxu0 0.0
        %2985 = vmatpush2.msra.mxu0 0.0
        %2986 = vmatprep.subr.mxu0 0.0
        %2987 = vmatpush2.msra.mxu0 0.0
        %2988 = vmatprep.subr.mxu0 0.0
        %2989 = vmatpush2.msra.mxu0 0.0
        %2990 = vmatprep.subr.mxu0 0.0
        %2991 = vmatpush2.msra.mxu0 0.0
        %2992 = vmatprep.subr.mxu0 0.0
        %2993 = vmatpush2.msra.mxu0 0.0
        %2994 = vmatprep.subr.mxu0 0.0
        %2995 = vmatpush2.msra.mxu0 0.0
        %2996 = vmatprep.subr.mxu0 0.0
        %2997 = vmatpush2.msra.mxu0 0.0
        %2998 = vmatprep.subr.mxu0 0.0
        %2999 = vmatpush2.msra.mxu0 0.0
        %3000 = vmatprep.subr.mxu0 0.0
        %3001 = vmatpush2.msra.mxu0 0.0
        %3002 = vmatprep.subr.mxu0 0.0
        %3003 = vmatpush2.msra.mxu0 0.0
        %3004 = vmatprep.subr.mxu0 0.0
        %3005 = vmatpush2.msra.mxu0 0.0
        %3006 = vmatprep.subr.mxu0 0.0
        %3007 = vmatpush2.msra.mxu0 0.0
        %3008 = vmatprep.subr.mxu0 0.0
        %3009 = vmatpush2.msra.mxu0 0.0
        %3010 = vmatprep.subr.mxu0 0.0
        %3011 = vmatpush2.msra.mxu0 0.0
        %3012 = vmatprep.subr.mxu0 0.0
        %3013 = vmatpush2.msra.mxu0 0.0
        %3014 = vmatprep.mubr.f32.mxu0 0.0
        %v3015 = vand.u32 %v2323, 4294901760
        %3016 = vmatmul.mubr.f32.gmra.mxu0 %v3015
        %v3017 = vpop.f32.mrf.mxu0
        %v3018 = vadd.f32 %v2925, %v3017
        %v3019 = vpop.f32.mrf.mxu0
        %v3020 = vadd.f32 %v2927, %v3019
        %3021 = vmatprep.mubr.f32.mxu0 0.0
        %v3022 = vand.u32 %v2326, 4294901760
        %3023 = vmatmul.mubr.f32.gmra.mxu0 %v3022
        %v3024 = vpop.f32.mrf.mxu0
        %v3025 = vadd.f32 %v2936, %v3024
        %v3026 = vpop.f32.mrf.mxu0
        %v3027 = vadd.f32 %v2938, %v3026
        %3028 = vdwg.mxu0
        %3029 = vmatprep.subr.mxu0 0.0
        %3030 = vmatpush1.msra.mxu0 0.0
        %3031 = vmatprep.subr.mxu0 0.0
        %3032 = vmatpush1.msra.mxu0 0.0
        %3033 = vmatprep.subr.mxu0 0.0
        %3034 = vmatpush1.msra.mxu0 0.0
        %3035 = vmatprep.subr.mxu0 0.0
        %3036 = vmatpush1.msra.mxu0 0.0
        %3037 = vmatprep.subr.mxu0 0.0
        %3038 = vmatpush1.msra.mxu0 0.0
        %3039 = vmatprep.subr.mxu0 0.0
        %3040 = vmatpush1.msra.mxu0 0.0
        %3041 = vmatprep.subr.mxu0 0.0
        %3042 = vmatpush1.msra.mxu0 0.0
        %3043 = vmatprep.subr.mxu0 0.0
        %3044 = vmatpush1.msra.mxu0 0.0
        %3045 = vmatprep.subr.mxu0 0.0
        %3046 = vmatpush1.msra.mxu0 0.0
        %3047 = vmatprep.subr.mxu0 0.0
        %3048 = vmatpush1.msra.mxu0 0.0
        %3049 = vmatprep.subr.mxu0 0.0
        %3050 = vmatpush1.msra.mxu0 0.0
        %3051 = vmatprep.subr.mxu0 0.0
        %3052 = vmatpush1.msra.mxu0 0.0
        %3053 = vmatprep.subr.mxu0 0.0
        %3054 = vmatpush1.msra.mxu0 0.0
        %3055 = vmatprep.subr.mxu0 0.0
        %3056 = vmatpush1.msra.mxu0 0.0
        %3057 = vmatprep.subr.mxu0 0.0
        %3058 = vmatpush1.msra.mxu0 0.0
        %v3059 = vand.u32 %v2335, 4294901760
        %v3060 = vsub.f32 %v2335, %v3059
        %3061 = vmatprep.subr.mxu0 %v3060
        %v3062 = vand.u32 %v2333, 4294901760
        %v3063 = vsub.f32 %v2333, %v3062
        %3064 = vmatpush1.msra.mxu0 %v3063
        %3065 = vmatprep.subr.mxu0 0.0
        %3066 = vmatpush2.msra.mxu0 0.0
        %3067 = vmatprep.subr.mxu0 0.0
        %3068 = vmatpush2.msra.mxu0 0.0
        %3069 = vmatprep.subr.mxu0 0.0
        %3070 = vmatpush2.msra.mxu0 0.0
        %3071 = vmatprep.subr.mxu0 0.0
        %3072 = vmatpush2.msra.mxu0 0.0
        %3073 = vmatprep.subr.mxu0 0.0
        %3074 = vmatpush2.msra.mxu0 0.0
        %3075 = vmatprep.subr.mxu0 0.0
        %3076 = vmatpush2.msra.mxu0 0.0
        %3077 = vmatprep.subr.mxu0 0.0
        %3078 = vmatpush2.msra.mxu0 0.0
        %3079 = vmatprep.subr.mxu0 0.0
        %3080 = vmatpush2.msra.mxu0 0.0
        %3081 = vmatprep.subr.mxu0 0.0
        %3082 = vmatpush2.msra.mxu0 0.0
        %3083 = vmatprep.subr.mxu0 0.0
        %3084 = vmatpush2.msra.mxu0 0.0
        %3085 = vmatprep.subr.mxu0 0.0
        %3086 = vmatpush2.msra.mxu0 0.0
        %3087 = vmatprep.subr.mxu0 0.0
        %3088 = vmatpush2.msra.mxu0 0.0
        %3089 = vmatprep.subr.mxu0 0.0
        %3090 = vmatpush2.msra.mxu0 0.0
        %3091 = vmatprep.subr.mxu0 0.0
        %3092 = vmatpush2.msra.mxu0 0.0
        %3093 = vmatprep.subr.mxu0 0.0
        %3094 = vmatpush2.msra.mxu0 0.0
        %3095 = vmatprep.subr.mxu0 0.0
        %3096 = vmatpush2.msra.mxu0 0.0
        %3097 = vmatprep.mubr.f32.mxu0 0.0
        %v3098 = vand.u32 %v2323, 4294901760
        %v3099 = vsub.f32 %v2323, %v3098
        %3100 = vmatmul.mubr.f32.gmra.mxu0 %v3099
        %v3101 = vpop.f32.mrf.mxu0
        %v3102 = vadd.f32 %v3018, %v3101
        %v3103 = vpop.f32.mrf.mxu0
        %v3104 = vadd.f32 %v3020, %v3103
        %3105 = vmatprep.mubr.f32.mxu0 0.0
        %v3106 = vand.u32 %v2326, 4294901760
        %v3107 = vsub.f32 %v2326, %v3106
        %3108 = vmatmul.mubr.f32.gmra.mxu0 %v3107
        %v3109 = vpop.f32.mrf.mxu0
        %v3110 = vadd.f32 %v3025, %v3109
        %v3111 = vpop.f32.mrf.mxu0
        %v3112 = vadd.f32 %v3027, %v3111
        %3113 = vdwg.mxu0
        %3114 = vmatprep.subr.mxu0 0.0
        %3115 = vmatpush1.msra.mxu0 0.0
        %3116 = vmatprep.subr.mxu0 0.0
        %3117 = vmatpush1.msra.mxu0 0.0
        %3118 = vmatprep.subr.mxu0 0.0
        %3119 = vmatpush1.msra.mxu0 0.0
        %3120 = vmatprep.subr.mxu0 0.0
        %3121 = vmatpush1.msra.mxu0 0.0
        %3122 = vmatprep.subr.mxu0 0.0
        %3123 = vmatpush1.msra.mxu0 0.0
        %3124 = vmatprep.subr.mxu0 0.0
        %3125 = vmatpush1.msra.mxu0 0.0
        %3126 = vmatprep.subr.mxu0 0.0
        %3127 = vmatpush1.msra.mxu0 0.0
        %3128 = vmatprep.subr.mxu0 0.0
        %3129 = vmatpush1.msra.mxu0 0.0
        %3130 = vmatprep.subr.mxu0 0.0
        %3131 = vmatpush1.msra.mxu0 0.0
        %3132 = vmatprep.subr.mxu0 0.0
        %3133 = vmatpush1.msra.mxu0 0.0
        %3134 = vmatprep.subr.mxu0 0.0
        %3135 = vmatpush1.msra.mxu0 0.0
        %3136 = vmatprep.subr.mxu0 0.0
        %3137 = vmatpush1.msra.mxu0 0.0
        %3138 = vmatprep.subr.mxu0 0.0
        %3139 = vmatpush1.msra.mxu0 0.0
        %3140 = vmatprep.subr.mxu0 0.0
        %3141 = vmatpush1.msra.mxu0 0.0
        %3142 = vmatprep.subr.mxu0 0.0
        %3143 = vmatpush1.msra.mxu0 0.0
        %v3144 = vand.u32 %v2335, 4294901760
        %3145 = vmatprep.subr.mxu0 %v3144
        %v3146 = vand.u32 %v2333, 4294901760
        %3147 = vmatpush1.msra.mxu0 %v3146
        %3148 = vmatprep.subr.mxu0 0.0
        %3149 = vmatpush2.msra.mxu0 0.0
        %3150 = vmatprep.subr.mxu0 0.0
        %3151 = vmatpush2.msra.mxu0 0.0
        %3152 = vmatprep.subr.mxu0 0.0
        %3153 = vmatpush2.msra.mxu0 0.0
        %3154 = vmatprep.subr.mxu0 0.0
        %3155 = vmatpush2.msra.mxu0 0.0
        %3156 = vmatprep.subr.mxu0 0.0
        %3157 = vmatpush2.msra.mxu0 0.0
        %3158 = vmatprep.subr.mxu0 0.0
        %3159 = vmatpush2.msra.mxu0 0.0
        %3160 = vmatprep.subr.mxu0 0.0
        %3161 = vmatpush2.msra.mxu0 0.0
        %3162 = vmatprep.subr.mxu0 0.0
        %3163 = vmatpush2.msra.mxu0 0.0
        %3164 = vmatprep.subr.mxu0 0.0
        %3165 = vmatpush2.msra.mxu0 0.0
        %3166 = vmatprep.subr.mxu0 0.0
        %3167 = vmatpush2.msra.mxu0 0.0
        %3168 = vmatprep.subr.mxu0 0.0
        %3169 = vmatpush2.msra.mxu0 0.0
        %3170 = vmatprep.subr.mxu0 0.0
        %3171 = vmatpush2.msra.mxu0 0.0
        %3172 = vmatprep.subr.mxu0 0.0
        %3173 = vmatpush2.msra.mxu0 0.0
        %3174 = vmatprep.subr.mxu0 0.0
        %3175 = vmatpush2.msra.mxu0 0.0
        %3176 = vmatprep.subr.mxu0 0.0
        %3177 = vmatpush2.msra.mxu0 0.0
        %3178 = vmatprep.subr.mxu0 0.0
        %3179 = vmatpush2.msra.mxu0 0.0
        %3180 = vmatprep.mubr.f32.mxu0 0.0
        %v3181 = vand.u32 %v2323, 4294901760
        %v3182 = vsub.f32 %v2323, %v3181
        %v3183 = vand.u32 %v3182, 4294901760
        %3184 = vmatmul.mubr.f32.gmra.mxu0 %v3183
        %v3185 = vpop.f32.mrf.mxu0
        %v3186 = vadd.f32 %v3102, %v3185
        %v3187 = vpop.f32.mrf.mxu0
        %v3188 = vadd.f32 %v3104, %v3187
        %3189 = vmatprep.mubr.f32.mxu0 0.0
        %v3190 = vand.u32 %v2326, 4294901760
        %v3191 = vsub.f32 %v2326, %v3190
        %v3192 = vand.u32 %v3191, 4294901760
        %3193 = vmatmul.mubr.f32.gmra.mxu0 %v3192
        %v3194 = vpop.f32.mrf.mxu0
        %v3195 = vadd.f32 %v3110, %v3194
        %v3196 = vpop.f32.mrf.mxu0
        %v3197 = vadd.f32 %v3112, %v3196
        %3198 = vdwg.mxu0
        %3199 = vmatprep.subr.mxu0 0.0
        %3200 = vmatpush1.msra.mxu0 0.0
        %3201 = vmatprep.subr.mxu0 0.0
        %3202 = vmatpush1.msra.mxu0 0.0
        %3203 = vmatprep.subr.mxu0 0.0
        %3204 = vmatpush1.msra.mxu0 0.0
        %3205 = vmatprep.subr.mxu0 0.0
        %3206 = vmatpush1.msra.mxu0 0.0
        %3207 = vmatprep.subr.mxu0 0.0
        %3208 = vmatpush1.msra.mxu0 0.0
        %3209 = vmatprep.subr.mxu0 0.0
        %3210 = vmatpush1.msra.mxu0 0.0
        %3211 = vmatprep.subr.mxu0 0.0
        %3212 = vmatpush1.msra.mxu0 0.0
        %3213 = vmatprep.subr.mxu0 0.0
        %3214 = vmatpush1.msra.mxu0 0.0
        %3215 = vmatprep.subr.mxu0 0.0
        %3216 = vmatpush1.msra.mxu0 0.0
        %3217 = vmatprep.subr.mxu0 0.0
        %3218 = vmatpush1.msra.mxu0 0.0
        %3219 = vmatprep.subr.mxu0 0.0
        %3220 = vmatpush1.msra.mxu0 0.0
        %3221 = vmatprep.subr.mxu0 0.0
        %3222 = vmatpush1.msra.mxu0 0.0
        %3223 = vmatprep.subr.mxu0 0.0
        %3224 = vmatpush1.msra.mxu0 0.0
        %3225 = vmatprep.subr.mxu0 0.0
        %3226 = vmatpush1.msra.mxu0 0.0
        %3227 = vmatprep.subr.mxu0 0.0
        %3228 = vmatpush1.msra.mxu0 0.0
        %v3229 = vand.u32 %v2335, 4294901760
        %v3230 = vsub.f32 %v2335, %v3229
        %v3231 = vand.u32 %v3230, 4294901760
        %3232 = vmatprep.subr.mxu0 %v3231
        %v3233 = vand.u32 %v2333, 4294901760
        %v3234 = vsub.f32 %v2333, %v3233
        %v3235 = vand.u32 %v3234, 4294901760
        %3236 = vmatpush1.msra.mxu0 %v3235
        %3237 = vmatprep.subr.mxu0 0.0
        %3238 = vmatpush2.msra.mxu0 0.0
        %3239 = vmatprep.subr.mxu0 0.0
        %3240 = vmatpush2.msra.mxu0 0.0
        %3241 = vmatprep.subr.mxu0 0.0
        %3242 = vmatpush2.msra.mxu0 0.0
        %3243 = vmatprep.subr.mxu0 0.0
        %3244 = vmatpush2.msra.mxu0 0.0
        %3245 = vmatprep.subr.mxu0 0.0
        %3246 = vmatpush2.msra.mxu0 0.0
        %3247 = vmatprep.subr.mxu0 0.0
        %3248 = vmatpush2.msra.mxu0 0.0
        %3249 = vmatprep.subr.mxu0 0.0
        %3250 = vmatpush2.msra.mxu0 0.0
        %3251 = vmatprep.subr.mxu0 0.0
        %3252 = vmatpush2.msra.mxu0 0.0
        %3253 = vmatprep.subr.mxu0 0.0
        %3254 = vmatpush2.msra.mxu0 0.0
        %3255 = vmatprep.subr.mxu0 0.0
        %3256 = vmatpush2.msra.mxu0 0.0
        %3257 = vmatprep.subr.mxu0 0.0
        %3258 = vmatpush2.msra.mxu0 0.0
        %3259 = vmatprep.subr.mxu0 0.0
        %3260 = vmatpush2.msra.mxu0 0.0
        %3261 = vmatprep.subr.mxu0 0.0
        %3262 = vmatpush2.msra.mxu0 0.0
        %3263 = vmatprep.subr.mxu0 0.0
        %3264 = vmatpush2.msra.mxu0 0.0
        %3265 = vmatprep.subr.mxu0 0.0
        %3266 = vmatpush2.msra.mxu0 0.0
        %3267 = vmatprep.subr.mxu0 0.0
        %3268 = vmatpush2.msra.mxu0 0.0
        %3269 = vmatprep.mubr.f32.mxu0 0.0
        %v3270 = vand.u32 %v2323, 4294901760
        %3271 = vmatmul.mubr.f32.gmra.mxu0 %v3270
        %v3272 = vpop.f32.mrf.mxu0
        %v3273 = vadd.f32 %v3186, %v3272
        %v3274 = vpop.f32.mrf.mxu0
        %v3275 = vadd.f32 %v3188, %v3274
        %3276 = vmatprep.mubr.f32.mxu0 0.0
        %v3277 = vand.u32 %v2326, 4294901760
        %3278 = vmatmul.mubr.f32.gmra.mxu0 %v3277
        %v3279 = vpop.f32.mrf.mxu0
        %v3280 = vadd.f32 %v3195, %v3279
        %v3281 = vpop.f32.mrf.mxu0
        %v3282 = vadd.f32 %v3197, %v3281
        %3283 = vdwg.mxu0
        %3284 = vmatprep.subr.mxu0 0.0
        %3285 = vmatpush1.msra.mxu0 0.0
        %3286 = vmatprep.subr.mxu0 0.0
        %3287 = vmatpush1.msra.mxu0 0.0
        %3288 = vmatprep.subr.mxu0 0.0
        %3289 = vmatpush1.msra.mxu0 0.0
        %3290 = vmatprep.subr.mxu0 0.0
        %3291 = vmatpush1.msra.mxu0 0.0
        %3292 = vmatprep.subr.mxu0 0.0
        %3293 = vmatpush1.msra.mxu0 0.0
        %3294 = vmatprep.subr.mxu0 0.0
        %3295 = vmatpush1.msra.mxu0 0.0
        %3296 = vmatprep.subr.mxu0 0.0
        %3297 = vmatpush1.msra.mxu0 0.0
        %3298 = vmatprep.subr.mxu0 0.0
        %3299 = vmatpush1.msra.mxu0 0.0
        %3300 = vmatprep.subr.mxu0 0.0
        %3301 = vmatpush1.msra.mxu0 0.0
        %3302 = vmatprep.subr.mxu0 0.0
        %3303 = vmatpush1.msra.mxu0 0.0
        %3304 = vmatprep.subr.mxu0 0.0
        %3305 = vmatpush1.msra.mxu0 0.0
        %3306 = vmatprep.subr.mxu0 0.0
        %3307 = vmatpush1.msra.mxu0 0.0
        %3308 = vmatprep.subr.mxu0 0.0
        %3309 = vmatpush1.msra.mxu0 0.0
        %3310 = vmatprep.subr.mxu0 0.0
        %3311 = vmatpush1.msra.mxu0 0.0
        %3312 = vmatprep.subr.mxu0 0.0
        %3313 = vmatpush1.msra.mxu0 0.0
        %v3314 = vand.u32 %v2335, 4294901760
        %3315 = vmatprep.subr.mxu0 %v3314
        %v3316 = vand.u32 %v2333, 4294901760
        %3317 = vmatpush1.msra.mxu0 %v3316
        %3318 = vmatprep.subr.mxu0 0.0
        %3319 = vmatpush2.msra.mxu0 0.0
        %3320 = vmatprep.subr.mxu0 0.0
        %3321 = vmatpush2.msra.mxu0 0.0
        %3322 = vmatprep.subr.mxu0 0.0
        %3323 = vmatpush2.msra.mxu0 0.0
        %3324 = vmatprep.subr.mxu0 0.0
        %3325 = vmatpush2.msra.mxu0 0.0
        %3326 = vmatprep.subr.mxu0 0.0
        %3327 = vmatpush2.msra.mxu0 0.0
        %3328 = vmatprep.subr.mxu0 0.0
        %3329 = vmatpush2.msra.mxu0 0.0
        %3330 = vmatprep.subr.mxu0 0.0
        %3331 = vmatpush2.msra.mxu0 0.0
        %3332 = vmatprep.subr.mxu0 0.0
        %3333 = vmatpush2.msra.mxu0 0.0
        %3334 = vmatprep.subr.mxu0 0.0
        %3335 = vmatpush2.msra.mxu0 0.0
        %3336 = vmatprep.subr.mxu0 0.0
        %3337 = vmatpush2.msra.mxu0 0.0
        %3338 = vmatprep.subr.mxu0 0.0
        %3339 = vmatpush2.msra.mxu0 0.0
        %3340 = vmatprep.subr.mxu0 0.0
        %3341 = vmatpush2.msra.mxu0 0.0
        %3342 = vmatprep.subr.mxu0 0.0
        %3343 = vmatpush2.msra.mxu0 0.0
        %3344 = vmatprep.subr.mxu0 0.0
        %3345 = vmatpush2.msra.mxu0 0.0
        %3346 = vmatprep.subr.mxu0 0.0
        %3347 = vmatpush2.msra.mxu0 0.0
        %3348 = vmatprep.subr.mxu0 0.0
        %3349 = vmatpush2.msra.mxu0 0.0
        %3350 = vmatprep.mubr.f32.mxu0 0.0
        %v3351 = vand.u32 %v2323, 4294901760
        %3352 = vmatmul.mubr.f32.gmra.mxu0 %v3351
        %v3353 = vpop.f32.mrf.mxu0
        %v3354 = vadd.f32 %v3273, %v3353
        %v3355 = vpop.f32.mrf.mxu0
        %v3356 = vadd.f32 %v3275, %v3355
        %3357 = vmatprep.mubr.f32.mxu0 0.0
        %v3358 = vand.u32 %v2326, 4294901760
        %3359 = vmatmul.mubr.f32.gmra.mxu0 %v3358
        %v3360 = vpop.f32.mrf.mxu0
        %v3361 = vadd.f32 %v3280, %v3360
        %v3362 = vpop.f32.mrf.mxu0
        %v3363 = vadd.f32 %v3282, %v3362
        %3364 = vdwg.mxu0
        %v3365 = vmul.f32 %v367, %v2840
        %v3366 = vmul.f32 %v368, %v2842
        %v3367 = vmul.f32 %v369, %v3354
        %v3368 = vmul.f32 %v370, %v3356
        %v3369 = vmul.f32 %v371, %v2847
        %v3370 = vmul.f32 %v372, %v2849
        %v3371 = vmul.f32 %v373, %v3361
        %v3372 = vmul.f32 %v374, %v3363
        %v3373 = vadd.f32 %v3365, 1.0
        %v3374 = vadd.f32 %v3366, 1.0
        %v3375 = vadd.f32 %v3367, 1.0
        %v3376 = vadd.f32 %v3368, 1.0
        %v3377 = vadd.f32 %v3369, 1.0
        %v3378 = vadd.f32 %v3370, 1.0
        %v3379 = vadd.f32 %v3371, 1.0
        %v3380 = vadd.f32 %v3372, 1.0
        %v3381 = vmul.f32 %v3373, 0.8
        %v3382 = vmul.f32 %v3374, 0.8
        %v3383 = vmul.f32 %v3375, 0.8
        %v3384 = vmul.f32 %v3376, 0.8
        %v3385 = vmul.f32 %v3377, 0.8
        %v3386 = vmul.f32 %v3378, 0.8
        %v3387 = vmul.f32 %v3379, 0.8
        %v3388 = vmul.f32 %v3380, 0.8
        %v3389 = vmul.f32 %v266, %v3381
        %v3390 = vmul.f32 %v267, %v3382
        %v3391 = vmul.f32 %v268, %v3383
        %v3392 = vmul.f32 %v269, %v3384
        %v3393 = vmul.f32 %v270, %v3385
        %v3394 = vmul.f32 %v271, %v3386
        %v3395 = vmul.f32 %v272, %v3387
        %v3396 = vmul.f32 %v273, %v3388
        %3397 = vst [vmem:[%s242] sm:$0xff] %v3389
        %3398 = vst [vmem:[%s242 + $0x8] sm:$0xff] %v3390
        %3399 = vst [vmem:[%s242 + $0x10] sm:$0xff] %v3391
        %3400 = vst [vmem:[%s242 + $0x18] sm:$0xff] %v3392
        %3401 = vst [vmem:[%s242 + $0x20] sm:$0xff] %v3393
        %3402 = vst [vmem:[%s242 + $0x28] sm:$0xff] %v3394
        %3403 = vst [vmem:[%s242 + $0x30] sm:$0xff] %v3395
        %3404 = vst [vmem:[%s242 + $0x38] sm:$0xff] %v3396
        %v3405 = vld [vmem:[%s262] sm:$0xff]
        %v3406 = vld [vmem:[%s262 + $0x8] sm:$0xff]
        %v3407 = vld [vmem:[%s262 + $0x10] sm:$0xff]
        %v3408 = vld [vmem:[%s262 + $0x18] sm:$0xff]
        %v3409 = vld [vmem:[%s262 + $0x20] sm:$0xff]
        %v3410 = vld [vmem:[%s262 + $0x28] sm:$0xff]
        %v3411 = vld [vmem:[%s262 + $0x30] sm:$0xff]
        %v3412 = vld [vmem:[%s262 + $0x38] sm:$0xff]
        %v3413 = vmul.f32 %v3405, %v3381
        %v3414 = vmul.f32 %v3406, %v3382
        %v3415 = vmul.f32 %v3407, %v3383
        %v3416 = vmul.f32 %v3408, %v3384
        %v3417 = vmul.f32 %v3409, %v3385
        %v3418 = vmul.f32 %v3410, %v3386
        %v3419 = vmul.f32 %v3411, %v3387
        %v3420 = vmul.f32 %v3412, %v3388
        %3421 = vst [vmem:[%s249] sm:$0xff] %v3413
        %3422 = vst [vmem:[%s249 + $0x8] sm:$0xff] %v3414
        %3423 = vst [vmem:[%s249 + $0x10] sm:$0xff] %v3415
        %3424 = vst [vmem:[%s249 + $0x18] sm:$0xff] %v3416
        %3425 = vst [vmem:[%s249 + $0x20] sm:$0xff] %v3417
        %3426 = vst [vmem:[%s249 + $0x28] sm:$0xff] %v3418
        %3427 = vst [vmem:[%s249 + $0x30] sm:$0xff] %v3419
        %3428 = vst [vmem:[%s249 + $0x38] sm:$0xff] %v3420
        %s3429 = sand.u32 %s125, 1
        %s3430 = scalar_lea.sflag [#allocation3], %s3429
        %s3431 = sand.u32 %s125, 1
        %s3432 = smul.addr %s3431, 64
        %s3433 = scalar_lea.vmem [#allocation2], %s3432
        %s3434 = sand.u32 %s151, 1
        %s3435 = scalar_lea.sflag [#allocation5], %s3434
        %s3436 = sand.u32 %s151, 1
        %s3437 = smul.addr %s3436, 64
        %s3438 = scalar_lea.vmem [#allocation4], %s3437
        // Predicated region
        $region37: #{tpu_custom_call.1} parent=35 // pred_check
          %p3439 = pneg %p135
        $region38: #{tpu_custom_call.1} parent=35 // pred_check_branch
          %3441 = sbr.rel (%p3439) target = $region40
        $region39: #{tpu_custom_call.1} parent=35 // pred_region
          %s3442 = smul.u32 2, %s23
          %s3444 = ssub.s32 1024, 1024
          %3445 = vsyncadd %s3430, %s3444
          %s3446 = smul.addr %s3442, 4
          %s3447 = smul.addr %s3446, 128
          %s3448 = scalar_lea.hbm %s4, %s3447
          %s3449 = sshll.u32 %s3433, 4
          %s3450 = int_to_ptr.vmem [resolvable:$true] %s3449
          %3455 = dma.vmem_to_hbm [thread:$0]  %s3450, 1024, %s3448, %s3430, 512, 512, 32
        $region40: #{tpu_custom_call.1} parent=35 // pred_fallthru
          _
        // Predicated region
        $region41: #{tpu_custom_call.1} parent=35 // pred_check
          %p3456 = pneg %p161
        $region42: #{tpu_custom_call.1} parent=35 // pred_check_branch
          %3458 = sbr.rel (%p3456) target = $region44
        $region43: #{tpu_custom_call.1} parent=35 // pred_region
          %s3459 = smul.u32 2, %s23
          %s3461 = ssub.s32 1024, 1024
          %3462 = vsyncadd %s3435, %s3461
          %s3463 = smul.addr %s3459, 4
          %s3464 = smul.addr %s3463, 128
          %s3465 = scalar_lea.hbm %s5, %s3464
          %s3466 = sshll.u32 %s3438, 4
          %s3467 = int_to_ptr.vmem [resolvable:$true] %s3466
          %3472 = dma.vmem_to_hbm [thread:$0]  %s3467, 1024, %s3465, %s3435, 512, 512, 32
        $region44: #{tpu_custom_call.1} parent=35 // pred_fallthru
          _
      $region36: #{tpu_custom_call.1} parent=5 // pred_fallthru
        _
      %p3473 = scmp.le.s32.totalorder 2, %s18
      // Predicated region
      $region45: #{tpu_custom_call.1} parent=5 // pred_check
        %p3474 = pneg %p3473
      $region46: #{tpu_custom_call.1} parent=5 // pred_check_branch
        %3476 = sbr.rel (%p3474) target = $region48
      $region47: #{tpu_custom_call.1} parent=5 // pred_region
        %s3477 = ssub.s32 %s18, 2
        // Predicated region
        $region49: #{tpu_custom_call.1} parent=47 // pred_check
          %p3478 = pneg %p141
        $region50: #{tpu_custom_call.1} parent=47 // pred_check_branch
          %3480 = sbr.rel (%p3478) target = $region52
        $region51: #{tpu_custom_call.1} parent=47 // pred_region
          %s3481 = sand.u32 %s126, 1
          %s3482 = scalar_lea.sflag [#allocation3], %s3481
          %s3483 = sand.u32 %s126, 1
          %s3484 = smul.addr %s3483, 64
          %s3485 = scalar_lea.vmem [#allocation2], %s3484
          %3486 = dma.done %s3482, 1024
        $region52: #{tpu_custom_call.1} parent=47 // pred_fallthru
          _
        // Predicated region
        $region53: #{tpu_custom_call.1} parent=47 // pred_check
          %p3487 = pneg %p167
        $region54: #{tpu_custom_call.1} parent=47 // pred_check_branch
          %3489 = sbr.rel (%p3487) target = $region56
        $region55: #{tpu_custom_call.1} parent=47 // pred_region
          %s3490 = sand.u32 %s152, 1
          %s3491 = scalar_lea.sflag [#allocation5], %s3490
          %s3492 = sand.u32 %s152, 1
          %s3493 = smul.addr %s3492, 64
          %s3494 = scalar_lea.vmem [#allocation4], %s3493
          %3495 = dma.done %s3491, 1024
        $region56: #{tpu_custom_call.1} parent=47 // pred_fallthru
          _
      $region48: #{tpu_custom_call.1} parent=5 // pred_fallthru
        _
    $region6: #{tpu_custom_call.1} parent=1 // loop_footer
      %s22 = sadd.s32 1, %s18
    $region7: #{tpu_custom_call.1} parent=1 // loop_footer_branch
      %17 = sbr.rel target = $region3
    $region8: #{tpu_custom_call.1} parent=1 // loop_exit
      _
    %3496 = vsyncpa [#allocation3], 1
    %s3497 = scalar_lea.sflag [#allocation3], 1
    %3498 = vsyncpa %s3497, 1
    %3499 = vsyncpa [#allocation5], 1
    %s3500 = scalar_lea.sflag [#allocation5], 1
    %3501 = vsyncpa %s3500, 1

</llo_original>
